<compile_context>
chip_gen: v7x
topology: tpu7x:2x2x1
jax: 0.10.0
libtpu: 0.0.40
codegen_flags: <defaults>
</compile_context>

<pallas_src>
import jax
import jax.numpy as jnp
import numpy as np
from jax import lax
from jax.experimental import pallas as pl
from jax.experimental.pallas import tpu as pltpu

EPS = 1e-5
HIDDEN_SIZE = 100
NUM_CLASSES = 10
LANE = 128                       # lane-dense padding target for channels / MLP dims
SUB = 16                         # sublane granularity for bf16-packed tiles
VMEM_LIMIT = 32 * 1024 * 1024    # raise v5e's 16 MiB default; default on v6e/v7x


def _round_up(x, m):
    return (x + m - 1) // m * m


def _pick_tile(m, cap):
    """Row tile: multiple of 16 (bf16 sublanes), <= cap, ~m/2 so grid >= 2 when possible."""
    half = max((m + 1) // 2, SUB)
    return min(cap, _round_up(half, SUB))


# ---------------------------------------------------------------------------
# Pallas kernels
# ---------------------------------------------------------------------------
def _conv_bn_relu_pool_kernel(q_ref, w_ref, shift_ref, o_ref):
    """Fused 5x5 conv (im2col matmul, BN scale folded in W) + 2x2 maxpool + shift + ReLU.

    q_ref:     (4*TM, CKKp) bf16  four pooling-quadrant patch tiles, block-contiguous
                                  (stacked by the BlockSpec layout -> single matmul)
    w_ref:     (CKKp, 128)  bf16  conv weights * BN scale, zero padded to 128 lanes
    shift_ref: (1, 128)     f32   beta + (conv_b - running_mean) * scale
    o_ref:     (TM, 128)    bf16
    """
    tm = o_ref.shape[0]
    y = jnp.dot(q_ref[...], w_ref[...], preferred_element_type=jnp.float32)  # (4*TM, 128)
    m = jnp.maximum(jnp.maximum(y[0:tm], y[tm:2 * tm]),
                    jnp.maximum(y[2 * tm:3 * tm], y[3 * tm:4 * tm]))          # 2x2 pool max
    o_ref[...] = jnp.maximum(m + shift_ref[...], 0.0).astype(o_ref.dtype)     # shift + ReLU


def _mlp_kernel(x_ref, w1_ref, b1_ref, w2_ref, b2_ref, o_ref):
    """Fused fc1 -> ReLU -> fc2 (hidden and class dims zero-padded to 128 lanes)."""
    h = jnp.dot(x_ref[...], w1_ref[...], preferred_element_type=jnp.float32) + b1_ref[...]
    h = jnp.maximum(h, 0.0).astype(jnp.bfloat16)
    o_ref[...] = (jnp.dot(h, w2_ref[...], preferred_element_type=jnp.float32)
                  + b2_ref[...]).astype(o_ref.dtype)


# ---------------------------------------------------------------------------
# Wrappers (XLA glue around the pallas_calls)
# ---------------------------------------------------------------------------
def _quad_patches(x_nhwc, K):
    """Quadrant im2col built directly at stride-2 (pool-output) resolution.

    Returns (4, M, C*K*K) with M = B*(H//2)*(W//2); patch index = c*K*K + kh*K + kw,
    matching the PyTorch (Cout, Cin, K, K) weight flatten order.
    """
    B, H, W, C = x_nhwc.shape
    pad = K // 2
    Hp, Wp = H // 2, W // 2
    xp = jnp.pad(x_nhwc, ((0, 0), (pad, pad), (pad, pad), (0, 0)))
    quads = []
    for hr in (0, 1):
        for wr in (0, 1):
            cols = [xp[:, hr + kh: hr + kh + 2 * Hp: 2, wr + kw: wr + kw + 2 * Wp: 2, :]
                    for kh in range(K) for kw in range(K)]           # each (B, Hp, Wp, C)
            p = jnp.stack(cols, axis=-1)                             # (B, Hp, Wp, C, K*K)
            quads.append(p.reshape(B * Hp * Wp, C * K * K))
    return jnp.stack(quads, axis=0)                                  # (4, M, CKK)


def _conv_block(x_nhwc, conv_w, conv_b, gamma, beta, rmean, rvar):
    """conv(5x5, pad=2) + BN(eval) + ReLU + maxpool(2x2) -> NHWC bf16 output."""
    Cout, Cin, K, _ = conv_w.shape
    B, H, W, _ = x_nhwc.shape
    Hp, Wp = H // 2, W // 2
    M = B * Hp * Wp
    CKK = Cin * K * K
    CKKp = _round_up(CKK, SUB)
    TM = _pick_tile(M, 2048)          # <=2048 keeps double-buffered LHS well under v7x VMEM
    M_pad = _round_up(M, TM)
    grid = M_pad // TM

    quads = _quad_patches(x_nhwc, K).astype(jnp.bfloat16)                     # (4, M, CKK)
    quads = jnp.pad(quads, ((0, 0), (0, M_pad - M), (0, CKKp - CKK)))         # (4, M_pad, CKKp)
    # Block-contiguous layout: the 4 quadrant tiles of each TM-row block are adjacent,
    # so BlockSpec hands the kernel a pre-stacked LHS (no in-kernel concat/VMEM copy).
    lhs = quads.reshape(4, grid, TM, CKKp).transpose(1, 0, 2, 3).reshape(grid * 4 * TM, CKKp)

    scale = gamma / jnp.sqrt(rvar + EPS)                                      # (Cout,)
    w_mat = (conv_w.reshape(Cout, CKK) * scale[:, None]).T                    # BN folded in W
    w_mat = jnp.pad(w_mat, ((0, CKKp - CKK), (0, LANE - Cout))).astype(jnp.bfloat16)
    shift = beta + (conv_b - rmean) * scale
    shift = jnp.pad(shift, (0, LANE - Cout)).reshape(1, LANE).astype(jnp.float32)

    out_rows = pl.pallas_call(
        _conv_bn_relu_pool_kernel,
        out_shape=jax.ShapeDtypeStruct((M_pad, LANE), jnp.bfloat16),
        grid=(grid,),
        in_specs=[pl.BlockSpec((4 * TM, CKKp), lambda m: (m, 0)),
                  pl.BlockSpec((CKKp, LANE), lambda m: (0, 0)),
                  pl.BlockSpec((1, LANE), lambda m: (0, 0))],
        out_specs=pl.BlockSpec((TM, LANE), lambda m: (m, 0)),
        compiler_params=pltpu.CompilerParams(
            dimension_semantics=("parallel",),
            vmem_limit_bytes=VMEM_LIMIT),
    )(lhs, w_mat, shift)

    # TODO(synk): the 128->Cout lane slice below is XLA glue that fuses into the next
    # stage's gather; 128-lane in-kernel stores are kept intentionally (unmasked vst).
    return out_rows[:M, :Cout].reshape(B, Hp, Wp, Cout)                       # bf16 NHWC


def convnet_forward(x_nchw, params):
    B = x_nchw.shape[0]
    x = jnp.transpose(x_nchw, (0, 2, 3, 1)).astype(jnp.bfloat16)              # NCHW -> NHWC

    y = _conv_block(x, params["conv1_w"], params["conv1_b"],
                    params["bn1_g"], params["bn1_b"], params["bn1_m"], params["bn1_v"])
    y = _conv_block(y, params["conv2_w"], params["conv2_b"],
                    params["bn2_g"], params["bn2_b"], params["bn2_m"], params["bn2_v"])

    _, Hc, Wc, Cc = y.shape
    D = Hc * Wc * Cc
    # NHWC flatten; the torch NCHW-flatten permutation is folded into fc1_w below,
    # so no activation relayout pass is needed.
    flat = y.reshape(B, D)                                                    # (B, 1568) bf16

    H1 = params["fc1_w"].shape[0]
    NC = params["fc2_w"].shape[0]
    H1p = _round_up(H1, LANE)         # 100 -> 128
    NCp = _round_up(NC, LANE)         # 10  -> 128 (lane-dense output stores)

    TB = _pick_tile(B, 1024)
    B_pad = _round_up(B, TB)
    grid = B_pad // TB

    flat = jnp.pad(flat, ((0, B_pad - B), (0, 0)))
    # fc1_w is (H1, C*Hc*Wc) in torch NCHW order; permute its input rows to the
    # (h, w, c) order of the NHWC flatten above. One-time weight-side cost.
    w1 = params["fc1_w"].reshape(H1, Cc, Hc, Wc).transpose(2, 3, 1, 0).reshape(D, H1)
    w1 = jnp.pad(w1, ((0, 0), (0, H1p - H1))).astype(jnp.bfloat16)            # (D, 128)
    b1 = jnp.pad(params["fc1_b"], (0, H1p - H1)).reshape(1, H1p).astype(jnp.float32)
    w2 = jnp.pad(params["fc2_w"].T, ((0, H1p - H1), (0, NCp - NC))).astype(jnp.bfloat16)
    b2 = jnp.pad(params["fc2_b"], (0, NCp - NC)).reshape(1, NCp).astype(jnp.float32)

    out = pl.pallas_call(
        _mlp_kernel,
        out_shape=jax.ShapeDtypeStruct((B_pad, NCp), jnp.float32),
        grid=(grid,),
        in_specs=[pl.BlockSpec((TB, D), lambda i: (i, 0)),
                  pl.BlockSpec((D, H1p), lambda i: (0, 0)),
                  pl.BlockSpec((1, H1p), lambda i: (0, 0)),
                  pl.BlockSpec((H1p, NCp), lambda i: (0, 0)),
                  pl.BlockSpec((1, NCp), lambda i: (0, 0))],
        out_specs=pl.BlockSpec((TB, NCp), lambda i: (i, 0)),
        compiler_params=pltpu.CompilerParams(
            dimension_semantics=("parallel",),
            vmem_limit_bytes=VMEM_LIMIT),
    )(flat, w1, b1, w2, b2)
    return out[:B, :NC]


# ---------------------------------------------------------------------------
# Deterministic parameters + pure-JAX reference
# ---------------------------------------------------------------------------
def init_params(key):
    ks = jax.random.split(key, 14)
    nrm = lambda k, s, sc=0.1: (sc * jax.random.normal(k, s)).astype(jnp.float32)
    uni = lambda k, s: jax.random.uniform(k, s, jnp.float32, 0.5, 1.5)
    return dict(
        conv1_w=nrm(ks[0], (16, 1, 5, 5)),   conv1_b=nrm(ks[1], (16,)),
        bn1_g=1.0 + nrm(ks[2], (16,)),       bn1_b=nrm(ks[3], (16,)),
        bn1_m=nrm(ks[4], (16,)),             bn1_v=uni(ks[5], (16,)),
        conv2_w=nrm(ks[6], (32, 16, 5, 5)),  conv2_b=nrm(ks[7], (32,)),
        bn2_g=1.0 + nrm(ks[8], (32,)),       bn2_b=nrm(ks[9], (32,)),
        bn2_m=nrm(ks[10], (32,)),            bn2_v=uni(ks[11], (32,)),
        fc1_w=nrm(ks[12], (HIDDEN_SIZE, 7 * 7 * 32)),
        fc1_b=jnp.zeros((HIDDEN_SIZE,), jnp.float32),
        fc2_w=nrm(ks[13], (NUM_CLASSES, HIDDEN_SIZE)),
        fc2_b=jnp.zeros((NUM_CLASSES,), jnp.float32),
    )


def reference_forward(x_nchw, p):
    def block(x, w, b, g, bb, m, v):
        y = lax.conv_general_dilated(x, w, (1, 1), ((2, 2), (2, 2)),
                                     dimension_numbers=("NCHW", "OIHW", "NCHW"))
        y = y + b[None, :, None, None]
        y = (y - m[None, :, None, None]) / jnp.sqrt(v + EPS)[None, :, None, None]
        y = y * g[None, :, None, None] + bb[None, :, None, None]
        y = jnp.maximum(y, 0.0)
        return lax.reduce_window(y, -jnp.inf, lax.max, (1, 1, 2, 2), (1, 1, 2, 2), "VALID")

    y = block(x_nchw, p["conv1_w"], p["conv1_b"], p["bn1_g"], p["bn1_b"], p["bn1_m"], p["bn1_v"])
    y = block(y, p["conv2_w"], p["conv2_b"], p["bn2_g"], p["bn2_b"], p["bn2_m"], p["bn2_v"])
    flat = y.reshape(y.shape[0], -1)
    h = jnp.maximum(flat @ p["fc1_w"].T + p["fc1_b"], 0.0)
    return h @ p["fc2_w"].T + p["fc2_b"]


if __name__ == "__main__":
    key = jax.random.PRNGKey(0)
    pkey, xkey = jax.random.split(key)
    params = init_params(pkey)
    # 28x28 input is required by fc1 = Linear(7*7*32, 100); small batch of 2.
    x = jax.random.normal(xkey, (2, 1, 28, 28), dtype=jnp.float32)

    out = jax.jit(convnet_forward)(x, params)
    out = jax.block_until_ready(out)
    assert out.shape == (2, NUM_CLASSES)

    ref = reference_forward(x, params)
    out_np = np.asarray(out, dtype=np.float32)
    ref_np = np.asarray(ref, dtype=np.float32)
    # bf16 MXU inputs across 4 matmul layers -> compare with a scale-aware 2% budget.
    tol_scale = max(float(np.max(np.abs(ref_np))), 1.0)
    np.testing.assert_allclose(out_np, ref_np, rtol=2e-2, atol=2e-2 * tol_scale)

    print("KERNEL_OK")
</pallas_src>

<mosaic_0001>
module attributes {stable_mosaic.version = 11 : i64} {
  func.func @_conv_bn_relu_pool_kernel(%arg0: i32, %arg1: memref<832x32xbf16, #tpu.memory_space<vmem>>, %arg2: memref<32x128xbf16, #tpu.memory_space<vmem>>, %arg3: memref<1x128xf32, #tpu.memory_space<vmem>>, %arg4: memref<208x128xbf16, #tpu.memory_space<vmem>>) attributes {dimension_semantics = [#tpu.dimension_semantics<parallel>], iteration_bounds = array<i64: 2>, scalar_prefetch = 0 : i64, scratch_operands = 0 : i64, tpu.core_type = #tpu.core_type<tc>, window_params = [{transform_indices = @transform_0, window_bounds = array<i64: 832, 32>}, {pipeline_mode = #tpu.pipeline_mode<synchronous>, transform_indices = @transform_1, window_bounds = array<i64: 32, 128>}, {pipeline_mode = #tpu.pipeline_mode<synchronous>, transform_indices = @transform_2, window_bounds = array<i64: 1, 128>}, {transform_indices = @transform_3, window_bounds = array<i64: 208, 128>}]} {
    %c0 = arith.constant 0 : index
    %c0_0 = arith.constant 0 : index
    %0 = vector.load %arg1[%c0, %c0_0] : memref<832x32xbf16, #tpu.memory_space<vmem>>, vector<832x32xbf16>
    %c0_1 = arith.constant 0 : index
    %c0_2 = arith.constant 0 : index
    %1 = vector.load %arg2[%c0_1, %c0_2] : memref<32x128xbf16, #tpu.memory_space<vmem>>, vector<32x128xbf16>
    %cst = arith.constant dense<0.000000e+00> : vector<832x128xf32>
    %2 = tpu.matmul %0, %1, %cst {dimension_numbers = #tpu.dot_dimension_numbers<[1], [0], [0], [1], [0, 0, 1, 1], [], []>} : vector<832x32xbf16>, vector<32x128xbf16>, vector<832x128xf32> -> vector<832x128xf32>
    %3 = vector.extract_strided_slice %2 {offsets = [0, 0], sizes = [208, 128], strides = [1, 1]} : vector<832x128xf32> to vector<208x128xf32>
    %4 = vector.extract_strided_slice %2 {offsets = [208, 0], sizes = [208, 128], strides = [1, 1]} : vector<832x128xf32> to vector<208x128xf32>
    %5 = arith.maximumf %3, %4 : vector<208x128xf32>
    %6 = vector.extract_strided_slice %2 {offsets = [416, 0], sizes = [208, 128], strides = [1, 1]} : vector<832x128xf32> to vector<208x128xf32>
    %7 = vector.extract_strided_slice %2 {offsets = [624, 0], sizes = [208, 128], strides = [1, 1]} : vector<832x128xf32> to vector<208x128xf32>
    %8 = arith.maximumf %6, %7 : vector<208x128xf32>
    %9 = arith.maximumf %5, %8 : vector<208x128xf32>
    %c0_3 = arith.constant 0 : index
    %c0_4 = arith.constant 0 : index
    %10 = vector.load %arg3[%c0_3, %c0_4] : memref<1x128xf32, #tpu.memory_space<vmem>>, vector<1x128xf32>
    %11 = vector.broadcast %10 : vector<1x128xf32> to vector<208x128xf32>
    %12 = arith.addf %9, %11 : vector<208x128xf32>
    %cst_5 = arith.constant 0.000000e+00 : f32
    %13 = vector.broadcast %cst_5 : f32 to vector<208x128xf32>
    %14 = arith.maximumf %12, %13 : vector<208x128xf32>
    %15 = arith.truncf %14 : vector<208x128xf32> to vector<208x128xbf16>
    %c0_6 = arith.constant 0 : index
    %c0_7 = arith.constant 0 : index
    %16 = vector.load %arg4[%c0_6, %c0_7] : memref<208x128xbf16, #tpu.memory_space<vmem>>, vector<208x128xbf16>
    tpu.vector_store %arg4[%c0_6, %c0_7], %15 {strides = array<i32>} : memref<208x128xbf16, #tpu.memory_space<vmem>>, vector<208x128xbf16>,
    return
  }
  func.func @transform_0(%arg0: i32) -> (i32, i32) {
    %c0_i32 = arith.constant 0 : i32
    %c0_i32_0 = arith.constant 0 : i32
    return %arg0, %c0_i32 : i32, i32
  }
  func.func @transform_1(%arg0: i32) -> (i32, i32) {
    %c0_i32 = arith.constant 0 : i32
    %c0_i32_0 = arith.constant 0 : i32
    %c0_i32_1 = arith.constant 0 : i32
    return %c0_i32, %c0_i32_0 : i32, i32
  }
  func.func @transform_2(%arg0: i32) -> (i32, i32) {
    %c0_i32 = arith.constant 0 : i32
    %c0_i32_0 = arith.constant 0 : i32
    %c0_i32_1 = arith.constant 0 : i32
    return %c0_i32, %c0_i32_0 : i32, i32
  }
  func.func @transform_3(%arg0: i32) -> (i32, i32) {
    %c0_i32 = arith.constant 0 : i32
    %c0_i32_0 = arith.constant 0 : i32
    return %arg0, %c0_i32 : i32, i32
  }
}

module attributes {stable_mosaic.version = 11 : i64} {
  func.func @_conv_bn_relu_pool_kernel(%arg0: i32, %arg1: memref<256x400xbf16, #tpu.memory_space<vmem>>, %arg2: memref<400x128xbf16, #tpu.memory_space<vmem>>, %arg3: memref<1x128xf32, #tpu.memory_space<vmem>>, %arg4: memref<64x128xbf16, #tpu.memory_space<vmem>>) attributes {dimension_semantics = [#tpu.dimension_semantics<parallel>], iteration_bounds = array<i64: 2>, scalar_prefetch = 0 : i64, scratch_operands = 0 : i64, tpu.core_type = #tpu.core_type<tc>, window_params = [{transform_indices = @transform_0, window_bounds = array<i64: 256, 400>}, {pipeline_mode = #tpu.pipeline_mode<synchronous>, transform_indices = @transform_1, window_bounds = array<i64: 400, 128>}, {pipeline_mode = #tpu.pipeline_mode<synchronous>, transform_indices = @transform_2, window_bounds = array<i64: 1, 128>}, {transform_indices = @transform_3, window_bounds = array<i64: 64, 128>}]} {
    %c0 = arith.constant 0 : index
    %c0_0 = arith.constant 0 : index
    %0 = vector.load %arg1[%c0, %c0_0] : memref<256x400xbf16, #tpu.memory_space<vmem>>, vector<256x400xbf16>
    %c0_1 = arith.constant 0 : index
    %c0_2 = arith.constant 0 : index
    %1 = vector.load %arg2[%c0_1, %c0_2] : memref<400x128xbf16, #tpu.memory_space<vmem>>, vector<400x128xbf16>
    %cst = arith.constant dense<0.000000e+00> : vector<256x128xf32>
    %2 = tpu.matmul %0, %1, %cst {dimension_numbers = #tpu.dot_dimension_numbers<[1], [0], [0], [1], [0, 0, 1, 1], [], []>} : vector<256x400xbf16>, vector<400x128xbf16>, vector<256x128xf32> -> vector<256x128xf32>
    %3 = vector.extract_strided_slice %2 {offsets = [0, 0], sizes = [64, 128], strides = [1, 1]} : vector<256x128xf32> to vector<64x128xf32>
    %4 = vector.extract_strided_slice %2 {offsets = [64, 0], sizes = [64, 128], strides = [1, 1]} : vector<256x128xf32> to vector<64x128xf32>
    %5 = arith.maximumf %3, %4 : vector<64x128xf32>
    %6 = vector.extract_strided_slice %2 {offsets = [128, 0], sizes = [64, 128], strides = [1, 1]} : vector<256x128xf32> to vector<64x128xf32>
    %7 = vector.extract_strided_slice %2 {offsets = [192, 0], sizes = [64, 128], strides = [1, 1]} : vector<256x128xf32> to vector<64x128xf32>
    %8 = arith.maximumf %6, %7 : vector<64x128xf32>
    %9 = arith.maximumf %5, %8 : vector<64x128xf32>
    %c0_3 = arith.constant 0 : index
    %c0_4 = arith.constant 0 : index
    %10 = vector.load %arg3[%c0_3, %c0_4] : memref<1x128xf32, #tpu.memory_space<vmem>>, vector<1x128xf32>
    %11 = vector.broadcast %10 : vector<1x128xf32> to vector<64x128xf32>
    %12 = arith.addf %9, %11 : vector<64x128xf32>
    %cst_5 = arith.constant 0.000000e+00 : f32
    %13 = vector.broadcast %cst_5 : f32 to vector<64x128xf32>
    %14 = arith.maximumf %12, %13 : vector<64x128xf32>
    %15 = arith.truncf %14 : vector<64x128xf32> to vector<64x128xbf16>
    %c0_6 = arith.constant 0 : index
    %c0_7 = arith.constant 0 : index
    %16 = vector.load %arg4[%c0_6, %c0_7] : memref<64x128xbf16, #tpu.memory_space<vmem>>, vector<64x128xbf16>
    tpu.vector_store %arg4[%c0_6, %c0_7], %15 {strides = array<i32>} : memref<64x128xbf16, #tpu.memory_space<vmem>>, vector<64x128xbf16>,
    return
  }
  func.func @transform_0(%arg0: i32) -> (i32, i32) {
    %c0_i32 = arith.constant 0 : i32
    %c0_i32_0 = arith.constant 0 : i32
    return %arg0, %c0_i32 : i32, i32
  }
  func.func @transform_1(%arg0: i32) -> (i32, i32) {
    %c0_i32 = arith.constant 0 : i32
    %c0_i32_0 = arith.constant 0 : i32
    %c0_i32_1 = arith.constant 0 : i32
    return %c0_i32, %c0_i32_0 : i32, i32
  }
  func.func @transform_2(%arg0: i32) -> (i32, i32) {
    %c0_i32 = arith.constant 0 : i32
    %c0_i32_0 = arith.constant 0 : i32
    %c0_i32_1 = arith.constant 0 : i32
    return %c0_i32, %c0_i32_0 : i32, i32
  }
  func.func @transform_3(%arg0: i32) -> (i32, i32) {
    %c0_i32 = arith.constant 0 : i32
    %c0_i32_0 = arith.constant 0 : i32
    return %arg0, %c0_i32 : i32, i32
  }
}

module attributes {stable_mosaic.version = 11 : i64} {
  func.func @_mlp_kernel(%arg0: i32, %arg1: memref<16x1568xbf16, #tpu.memory_space<vmem>>, %arg2: memref<1568x128xbf16, #tpu.memory_space<vmem>>, %arg3: memref<1x128xf32, #tpu.memory_space<vmem>>, %arg4: memref<128x128xbf16, #tpu.memory_space<vmem>>, %arg5: memref<1x128xf32, #tpu.memory_space<vmem>>, %arg6: memref<16x128xf32, #tpu.memory_space<vmem>>) attributes {dimension_semantics = [#tpu.dimension_semantics<parallel>], iteration_bounds = array<i64: 1>, scalar_prefetch = 0 : i64, scratch_operands = 0 : i64, tpu.core_type = #tpu.core_type<tc>, window_params = [{transform_indices = @transform_0, window_bounds = array<i64: 16, 1568>}, {pipeline_mode = #tpu.pipeline_mode<synchronous>, transform_indices = @transform_1, window_bounds = array<i64: 1568, 128>}, {pipeline_mode = #tpu.pipeline_mode<synchronous>, transform_indices = @transform_2, window_bounds = array<i64: 1, 128>}, {pipeline_mode = #tpu.pipeline_mode<synchronous>, transform_indices = @transform_3, window_bounds = array<i64: 128, 128>}, {pipeline_mode = #tpu.pipeline_mode<synchronous>, transform_indices = @transform_4, window_bounds = array<i64: 1, 128>}, {transform_indices = @transform_5, window_bounds = array<i64: 16, 128>}]} {
    %c0 = arith.constant 0 : index
    %c0_0 = arith.constant 0 : index
    %0 = vector.load %arg1[%c0, %c0_0] : memref<16x1568xbf16, #tpu.memory_space<vmem>>, vector<16x1568xbf16>
    %c0_1 = arith.constant 0 : index
    %c0_2 = arith.constant 0 : index
    %1 = vector.load %arg2[%c0_1, %c0_2] : memref<1568x128xbf16, #tpu.memory_space<vmem>>, vector<1568x128xbf16>
    %cst = arith.constant dense<0.000000e+00> : vector<16x128xf32>
    %2 = tpu.matmul %0, %1, %cst {dimension_numbers = #tpu.dot_dimension_numbers<[1], [0], [0], [1], [0, 0, 1, 1], [], []>} : vector<16x1568xbf16>, vector<1568x128xbf16>, vector<16x128xf32> -> vector<16x128xf32>
    %c0_3 = arith.constant 0 : index
    %c0_4 = arith.constant 0 : index
    %3 = vector.load %arg3[%c0_3, %c0_4] : memref<1x128xf32, #tpu.memory_space<vmem>>, vector<1x128xf32>
    %4 = vector.broadcast %3 : vector<1x128xf32> to vector<16x128xf32>
    %5 = arith.addf %2, %4 : vector<16x128xf32>
    %cst_5 = arith.constant 0.000000e+00 : f32
    %6 = vector.broadcast %cst_5 : f32 to vector<16x128xf32>
    %7 = arith.maximumf %5, %6 : vector<16x128xf32>
    %8 = arith.truncf %7 : vector<16x128xf32> to vector<16x128xbf16>
    %c0_6 = arith.constant 0 : index
    %c0_7 = arith.constant 0 : index
    %9 = vector.load %arg4[%c0_6, %c0_7] : memref<128x128xbf16, #tpu.memory_space<vmem>>, vector<128x128xbf16>
    %cst_8 = arith.constant dense<0.000000e+00> : vector<16x128xf32>
    %10 = tpu.matmul %8, %9, %cst_8 {dimension_numbers = #tpu.dot_dimension_numbers<[1], [0], [0], [1], [0, 0, 1, 1], [], []>} : vector<16x128xbf16>, vector<128x128xbf16>, vector<16x128xf32> -> vector<16x128xf32>
    %c0_9 = arith.constant 0 : index
    %c0_10 = arith.constant 0 : index
    %11 = vector.load %arg5[%c0_9, %c0_10] : memref<1x128xf32, #tpu.memory_space<vmem>>, vector<1x128xf32>
    %12 = vector.broadcast %11 : vector<1x128xf32> to vector<16x128xf32>
    %13 = arith.addf %10, %12 : vector<16x128xf32>
    %c0_11 = arith.constant 0 : index
    %c0_12 = arith.constant 0 : index
    %14 = vector.load %arg6[%c0_11, %c0_12] : memref<16x128xf32, #tpu.memory_space<vmem>>, vector<16x128xf32>
    tpu.vector_store %arg6[%c0_11, %c0_12], %13 {strides = array<i32>} : memref<16x128xf32, #tpu.memory_space<vmem>>, vector<16x128xf32>,
    return
  }
  func.func @transform_0(%arg0: i32) -> (i32, i32) {
    %c0_i32 = arith.constant 0 : i32
    %c0_i32_0 = arith.constant 0 : i32
    return %arg0, %c0_i32 : i32, i32
  }
  func.func @transform_1(%arg0: i32) -> (i32, i32) {
    %c0_i32 = arith.constant 0 : i32
    %c0_i32_0 = arith.constant 0 : i32
    %c0_i32_1 = arith.constant 0 : i32
    return %c0_i32, %c0_i32_0 : i32, i32
  }
  func.func @transform_2(%arg0: i32) -> (i32, i32) {
    %c0_i32 = arith.constant 0 : i32
    %c0_i32_0 = arith.constant 0 : i32
    %c0_i32_1 = arith.constant 0 : i32
    return %c0_i32, %c0_i32_0 : i32, i32
  }
  func.func @transform_3(%arg0: i32) -> (i32, i32) {
    %c0_i32 = arith.constant 0 : i32
    %c0_i32_0 = arith.constant 0 : i32
    %c0_i32_1 = arith.constant 0 : i32
    return %c0_i32, %c0_i32_0 : i32, i32
  }
  func.func @transform_4(%arg0: i32) -> (i32, i32) {
    %c0_i32 = arith.constant 0 : i32
    %c0_i32_0 = arith.constant 0 : i32
    %c0_i32_1 = arith.constant 0 : i32
    return %c0_i32, %c0_i32_0 : i32, i32
  }
  func.func @transform_5(%arg0: i32) -> (i32, i32) {
    %c0_i32 = arith.constant 0 : i32
    %c0_i32_0 = arith.constant 0 : i32
    return %arg0, %c0_i32 : i32, i32
  }
}

</mosaic_0001>

<llo_original>
// kernel: convnet_forward.3
$region0: #{convnet_forward.3}
  #allocation0 [shape = 'u32[]', space=smem, size = 0x4, offset = 0x4, fixed_abs, tag = 'smem constant byte address 0x4 - core index']
  #allocation1 [shape = 'u32[144,128]{1,0:T(1,128)}', space=vmem, size = 0x12000, scoped, tag = 'internal scratch']
  %s0 = inlined_call_operand.vmem [shape: bf16[1664,32], index: 0, kind: input, shape index: {}]
  %s1 = inlined_call_operand.vmem [shape: bf16[32,128], index: 1, kind: input, shape index: {}]
  %s2 = inlined_call_operand.vmem [shape: f32[1,128], index: 2, kind: input, shape index: {}]
  %s3 = inlined_call_operand.vmem [shape: bf16[416,128], index: 3, kind: output, shape index: {}]
  %s4 = sld [smem:[#allocation0]]
  $region45: #{convnet_forward.3} parent=0
    _
  %s6 = ssub.s32 1, %s4
  %s7 = scalar_select 0, %s6, %s4
  loop: start=0, step=1, limit=4
  $region2: #{convnet_forward.3} parent=0 // loop_pre_header
    _
  $region3: #{convnet_forward.3} parent=0 // loop_header
    %s9 = sphi 0, %s13
    %p10 = scmp.ge.s32.totalorder %s9, 4
    %s19 = sphi 0, %s21
    %s22 = sphi 0, %s19
    %s23 = sphi 0, %s22
    %s39 = sphi 0, %s23
    %s43 = sphi 0, %s43
    %s45 = sphi 0, %s43
    %s46 = sphi 0, %s45
    %s60 = sphi 0, %s46
    %s64 = sphi 0, %s64
    %s66 = sphi 0, %s64
    %s67 = sphi 0, %s66
    %s81 = sphi 0, %s67
    %s87 = sphi 0, %s89
    %s90 = sphi 0, %s87
    %s91 = sphi 0, %s90
    %s107 = sphi 0, %s91
  $region4: #{convnet_forward.3} parent=0 // loop_header_branch
    %12 = sbr.rel (%p10) target = $region8
  $region5: #{convnet_forward.3} parent=0 // loop_body
    %s14 = ssub.s32 %s9, 1
    %s15 = ssub.s32 %s9, 2
    %s16 = sadd.s32 %s9, 1
    %s17 = ssub.s32 %s9, %s16
    %p18 = scmp.eq.s32.totalorder %s17, 0
    %s20 = sadd.s32 %s19, 1
    %s21 = scalar_select %p18, %s19, %s20
    %p24 = pneg %p18
    %p25 = scmp.eq.s32.totalorder %s9, 1
    %p26 = por %p24, %p25
    %p27 = scmp.ne.s32.totalorder %s19, %s22
    %p28 = scmp.eq.s32.totalorder %s9, 0
    %p29 = por %p27, %p28
    %p30 = scmp.ne.s32.totalorder %s19, %s22
    %p31 = scmp.eq.s32.totalorder %s14, 1
    %p32 = por %p30, %p31
    %p33 = scmp.ne.s32.totalorder %s22, %s23
    %p34 = scmp.eq.s32.totalorder %s14, 0
    %p35 = por %p33, %p34
    %p36 = scmp.ne.s32.totalorder %s22, %s23
    %p37 = scmp.eq.s32.totalorder %s15, 1
    %p38 = por %p36, %p37
    %p40 = scmp.ne.s32.totalorder %s23, %s39
    %p41 = scmp.eq.s32.totalorder %s15, 0
    %p42 = por %p40, %p41
    %s44 = sadd.s32 %s43, 1
    %p47 = scmp.eq.s32.totalorder %s9, 1
    %p48 = scmp.ne.s32.totalorder %s43, %s45
    %p49 = scmp.eq.s32.totalorder %s9, 0
    %p50 = por %p48, %p49
    %p51 = scmp.ne.s32.totalorder %s43, %s45
    %p52 = scmp.eq.s32.totalorder %s14, 1
    %p53 = por %p51, %p52
    %p54 = scmp.ne.s32.totalorder %s45, %s46
    %p55 = scmp.eq.s32.totalorder %s14, 0
    %p56 = por %p54, %p55
    %p57 = scmp.ne.s32.totalorder %s45, %s46
    %p58 = scmp.eq.s32.totalorder %s15, 1
    %p59 = por %p57, %p58
    %p61 = scmp.ne.s32.totalorder %s46, %s60
    %p62 = scmp.eq.s32.totalorder %s15, 0
    %p63 = por %p61, %p62
    %s65 = sadd.s32 %s64, 1
    %p68 = scmp.eq.s32.totalorder %s9, 1
    %p69 = scmp.ne.s32.totalorder %s64, %s66
    %p70 = scmp.eq.s32.totalorder %s9, 0
    %p71 = por %p69, %p70
    %p72 = scmp.ne.s32.totalorder %s64, %s66
    %p73 = scmp.eq.s32.totalorder %s14, 1
    %p74 = por %p72, %p73
    %p75 = scmp.ne.s32.totalorder %s66, %s67
    %p76 = scmp.eq.s32.totalorder %s14, 0
    %p77 = por %p75, %p76
    %p78 = scmp.ne.s32.totalorder %s66, %s67
    %p79 = scmp.eq.s32.totalorder %s15, 1
    %p80 = por %p78, %p79
    %p82 = scmp.ne.s32.totalorder %s67, %s81
    %p83 = scmp.eq.s32.totalorder %s15, 0
    %p84 = por %p82, %p83
    %s85 = ssub.s32 %s9, %s16
    %p86 = scmp.eq.s32.totalorder %s85, 0
    %s88 = sadd.s32 %s87, 1
    %s89 = scalar_select %p86, %s87, %s88
    %p92 = pneg %p86
    %p93 = scmp.eq.s32.totalorder %s9, 1
    %p94 = por %p92, %p93
    %p95 = scmp.ne.s32.totalorder %s87, %s90
    %p96 = scmp.eq.s32.totalorder %s9, 0
    %p97 = por %p95, %p96
    %p98 = scmp.ne.s32.totalorder %s87, %s90
    %p99 = scmp.eq.s32.totalorder %s14, 1
    %p100 = por %p98, %p99
    %p101 = scmp.ne.s32.totalorder %s90, %s91
    %p102 = scmp.eq.s32.totalorder %s14, 0
    %p103 = por %p101, %p102
    %p104 = scmp.ne.s32.totalorder %s90, %s91
    %p105 = scmp.eq.s32.totalorder %s15, 1
    %p106 = por %p104, %p105
    %p108 = scmp.ne.s32.totalorder %s91, %s107
    %p109 = scmp.eq.s32.totalorder %s15, 0
    %p110 = por %p108, %p109
    %p111 = scmp.le.s32.totalorder 1, %s9
    %p112 = scmp.lt.s32.totalorder %s9, 3
    %p113 = pnand %p111, %p112
    %p114 = pneg %p113
    // Predicated region
    $region9: #{convnet_forward.3} parent=5 // pred_check
      _
    $region10: #{convnet_forward.3} parent=5 // pred_check_branch
      %116 = sbr.rel (%p113) target = $region12
    $region11: #{convnet_forward.3} parent=5 // pred_region
      %s117 = ssub.s32 %s9, 1
      // Predicated region
      $region13: #{convnet_forward.3} parent=11 // pred_check
        %p118 = pneg %p56
      $region14: #{convnet_forward.3} parent=11 // pred_check_branch
        %120 = sbr.rel (%p118) target = $region16
      $region15: #{convnet_forward.3} parent=11 // pred_region
        _
      $region16: #{convnet_forward.3} parent=11 // pred_fallthru
        _
      // Predicated region
      $region17: #{convnet_forward.3} parent=11 // pred_check
        %p121 = pneg %p77
      $region18: #{convnet_forward.3} parent=11 // pred_check_branch
        %123 = sbr.rel (%p121) target = $region20
      $region19: #{convnet_forward.3} parent=11 // pred_region
        _
      $region20: #{convnet_forward.3} parent=11 // pred_fallthru
        _
    $region12: #{convnet_forward.3} parent=5 // pred_fallthru
      _
    %p124 = scmp.lt.s32.totalorder %s9, 2
    // Predicated region
    $region21: #{convnet_forward.3} parent=5 // pred_check
      %p125 = pneg %p124
    $region22: #{convnet_forward.3} parent=5 // pred_check_branch
      %127 = sbr.rel (%p125) target = $region24
    $region23: #{convnet_forward.3} parent=5 // pred_region
      // Predicated region
      $region25: #{convnet_forward.3} parent=23 // pred_check
        %p128 = pneg %p29
      $region26: #{convnet_forward.3} parent=23 // pred_check_branch
        %130 = sbr.rel (%p128) target = $region28
      $region27: #{convnet_forward.3} parent=23 // pred_region
        %s131 = smul.u32 104, %s9
        %p132 = scmp.lt.s32.totalorder %s131, 207
        %s133 = scalar_select %p132, %s131, 207
        %s134 = smul.addr %s133, 4
        %s135 = scalar_lea.vmem %s0, %s134
        %s136 = smul.u32 104, %s9
      $region28: #{convnet_forward.3} parent=23 // pred_fallthru
        _
    $region24: #{convnet_forward.3} parent=5 // pred_fallthru
      _
    %p137 = scmp.le.s32.totalorder 1, %s9
    %p138 = scmp.lt.s32.totalorder %s9, 3
    %p139 = pnand %p137, %p138
    %p140 = pneg %p139
    // Predicated region
    $region29: #{convnet_forward.3} parent=5 // pred_check
      _
    $region30: #{convnet_forward.3} parent=5 // pred_check_branch
      %142 = sbr.rel (%p139) target = $region32
    $region31: #{convnet_forward.3} parent=5 // pred_region
      %s143 = ssub.s32 %s9, 1
      %s144 = smul.u32 104, %s14
      %p145 = scmp.lt.s32.totalorder %s144, 207
      %s146 = scalar_select %p145, %s144, 207
      %s147 = smul.addr %s146, 4
      %s148 = scalar_lea.vmem %s0, %s147
      %p149 = pneg %p35
      %p150 = pneg %p32
      %p151 = pneg %p56
      %p152 = pneg %p53
      %p153 = pneg %p77
      %p154 = pneg %p74
      %p155 = pneg %p103
      %p156 = pneg %p100
      %s157 = smul.u32 26, %s14
      %p158 = scmp.lt.s32.totalorder %s157, 51
      %s159 = scalar_select %p158, %s157, 51
      %s160 = smul.addr %s159, 4
      %s161 = scalar_lea.vmem %s3, %s160
      %s162 = smul.u32 104, %s14
      %p163 = scmp.lt.s32.totalorder %s162, 207
      %s164 = scalar_select %p163, %s162, 207
      %s165 = smul.addr %s164, 4
      %s166 = scalar_lea.vmem %s0, %s165
      %s167 = smul.u32 104, %s14
      %s168 = smul.u32 26, %s14
      %p169 = scmp.lt.s32.totalorder %s168, 51
      %s170 = scalar_select %p169, %s168, 51
      %s171 = smul.addr %s170, 4
      %s172 = scalar_lea.vmem %s3, %s171
      %s173 = smul.u32 26, %s14
      %v175 = vld [vmem:[%s166] sm:$0xf]
      %v176 = vld [vmem:[%s166 + $0x4] sm:$0xf]
      %v177 = vld [vmem:[%s166 + $0x8] sm:$0xf]
      %v178 = vld [vmem:[%s166 + $0xc] sm:$0xf]
      %v179 = vld [vmem:[%s166 + $0x10] sm:$0xf]
      %v180 = vld [vmem:[%s166 + $0x14] sm:$0xf]
      %v181 = vld [vmem:[%s166 + $0x18] sm:$0xf]
      %v182 = vld [vmem:[%s166 + $0x1c] sm:$0xf]
      %v183 = vld [vmem:[%s166 + $0x20] sm:$0xf]
      %v184 = vld [vmem:[%s166 + $0x24] sm:$0xf]
      %v185 = vld [vmem:[%s166 + $0x28] sm:$0xf]
      %v186 = vld [vmem:[%s166 + $0x2c] sm:$0xf]
      %v187 = vld [vmem:[%s166 + $0x30] sm:$0xf]
      %v188 = vld [vmem:[%s166 + $0x34] sm:$0xf]
      %v189 = vld [vmem:[%s166 + $0x38] sm:$0xf]
      %v190 = vld [vmem:[%s166 + $0x3c] sm:$0xf]
      %v191 = vld [vmem:[%s166 + $0x40] sm:$0xf]
      %v192 = vld [vmem:[%s166 + $0x44] sm:$0xf]
      %v193 = vld [vmem:[%s166 + $0x48] sm:$0xf]
      %v194 = vld [vmem:[%s166 + $0x4c] sm:$0xf]
      %v195 = vld [vmem:[%s166 + $0x50] sm:$0xf]
      %v196 = vld [vmem:[%s166 + $0x54] sm:$0xf]
      %v197 = vld [vmem:[%s166 + $0x58] sm:$0xf]
      %v198 = vld [vmem:[%s166 + $0x5c] sm:$0xf]
      %v199 = vld [vmem:[%s166 + $0x60] sm:$0xf]
      %v200 = vld [vmem:[%s166 + $0x64] sm:$0xf]
      %v201 = vld [vmem:[%s166 + $0x68] sm:$0xf]
      %v202 = vld [vmem:[%s166 + $0x6c] sm:$0xf]
      %v203 = vld [vmem:[%s166 + $0x70] sm:$0xf]
      %v204 = vld [vmem:[%s166 + $0x74] sm:$0xf]
      %v205 = vld [vmem:[%s166 + $0x78] sm:$0xf]
      %v206 = vld [vmem:[%s166 + $0x7c] sm:$0xf]
      %v207 = vld [vmem:[%s166 + $0x80] sm:$0xf]
      %v208 = vld [vmem:[%s166 + $0x84] sm:$0xf]
      %v209 = vld [vmem:[%s166 + $0x88] sm:$0xf]
      %v210 = vld [vmem:[%s166 + $0x8c] sm:$0xf]
      %v211 = vld [vmem:[%s166 + $0x90] sm:$0xf]
      %v212 = vld [vmem:[%s166 + $0x94] sm:$0xf]
      %v213 = vld [vmem:[%s166 + $0x98] sm:$0xf]
      %v214 = vld [vmem:[%s166 + $0x9c] sm:$0xf]
      %v215 = vld [vmem:[%s166 + $0xa0] sm:$0xf]
      %v216 = vld [vmem:[%s166 + $0xa4] sm:$0xf]
      %v217 = vld [vmem:[%s166 + $0xa8] sm:$0xf]
      %v218 = vld [vmem:[%s166 + $0xac] sm:$0xf]
      %v219 = vld [vmem:[%s166 + $0xb0] sm:$0xf]
      %v220 = vld [vmem:[%s166 + $0xb4] sm:$0xf]
      %v221 = vld [vmem:[%s166 + $0xb8] sm:$0xf]
      %v222 = vld [vmem:[%s166 + $0xbc] sm:$0xf]
      %v223 = vld [vmem:[%s166 + $0xc0] sm:$0xf]
      %v224 = vld [vmem:[%s166 + $0xc4] sm:$0xf]
      %v225 = vld [vmem:[%s166 + $0xc8] sm:$0xf]
      %v226 = vld [vmem:[%s166 + $0xcc] sm:$0xf]
      %v227 = vld [vmem:[%s166 + $0xd0] sm:$0xf]
      %v228 = vld [vmem:[%s166 + $0xd4] sm:$0xf]
      %v229 = vld [vmem:[%s166 + $0xd8] sm:$0xf]
      %v230 = vld [vmem:[%s166 + $0xdc] sm:$0xf]
      %v231 = vld [vmem:[%s166 + $0xe0] sm:$0xf]
      %v232 = vld [vmem:[%s166 + $0xe4] sm:$0xf]
      %v233 = vld [vmem:[%s166 + $0xe8] sm:$0xf]
      %v234 = vld [vmem:[%s166 + $0xec] sm:$0xf]
      %v235 = vld [vmem:[%s166 + $0xf0] sm:$0xf]
      %v236 = vld [vmem:[%s166 + $0xf4] sm:$0xf]
      %v237 = vld [vmem:[%s166 + $0xf8] sm:$0xf]
      %v238 = vld [vmem:[%s166 + $0xfc] sm:$0xf]
      %v239 = vld [vmem:[%s166 + $0x100] sm:$0xf]
      %v240 = vld [vmem:[%s166 + $0x104] sm:$0xf]
      %v241 = vld [vmem:[%s166 + $0x108] sm:$0xf]
      %v242 = vld [vmem:[%s166 + $0x10c] sm:$0xf]
      %v243 = vld [vmem:[%s166 + $0x110] sm:$0xf]
      %v244 = vld [vmem:[%s166 + $0x114] sm:$0xf]
      %v245 = vld [vmem:[%s166 + $0x118] sm:$0xf]
      %v246 = vld [vmem:[%s166 + $0x11c] sm:$0xf]
      %v247 = vld [vmem:[%s166 + $0x120] sm:$0xf]
      %v248 = vld [vmem:[%s166 + $0x124] sm:$0xf]
      %v249 = vld [vmem:[%s166 + $0x128] sm:$0xf]
      %v250 = vld [vmem:[%s166 + $0x12c] sm:$0xf]
      %v251 = vld [vmem:[%s166 + $0x130] sm:$0xf]
      %v252 = vld [vmem:[%s166 + $0x134] sm:$0xf]
      %v253 = vld [vmem:[%s166 + $0x138] sm:$0xf]
      %v254 = vld [vmem:[%s166 + $0x13c] sm:$0xf]
      %v255 = vld [vmem:[%s166 + $0x140] sm:$0xf]
      %v256 = vld [vmem:[%s166 + $0x144] sm:$0xf]
      %v257 = vld [vmem:[%s166 + $0x148] sm:$0xf]
      %v258 = vld [vmem:[%s166 + $0x14c] sm:$0xf]
      %v259 = vld [vmem:[%s166 + $0x150] sm:$0xf]
      %v260 = vld [vmem:[%s166 + $0x154] sm:$0xf]
      %v261 = vld [vmem:[%s166 + $0x158] sm:$0xf]
      %v262 = vld [vmem:[%s166 + $0x15c] sm:$0xf]
      %v263 = vld [vmem:[%s166 + $0x160] sm:$0xf]
      %v264 = vld [vmem:[%s166 + $0x164] sm:$0xf]
      %v265 = vld [vmem:[%s166 + $0x168] sm:$0xf]
      %v266 = vld [vmem:[%s166 + $0x16c] sm:$0xf]
      %v267 = vld [vmem:[%s166 + $0x170] sm:$0xf]
      %v268 = vld [vmem:[%s166 + $0x174] sm:$0xf]
      %v269 = vld [vmem:[%s166 + $0x178] sm:$0xf]
      %v270 = vld [vmem:[%s166 + $0x17c] sm:$0xf]
      %v271 = vld [vmem:[%s166 + $0x180] sm:$0xf]
      %v272 = vld [vmem:[%s166 + $0x184] sm:$0xf]
      %v273 = vld [vmem:[%s166 + $0x188] sm:$0xf]
      %v274 = vld [vmem:[%s166 + $0x18c] sm:$0xf]
      %v275 = vld [vmem:[%s166 + $0x190] sm:$0xf]
      %v276 = vld [vmem:[%s166 + $0x194] sm:$0xf]
      %v277 = vld [vmem:[%s166 + $0x198] sm:$0xf]
      %v278 = vld [vmem:[%s166 + $0x19c] sm:$0xf]
      %v279 = vld [vmem:[%s1] sm:$0xf]
      %v280 = vld [vmem:[%s1 + $0x4] sm:$0xf]
      %v281 = vld [vmem:[%s1 + $0x8] sm:$0xf]
      %v282 = vld [vmem:[%s1 + $0xc] sm:$0xf]
      %v387 = vunpack.c.l.b16 %v175
      %v388 = vunpack.c.l.b16 %v176
      %v389 = vunpack.c.l.b16 %v177
      %v390 = vunpack.c.l.b16 %v178
      %v391 = vunpack.c.l.b16 %v179
      %v392 = vunpack.c.l.b16 %v180
      %v393 = vunpack.c.l.b16 %v181
      %v394 = vunpack.c.l.b16 %v182
      %v395 = vunpack.c.l.b16 %v183
      %v396 = vunpack.c.l.b16 %v184
      %v397 = vunpack.c.l.b16 %v185
      %v398 = vunpack.c.l.b16 %v186
      %v399 = vunpack.c.l.b16 %v187
      %v400 = vunpack.c.l.b16 %v188
      %v401 = vunpack.c.l.b16 %v189
      %v402 = vunpack.c.l.b16 %v190
      %v403 = vunpack.c.l.b16 %v191
      %v404 = vunpack.c.l.b16 %v192
      %v405 = vunpack.c.l.b16 %v193
      %v406 = vunpack.c.l.b16 %v194
      %v407 = vunpack.c.l.b16 %v195
      %v408 = vunpack.c.l.b16 %v196
      %v409 = vunpack.c.l.b16 %v197
      %v410 = vunpack.c.l.b16 %v198
      %v411 = vunpack.c.l.b16 %v199
      %v412 = vunpack.c.l.b16 %v200
      %v413 = vunpack.c.l.b16 %v201
      %v414 = vunpack.c.l.b16 %v202
      %v415 = vunpack.c.l.b16 %v203
      %v416 = vunpack.c.l.b16 %v204
      %v417 = vunpack.c.l.b16 %v205
      %v418 = vunpack.c.l.b16 %v206
      %v419 = vunpack.c.l.b16 %v207
      %v420 = vunpack.c.l.b16 %v208
      %v421 = vunpack.c.l.b16 %v209
      %v422 = vunpack.c.l.b16 %v210
      %v423 = vunpack.c.l.b16 %v211
      %v424 = vunpack.c.l.b16 %v212
      %v425 = vunpack.c.l.b16 %v213
      %v426 = vunpack.c.l.b16 %v214
      %v427 = vunpack.c.l.b16 %v215
      %v428 = vunpack.c.l.b16 %v216
      %v429 = vunpack.c.l.b16 %v217
      %v430 = vunpack.c.l.b16 %v218
      %v431 = vunpack.c.l.b16 %v219
      %v432 = vunpack.c.l.b16 %v220
      %v433 = vunpack.c.l.b16 %v221
      %v434 = vunpack.c.l.b16 %v222
      %v435 = vunpack.c.l.b16 %v223
      %v436 = vunpack.c.l.b16 %v224
      %v437 = vunpack.c.l.b16 %v225
      %v438 = vunpack.c.l.b16 %v226
      %v439 = vunpack.c.l.b16 %v227
      %v440 = vunpack.c.l.b16 %v228
      %v441 = vunpack.c.l.b16 %v229
      %v442 = vunpack.c.l.b16 %v230
      %v443 = vunpack.c.l.b16 %v231
      %v444 = vunpack.c.l.b16 %v232
      %v445 = vunpack.c.l.b16 %v233
      %v446 = vunpack.c.l.b16 %v234
      %v447 = vunpack.c.l.b16 %v235
      %v448 = vunpack.c.l.b16 %v236
      %v449 = vunpack.c.l.b16 %v237
      %v450 = vunpack.c.l.b16 %v238
      %v451 = vunpack.c.l.b16 %v239
      %v452 = vunpack.c.l.b16 %v240
      %v453 = vunpack.c.l.b16 %v241
      %v454 = vunpack.c.l.b16 %v242
      %v455 = vunpack.c.l.b16 %v243
      %v456 = vunpack.c.l.b16 %v244
      %v457 = vunpack.c.l.b16 %v245
      %v458 = vunpack.c.l.b16 %v246
      %v459 = vunpack.c.l.b16 %v247
      %v460 = vunpack.c.l.b16 %v248
      %v461 = vunpack.c.l.b16 %v249
      %v462 = vunpack.c.l.b16 %v250
      %v463 = vunpack.c.l.b16 %v251
      %v464 = vunpack.c.l.b16 %v252
      %v465 = vunpack.c.l.b16 %v253
      %v466 = vunpack.c.l.b16 %v254
      %v467 = vunpack.c.l.b16 %v255
      %v468 = vunpack.c.l.b16 %v256
      %v469 = vunpack.c.l.b16 %v257
      %v470 = vunpack.c.l.b16 %v258
      %v471 = vunpack.c.l.b16 %v259
      %v472 = vunpack.c.l.b16 %v260
      %v473 = vunpack.c.l.b16 %v261
      %v474 = vunpack.c.l.b16 %v262
      %v475 = vunpack.c.l.b16 %v263
      %v476 = vunpack.c.l.b16 %v264
      %v477 = vunpack.c.l.b16 %v265
      %v478 = vunpack.c.l.b16 %v266
      %v479 = vunpack.c.l.b16 %v267
      %v480 = vunpack.c.l.b16 %v268
      %v481 = vunpack.c.l.b16 %v269
      %v482 = vunpack.c.l.b16 %v270
      %v483 = vunpack.c.l.b16 %v271
      %v484 = vunpack.c.l.b16 %v272
      %v485 = vunpack.c.l.b16 %v273
      %v486 = vunpack.c.l.b16 %v274
      %v487 = vunpack.c.l.b16 %v275
      %v488 = vunpack.c.l.b16 %v276
      %v489 = vunpack.c.l.b16 %v277
      %v490 = vunpack.c.l.b16 %v278
      %v491 = vpack.c.b16 %v388, %v387
      %v492 = vpack.c.b16 %v390, %v389
      %v493 = vpack.c.b16 %v392, %v391
      %v494 = vpack.c.b16 %v394, %v393
      %v495 = vpack.c.b16 %v396, %v395
      %v496 = vpack.c.b16 %v398, %v397
      %v497 = vpack.c.b16 %v400, %v399
      %v498 = vpack.c.b16 %v402, %v401
      %v499 = vpack.c.b16 %v404, %v403
      %v500 = vpack.c.b16 %v406, %v405
      %v501 = vpack.c.b16 %v408, %v407
      %v502 = vpack.c.b16 %v410, %v409
      %v503 = vpack.c.b16 %v412, %v411
      %v504 = vpack.c.b16 %v414, %v413
      %v505 = vpack.c.b16 %v416, %v415
      %v506 = vpack.c.b16 %v418, %v417
      %v507 = vpack.c.b16 %v420, %v419
      %v508 = vpack.c.b16 %v422, %v421
      %v509 = vpack.c.b16 %v424, %v423
      %v510 = vpack.c.b16 %v426, %v425
      %v511 = vpack.c.b16 %v428, %v427
      %v512 = vpack.c.b16 %v430, %v429
      %v513 = vpack.c.b16 %v432, %v431
      %v514 = vpack.c.b16 %v434, %v433
      %v515 = vpack.c.b16 %v436, %v435
      %v516 = vpack.c.b16 %v438, %v437
      %v517 = vpack.c.b16 %v440, %v439
      %v518 = vpack.c.b16 %v442, %v441
      %v519 = vpack.c.b16 %v444, %v443
      %v520 = vpack.c.b16 %v446, %v445
      %v521 = vpack.c.b16 %v448, %v447
      %v522 = vpack.c.b16 %v450, %v449
      %v523 = vpack.c.b16 %v452, %v451
      %v524 = vpack.c.b16 %v454, %v453
      %v525 = vpack.c.b16 %v456, %v455
      %v526 = vpack.c.b16 %v458, %v457
      %v527 = vpack.c.b16 %v460, %v459
      %v528 = vpack.c.b16 %v462, %v461
      %v529 = vpack.c.b16 %v464, %v463
      %v530 = vpack.c.b16 %v466, %v465
      %v531 = vpack.c.b16 %v468, %v467
      %v532 = vpack.c.b16 %v470, %v469
      %v533 = vpack.c.b16 %v472, %v471
      %v534 = vpack.c.b16 %v474, %v473
      %v535 = vpack.c.b16 %v476, %v475
      %v536 = vpack.c.b16 %v478, %v477
      %v537 = vpack.c.b16 %v480, %v479
      %v538 = vpack.c.b16 %v482, %v481
      %v539 = vpack.c.b16 %v484, %v483
      %v540 = vpack.c.b16 %v486, %v485
      %v541 = vpack.c.b16 %v488, %v487
      %v542 = vpack.c.b16 %v490, %v489
      %v547 = vunpack.c.l.b16 %v279
      %v548 = vunpack.c.l.b16 %v280
      %v549 = vunpack.c.l.b16 %v281
      %v550 = vunpack.c.l.b16 %v282
      %v551 = vpack.c.b16 %v548, %v547
      %v552 = vpack.c.b16 %v550, %v549
      %vm555 = vcmask 261120
      %v557 = vsel %vm555, %v491, 0
      %v560 = vsel %vm555, %v492, 0
      %v563 = vsel %vm555, %v493, 0
      %v566 = vsel %vm555, %v494, 0
      %v569 = vsel %vm555, %v495, 0
      %v572 = vsel %vm555, %v496, 0
      %v575 = vsel %vm555, %v497, 0
      %v578 = vsel %vm555, %v498, 0
      %v581 = vsel %vm555, %v499, 0
      %v584 = vsel %vm555, %v500, 0
      %v587 = vsel %vm555, %v501, 0
      %v590 = vsel %vm555, %v502, 0
      %v593 = vsel %vm555, %v503, 0
      %v596 = vsel %vm555, %v504, 0
      %v599 = vsel %vm555, %v505, 0
      %v602 = vsel %vm555, %v506, 0
      %v605 = vsel %vm555, %v507, 0
      %v608 = vsel %vm555, %v508, 0
      %v611 = vsel %vm555, %v509, 0
      %v614 = vsel %vm555, %v510, 0
      %v617 = vsel %vm555, %v511, 0
      %v620 = vsel %vm555, %v512, 0
      %v623 = vsel %vm555, %v513, 0
      %v626 = vsel %vm555, %v514, 0
      %v629 = vsel %vm555, %v515, 0
      %v632 = vsel %vm555, %v516, 0
      %v635 = vsel %vm555, %v517, 0
      %v638 = vsel %vm555, %v518, 0
      %v641 = vsel %vm555, %v519, 0
      %v644 = vsel %vm555, %v520, 0
      %v647 = vsel %vm555, %v521, 0
      %v650 = vsel %vm555, %v522, 0
      %v653 = vsel %vm555, %v523, 0
      %v656 = vsel %vm555, %v524, 0
      %v659 = vsel %vm555, %v525, 0
      %v662 = vsel %vm555, %v526, 0
      %v665 = vsel %vm555, %v527, 0
      %v668 = vsel %vm555, %v528, 0
      %v671 = vsel %vm555, %v529, 0
      %v674 = vsel %vm555, %v530, 0
      %v677 = vsel %vm555, %v531, 0
      %v680 = vsel %vm555, %v532, 0
      %v683 = vsel %vm555, %v533, 0
      %v686 = vsel %vm555, %v534, 0
      %v689 = vsel %vm555, %v535, 0
      %v692 = vsel %vm555, %v536, 0
      %v695 = vsel %vm555, %v537, 0
      %v698 = vsel %vm555, %v538, 0
      %v701 = vsel %vm555, %v539, 0
      %v704 = vsel %vm555, %v540, 0
      %v707 = vsel %vm555, %v541, 0
      %v710 = vsel %vm555, %v542, 0
      %712 = vmatprep.subr.bf16.mxu0 0
      %713 = vmatpush1.bf16.msra.mxu0 %v551
      %714 = vmatprep.subr.bf16.mxu0 0
      %715 = vmatpush1.bf16.msra.mxu0 %v552
      %716 = vmatprep.subr.bf16.mxu0 0
      %717 = vmatpush1.bf16.msra.mxu0 0
      %718 = vmatprep.subr.bf16.mxu0 0
      %719 = vmatpush1.bf16.msra.mxu0 0
      %720 = vmatprep.subr.bf16.mxu0 0
      %721 = vmatpush1.bf16.msra.mxu0 0
      %722 = vmatprep.subr.bf16.mxu0 0
      %723 = vmatpush1.bf16.msra.mxu0 0
      %724 = vmatprep.subr.bf16.mxu0 0
      %725 = vmatpush1.bf16.msra.mxu0 0
      %726 = vmatprep.subr.bf16.mxu0 0
      %727 = vmatpush1.bf16.msra.mxu0 0
      %728 = vmatprep.subr.bf16.mxu0 0
      %729 = vmatpush1.bf16.msra.mxu0 0
      %730 = vmatprep.subr.bf16.mxu0 0
      %731 = vmatpush1.bf16.msra.mxu0 0
      %732 = vmatprep.subr.bf16.mxu0 0
      %733 = vmatpush1.bf16.msra.mxu0 0
      %734 = vmatprep.subr.bf16.mxu0 0
      %735 = vmatpush1.bf16.msra.mxu0 0
      %736 = vmatprep.subr.bf16.mxu0 0
      %737 = vmatpush1.bf16.msra.mxu0 0
      %738 = vmatprep.subr.bf16.mxu0 0
      %739 = vmatpush1.bf16.msra.mxu0 0
      %740 = vmatprep.subr.bf16.mxu0 0
      %741 = vmatpush1.bf16.msra.mxu0 0
      %742 = vmatprep.subr.bf16.mxu0 0
      %743 = vmatpush1.bf16.msra.mxu0 0
      %744 = vmatprep.mubr.bf16.mxu0 0
      %745 = vmatmul.mubr.bf16.gmra.mrb[0].mxu0 %v557
      %v746 = vpop.f32.mrb[0].mxu0
      %v747 = vadd.f32 0.0, %v746
      %v748 = vpop.f32.mrb[0].mxu0
      %v749 = vpop.f32.mrb[0].mxu0
      %v750 = vadd.f32 0.0, %v749
      %v751 = vpop.f32.mrb[0].mxu0
      %752 = vmatprep.mubr.bf16.mxu0 0
      %753 = vmatmul.mubr.bf16.gmra.mrb[0].mxu0 %v560
      %v754 = vpop.f32.mrb[0].mxu0
      %v755 = vadd.f32 0.0, %v754
      %v756 = vpop.f32.mrb[0].mxu0
      %v757 = vpop.f32.mrb[0].mxu0
      %v758 = vadd.f32 0.0, %v757
      %v759 = vpop.f32.mrb[0].mxu0
      %760 = vmatprep.mubr.bf16.mxu0 0
      %761 = vmatmul.mubr.bf16.gmra.mrb[0].mxu0 %v563
      %v762 = vpop.f32.mrb[0].mxu0
      %v763 = vadd.f32 0.0, %v762
      %v764 = vpop.f32.mrb[0].mxu0
      %v765 = vpop.f32.mrb[0].mxu0
      %v766 = vadd.f32 0.0, %v765
      %v767 = vpop.f32.mrb[0].mxu0
      %768 = vmatprep.mubr.bf16.mxu0 0
      %769 = vmatmul.mubr.bf16.gmra.mrb[0].mxu0 %v566
      %v770 = vpop.f32.mrb[0].mxu0
      %v771 = vadd.f32 0.0, %v770
      %v772 = vpop.f32.mrb[0].mxu0
      %v773 = vpop.f32.mrb[0].mxu0
      %v774 = vadd.f32 0.0, %v773
      %v775 = vpop.f32.mrb[0].mxu0
      %776 = vmatprep.mubr.bf16.mxu0 0
      %777 = vmatmul.mubr.bf16.gmra.mrb[0].mxu0 %v569
      %v778 = vpop.f32.mrb[0].mxu0
      %v779 = vadd.f32 0.0, %v778
      %v780 = vpop.f32.mrb[0].mxu0
      %v781 = vpop.f32.mrb[0].mxu0
      %v782 = vadd.f32 0.0, %v781
      %v783 = vpop.f32.mrb[0].mxu0
      %784 = vmatprep.mubr.bf16.mxu0 0
      %785 = vmatmul.mubr.bf16.gmra.mrb[0].mxu0 %v572
      %v786 = vpop.f32.mrb[0].mxu0
      %v787 = vadd.f32 0.0, %v786
      %v788 = vpop.f32.mrb[0].mxu0
      %v789 = vpop.f32.mrb[0].mxu0
      %v790 = vadd.f32 0.0, %v789
      %v791 = vpop.f32.mrb[0].mxu0
      %792 = vmatprep.mubr.bf16.mxu0 0
      %793 = vmatmul.mubr.bf16.gmra.mrb[0].mxu0 %v575
      %v794 = vpop.f32.mrb[0].mxu0
      %v795 = vadd.f32 0.0, %v794
      %v796 = vpop.f32.mrb[0].mxu0
      %v797 = vpop.f32.mrb[0].mxu0
      %v798 = vadd.f32 0.0, %v797
      %v799 = vpop.f32.mrb[0].mxu0
      %800 = vmatprep.mubr.bf16.mxu0 0
      %801 = vmatmul.mubr.bf16.gmra.mrb[0].mxu0 %v578
      %v802 = vpop.f32.mrb[0].mxu0
      %v803 = vadd.f32 0.0, %v802
      %v804 = vpop.f32.mrb[0].mxu0
      %v805 = vpop.f32.mrb[0].mxu0
      %v806 = vadd.f32 0.0, %v805
      %v807 = vpop.f32.mrb[0].mxu0
      %808 = vmatprep.mubr.bf16.mxu0 0
      %809 = vmatmul.mubr.bf16.gmra.mrb[0].mxu0 %v581
      %v810 = vpop.f32.mrb[0].mxu0
      %v811 = vadd.f32 0.0, %v810
      %v812 = vpop.f32.mrb[0].mxu0
      %v813 = vpop.f32.mrb[0].mxu0
      %v814 = vadd.f32 0.0, %v813
      %v815 = vpop.f32.mrb[0].mxu0
      %816 = vmatprep.mubr.bf16.mxu0 0
      %817 = vmatmul.mubr.bf16.gmra.mrb[0].mxu0 %v584
      %v818 = vpop.f32.mrb[0].mxu0
      %v819 = vadd.f32 0.0, %v818
      %v820 = vpop.f32.mrb[0].mxu0
      %v821 = vpop.f32.mrb[0].mxu0
      %v822 = vadd.f32 0.0, %v821
      %v823 = vpop.f32.mrb[0].mxu0
      %824 = vmatprep.mubr.bf16.mxu0 0
      %825 = vmatmul.mubr.bf16.gmra.mrb[0].mxu0 %v587
      %v826 = vpop.f32.mrb[0].mxu0
      %v827 = vadd.f32 0.0, %v826
      %v828 = vpop.f32.mrb[0].mxu0
      %v829 = vpop.f32.mrb[0].mxu0
      %v830 = vadd.f32 0.0, %v829
      %v831 = vpop.f32.mrb[0].mxu0
      %832 = vmatprep.mubr.bf16.mxu0 0
      %833 = vmatmul.mubr.bf16.gmra.mrb[0].mxu0 %v590
      %v834 = vpop.f32.mrb[0].mxu0
      %v835 = vadd.f32 0.0, %v834
      %v836 = vpop.f32.mrb[0].mxu0
      %v837 = vpop.f32.mrb[0].mxu0
      %v838 = vadd.f32 0.0, %v837
      %v839 = vpop.f32.mrb[0].mxu0
      %840 = vmatprep.mubr.bf16.mxu0 0
      %841 = vmatmul.mubr.bf16.gmra.mrb[0].mxu0 %v593
      %v842 = vpop.f32.mrb[0].mxu0
      %v843 = vadd.f32 0.0, %v842
      %v844 = vpop.f32.mrb[0].mxu0
      %v845 = vpop.f32.mrb[0].mxu0
      %v846 = vadd.f32 0.0, %v845
      %v847 = vpop.f32.mrb[0].mxu0
      %848 = vmatprep.mubr.bf16.mxu0 0
      %849 = vmatmul.mubr.bf16.gmra.mrb[0].mxu0 %v596
      %v850 = vpop.f32.mrb[0].mxu0
      %v851 = vadd.f32 0.0, %v850
      %v852 = vpop.f32.mrb[0].mxu0
      %v853 = vpop.f32.mrb[0].mxu0
      %v854 = vadd.f32 0.0, %v853
      %v855 = vpop.f32.mrb[0].mxu0
      %856 = vmatprep.mubr.bf16.mxu0 0
      %857 = vmatmul.mubr.bf16.gmra.mrb[0].mxu0 %v599
      %v858 = vpop.f32.mrb[0].mxu0
      %v859 = vadd.f32 0.0, %v858
      %v860 = vpop.f32.mrb[0].mxu0
      %v861 = vpop.f32.mrb[0].mxu0
      %v862 = vadd.f32 0.0, %v861
      %v863 = vpop.f32.mrb[0].mxu0
      %864 = vmatprep.mubr.bf16.mxu0 0
      %865 = vmatmul.mubr.bf16.gmra.mrb[0].mxu0 %v602
      %v866 = vpop.f32.mrb[0].mxu0
      %v867 = vadd.f32 0.0, %v866
      %v868 = vpop.f32.mrb[0].mxu0
      %v869 = vpop.f32.mrb[0].mxu0
      %v870 = vadd.f32 0.0, %v869
      %v871 = vpop.f32.mrb[0].mxu0
      %872 = vmatprep.mubr.bf16.mxu0 0
      %873 = vmatmul.mubr.bf16.gmra.mrb[0].mxu0 %v605
      %v874 = vpop.f32.mrb[0].mxu0
      %v875 = vadd.f32 0.0, %v874
      %v876 = vpop.f32.mrb[0].mxu0
      %v877 = vpop.f32.mrb[0].mxu0
      %v878 = vadd.f32 0.0, %v877
      %v879 = vpop.f32.mrb[0].mxu0
      %880 = vmatprep.mubr.bf16.mxu0 0
      %881 = vmatmul.mubr.bf16.gmra.mrb[0].mxu0 %v608
      %v882 = vpop.f32.mrb[0].mxu0
      %v883 = vadd.f32 0.0, %v882
      %v884 = vpop.f32.mrb[0].mxu0
      %v885 = vpop.f32.mrb[0].mxu0
      %v886 = vadd.f32 0.0, %v885
      %v887 = vpop.f32.mrb[0].mxu0
      %888 = vmatprep.mubr.bf16.mxu0 0
      %889 = vmatmul.mubr.bf16.gmra.mrb[0].mxu0 %v611
      %v890 = vpop.f32.mrb[0].mxu0
      %v891 = vadd.f32 0.0, %v890
      %v892 = vpop.f32.mrb[0].mxu0
      %v893 = vpop.f32.mrb[0].mxu0
      %v894 = vadd.f32 0.0, %v893
      %v895 = vpop.f32.mrb[0].mxu0
      %896 = vmatprep.mubr.bf16.mxu0 0
      %897 = vmatmul.mubr.bf16.gmra.mrb[0].mxu0 %v614
      %v898 = vpop.f32.mrb[0].mxu0
      %v899 = vadd.f32 0.0, %v898
      %v900 = vpop.f32.mrb[0].mxu0
      %v901 = vpop.f32.mrb[0].mxu0
      %v902 = vadd.f32 0.0, %v901
      %v903 = vpop.f32.mrb[0].mxu0
      %904 = vmatprep.mubr.bf16.mxu0 0
      %905 = vmatmul.mubr.bf16.gmra.mrb[0].mxu0 %v617
      %v906 = vpop.f32.mrb[0].mxu0
      %v907 = vadd.f32 0.0, %v906
      %v908 = vpop.f32.mrb[0].mxu0
      %v909 = vpop.f32.mrb[0].mxu0
      %v910 = vadd.f32 0.0, %v909
      %v911 = vpop.f32.mrb[0].mxu0
      %912 = vmatprep.mubr.bf16.mxu0 0
      %913 = vmatmul.mubr.bf16.gmra.mrb[0].mxu0 %v620
      %v914 = vpop.f32.mrb[0].mxu0
      %v915 = vadd.f32 0.0, %v914
      %v916 = vpop.f32.mrb[0].mxu0
      %v917 = vpop.f32.mrb[0].mxu0
      %v918 = vadd.f32 0.0, %v917
      %v919 = vpop.f32.mrb[0].mxu0
      %920 = vmatprep.mubr.bf16.mxu0 0
      %921 = vmatmul.mubr.bf16.gmra.mrb[0].mxu0 %v623
      %v922 = vpop.f32.mrb[0].mxu0
      %v923 = vadd.f32 0.0, %v922
      %v924 = vpop.f32.mrb[0].mxu0
      %v925 = vpop.f32.mrb[0].mxu0
      %v926 = vadd.f32 0.0, %v925
      %v927 = vpop.f32.mrb[0].mxu0
      %928 = vmatprep.mubr.bf16.mxu0 0
      %929 = vmatmul.mubr.bf16.gmra.mrb[0].mxu0 %v626
      %v930 = vpop.f32.mrb[0].mxu0
      %v931 = vadd.f32 0.0, %v930
      %v932 = vpop.f32.mrb[0].mxu0
      %v933 = vpop.f32.mrb[0].mxu0
      %v934 = vadd.f32 0.0, %v933
      %v935 = vpop.f32.mrb[0].mxu0
      %936 = vmatprep.mubr.bf16.mxu0 0
      %937 = vmatmul.mubr.bf16.gmra.mrb[0].mxu0 %v629
      %v938 = vpop.f32.mrb[0].mxu0
      %v939 = vadd.f32 0.0, %v938
      %v940 = vpop.f32.mrb[0].mxu0
      %v941 = vpop.f32.mrb[0].mxu0
      %v942 = vadd.f32 0.0, %v941
      %v943 = vpop.f32.mrb[0].mxu0
      %944 = vmatprep.mubr.bf16.mxu0 0
      %945 = vmatmul.mubr.bf16.gmra.mrb[0].mxu0 %v632
      %v946 = vpop.f32.mrb[0].mxu0
      %v947 = vadd.f32 0.0, %v946
      %v948 = vpop.f32.mrb[0].mxu0
      %v949 = vpop.f32.mrb[0].mxu0
      %v950 = vadd.f32 0.0, %v949
      %v951 = vpop.f32.mrb[0].mxu0
      %952 = vmatprep.mubr.bf16.mxu0 0
      %953 = vmatmul.mubr.bf16.gmra.mrb[0].mxu0 %v635
      %v954 = vpop.f32.mrb[0].mxu0
      %v955 = vadd.f32 0.0, %v954
      %v956 = vpop.f32.mrb[0].mxu0
      %v957 = vpop.f32.mrb[0].mxu0
      %v958 = vadd.f32 0.0, %v957
      %v959 = vpop.f32.mrb[0].mxu0
      %960 = vmatprep.mubr.bf16.mxu0 0
      %961 = vmatmul.mubr.bf16.gmra.mrb[0].mxu0 %v638
      %v962 = vpop.f32.mrb[0].mxu0
      %v963 = vadd.f32 0.0, %v962
      %v964 = vpop.f32.mrb[0].mxu0
      %v965 = vpop.f32.mrb[0].mxu0
      %v966 = vadd.f32 0.0, %v965
      %v967 = vpop.f32.mrb[0].mxu0
      %968 = vmatprep.mubr.bf16.mxu0 0
      %969 = vmatmul.mubr.bf16.gmra.mrb[0].mxu0 %v641
      %v970 = vpop.f32.mrb[0].mxu0
      %v971 = vadd.f32 0.0, %v970
      %v972 = vpop.f32.mrb[0].mxu0
      %v973 = vpop.f32.mrb[0].mxu0
      %v974 = vadd.f32 0.0, %v973
      %v975 = vpop.f32.mrb[0].mxu0
      %976 = vmatprep.mubr.bf16.mxu0 0
      %977 = vmatmul.mubr.bf16.gmra.mrb[0].mxu0 %v644
      %v978 = vpop.f32.mrb[0].mxu0
      %v979 = vadd.f32 0.0, %v978
      %v980 = vpop.f32.mrb[0].mxu0
      %v981 = vpop.f32.mrb[0].mxu0
      %v982 = vadd.f32 0.0, %v981
      %v983 = vpop.f32.mrb[0].mxu0
      %984 = vmatprep.mubr.bf16.mxu0 0
      %985 = vmatmul.mubr.bf16.gmra.mrb[0].mxu0 %v647
      %v986 = vpop.f32.mrb[0].mxu0
      %v987 = vadd.f32 0.0, %v986
      %v988 = vpop.f32.mrb[0].mxu0
      %v989 = vpop.f32.mrb[0].mxu0
      %v990 = vadd.f32 0.0, %v989
      %v991 = vpop.f32.mrb[0].mxu0
      %992 = vmatprep.mubr.bf16.mxu0 0
      %993 = vmatmul.mubr.bf16.gmra.mrb[0].mxu0 %v650
      %v994 = vpop.f32.mrb[0].mxu0
      %v995 = vadd.f32 0.0, %v994
      %v996 = vpop.f32.mrb[0].mxu0
      %v997 = vpop.f32.mrb[0].mxu0
      %v998 = vadd.f32 0.0, %v997
      %v999 = vpop.f32.mrb[0].mxu0
      %1000 = vmatprep.mubr.bf16.mxu0 0
      %1001 = vmatmul.mubr.bf16.gmra.mrb[0].mxu0 %v653
      %v1002 = vpop.f32.mrb[0].mxu0
      %v1003 = vadd.f32 0.0, %v1002
      %v1004 = vpop.f32.mrb[0].mxu0
      %v1005 = vpop.f32.mrb[0].mxu0
      %v1006 = vadd.f32 0.0, %v1005
      %v1007 = vpop.f32.mrb[0].mxu0
      %1008 = vmatprep.mubr.bf16.mxu0 0
      %1009 = vmatmul.mubr.bf16.gmra.mrb[0].mxu0 %v656
      %v1010 = vpop.f32.mrb[0].mxu0
      %v1011 = vadd.f32 0.0, %v1010
      %v1012 = vpop.f32.mrb[0].mxu0
      %v1013 = vpop.f32.mrb[0].mxu0
      %v1014 = vadd.f32 0.0, %v1013
      %v1015 = vpop.f32.mrb[0].mxu0
      %1016 = vmatprep.mubr.bf16.mxu0 0
      %1017 = vmatmul.mubr.bf16.gmra.mrb[0].mxu0 %v659
      %v1018 = vpop.f32.mrb[0].mxu0
      %v1019 = vadd.f32 0.0, %v1018
      %v1020 = vpop.f32.mrb[0].mxu0
      %v1021 = vpop.f32.mrb[0].mxu0
      %v1022 = vadd.f32 0.0, %v1021
      %v1023 = vpop.f32.mrb[0].mxu0
      %1024 = vmatprep.mubr.bf16.mxu0 0
      %1025 = vmatmul.mubr.bf16.gmra.mrb[0].mxu0 %v662
      %v1026 = vpop.f32.mrb[0].mxu0
      %v1027 = vadd.f32 0.0, %v1026
      %v1028 = vpop.f32.mrb[0].mxu0
      %v1029 = vpop.f32.mrb[0].mxu0
      %v1030 = vadd.f32 0.0, %v1029
      %v1031 = vpop.f32.mrb[0].mxu0
      %1032 = vmatprep.mubr.bf16.mxu0 0
      %1033 = vmatmul.mubr.bf16.gmra.mrb[0].mxu0 %v665
      %v1034 = vpop.f32.mrb[0].mxu0
      %v1035 = vadd.f32 0.0, %v1034
      %v1036 = vpop.f32.mrb[0].mxu0
      %v1037 = vpop.f32.mrb[0].mxu0
      %v1038 = vadd.f32 0.0, %v1037
      %v1039 = vpop.f32.mrb[0].mxu0
      %1040 = vmatprep.mubr.bf16.mxu0 0
      %1041 = vmatmul.mubr.bf16.gmra.mrb[0].mxu0 %v668
      %v1042 = vpop.f32.mrb[0].mxu0
      %v1043 = vadd.f32 0.0, %v1042
      %v1044 = vpop.f32.mrb[0].mxu0
      %v1045 = vpop.f32.mrb[0].mxu0
      %v1046 = vadd.f32 0.0, %v1045
      %v1047 = vpop.f32.mrb[0].mxu0
      %1048 = vmatprep.mubr.bf16.mxu0 0
      %1049 = vmatmul.mubr.bf16.gmra.mrb[0].mxu0 %v671
      %v1050 = vpop.f32.mrb[0].mxu0
      %v1051 = vadd.f32 0.0, %v1050
      %v1052 = vpop.f32.mrb[0].mxu0
      %v1053 = vpop.f32.mrb[0].mxu0
      %v1054 = vadd.f32 0.0, %v1053
      %v1055 = vpop.f32.mrb[0].mxu0
      %1056 = vmatprep.mubr.bf16.mxu0 0
      %1057 = vmatmul.mubr.bf16.gmra.mrb[0].mxu0 %v674
      %v1058 = vpop.f32.mrb[0].mxu0
      %v1059 = vadd.f32 0.0, %v1058
      %v1060 = vpop.f32.mrb[0].mxu0
      %v1061 = vpop.f32.mrb[0].mxu0
      %v1062 = vadd.f32 0.0, %v1061
      %v1063 = vpop.f32.mrb[0].mxu0
      %1064 = vmatprep.mubr.bf16.mxu0 0
      %1065 = vmatmul.mubr.bf16.gmra.mrb[0].mxu0 %v677
      %v1066 = vpop.f32.mrb[0].mxu0
      %v1067 = vadd.f32 0.0, %v1066
      %v1068 = vpop.f32.mrb[0].mxu0
      %v1069 = vpop.f32.mrb[0].mxu0
      %v1070 = vadd.f32 0.0, %v1069
      %v1071 = vpop.f32.mrb[0].mxu0
      %1072 = vmatprep.mubr.bf16.mxu0 0
      %1073 = vmatmul.mubr.bf16.gmra.mrb[0].mxu0 %v680
      %v1074 = vpop.f32.mrb[0].mxu0
      %v1075 = vadd.f32 0.0, %v1074
      %v1076 = vpop.f32.mrb[0].mxu0
      %v1077 = vpop.f32.mrb[0].mxu0
      %v1078 = vadd.f32 0.0, %v1077
      %v1079 = vpop.f32.mrb[0].mxu0
      %1080 = vmatprep.mubr.bf16.mxu0 0
      %1081 = vmatmul.mubr.bf16.gmra.mrb[0].mxu0 %v683
      %v1082 = vpop.f32.mrb[0].mxu0
      %v1083 = vadd.f32 0.0, %v1082
      %v1084 = vpop.f32.mrb[0].mxu0
      %v1085 = vpop.f32.mrb[0].mxu0
      %v1086 = vadd.f32 0.0, %v1085
      %v1087 = vpop.f32.mrb[0].mxu0
      %1088 = vmatprep.mubr.bf16.mxu0 0
      %1089 = vmatmul.mubr.bf16.gmra.mrb[0].mxu0 %v686
      %v1090 = vpop.f32.mrb[0].mxu0
      %v1091 = vadd.f32 0.0, %v1090
      %v1092 = vpop.f32.mrb[0].mxu0
      %v1093 = vpop.f32.mrb[0].mxu0
      %v1094 = vadd.f32 0.0, %v1093
      %v1095 = vpop.f32.mrb[0].mxu0
      %1096 = vmatprep.mubr.bf16.mxu0 0
      %1097 = vmatmul.mubr.bf16.gmra.mrb[0].mxu0 %v689
      %v1098 = vpop.f32.mrb[0].mxu0
      %v1099 = vadd.f32 0.0, %v1098
      %v1100 = vpop.f32.mrb[0].mxu0
      %v1101 = vpop.f32.mrb[0].mxu0
      %v1102 = vadd.f32 0.0, %v1101
      %v1103 = vpop.f32.mrb[0].mxu0
      %1104 = vmatprep.mubr.bf16.mxu0 0
      %1105 = vmatmul.mubr.bf16.gmra.mrb[0].mxu0 %v692
      %v1106 = vpop.f32.mrb[0].mxu0
      %v1107 = vadd.f32 0.0, %v1106
      %v1108 = vpop.f32.mrb[0].mxu0
      %v1109 = vpop.f32.mrb[0].mxu0
      %v1110 = vadd.f32 0.0, %v1109
      %v1111 = vpop.f32.mrb[0].mxu0
      %1112 = vmatprep.mubr.bf16.mxu0 0
      %1113 = vmatmul.mubr.bf16.gmra.mrb[0].mxu0 %v695
      %v1114 = vpop.f32.mrb[0].mxu0
      %v1115 = vadd.f32 0.0, %v1114
      %v1116 = vpop.f32.mrb[0].mxu0
      %v1117 = vpop.f32.mrb[0].mxu0
      %v1118 = vadd.f32 0.0, %v1117
      %v1119 = vpop.f32.mrb[0].mxu0
      %1120 = vmatprep.mubr.bf16.mxu0 0
      %1121 = vmatmul.mubr.bf16.gmra.mrb[0].mxu0 %v698
      %v1122 = vpop.f32.mrb[0].mxu0
      %v1123 = vadd.f32 0.0, %v1122
      %v1124 = vpop.f32.mrb[0].mxu0
      %v1125 = vpop.f32.mrb[0].mxu0
      %v1126 = vadd.f32 0.0, %v1125
      %v1127 = vpop.f32.mrb[0].mxu0
      %1128 = vmatprep.mubr.bf16.mxu0 0
      %1129 = vmatmul.mubr.bf16.gmra.mrb[0].mxu0 %v701
      %v1130 = vpop.f32.mrb[0].mxu0
      %v1131 = vadd.f32 0.0, %v1130
      %v1132 = vpop.f32.mrb[0].mxu0
      %v1133 = vpop.f32.mrb[0].mxu0
      %v1134 = vadd.f32 0.0, %v1133
      %v1135 = vpop.f32.mrb[0].mxu0
      %1136 = vmatprep.mubr.bf16.mxu0 0
      %1137 = vmatmul.mubr.bf16.gmra.mrb[0].mxu0 %v704
      %v1138 = vpop.f32.mrb[0].mxu0
      %v1139 = vadd.f32 0.0, %v1138
      %v1140 = vpop.f32.mrb[0].mxu0
      %v1141 = vpop.f32.mrb[0].mxu0
      %v1142 = vadd.f32 0.0, %v1141
      %v1143 = vpop.f32.mrb[0].mxu0
      %1144 = vmatprep.mubr.bf16.mxu0 0
      %1145 = vmatmul.mubr.bf16.gmra.mrb[0].mxu0 %v707
      %v1146 = vpop.f32.mrb[0].mxu0
      %v1147 = vadd.f32 0.0, %v1146
      %v1148 = vpop.f32.mrb[0].mxu0
      %v1149 = vpop.f32.mrb[0].mxu0
      %v1150 = vadd.f32 0.0, %v1149
      %v1151 = vpop.f32.mrb[0].mxu0
      %1152 = vmatprep.mubr.bf16.mxu0 0
      %1153 = vmatmul.mubr.bf16.gmra.mrb[0].mxu0 %v710
      %v1154 = vpop.f32.mrb[0].mxu0
      %v1155 = vadd.f32 0.0, %v1154
      %v1156 = vpop.f32.mrb[0].mxu0
      %v1157 = vpop.f32.mrb[0].mxu0
      %v1158 = vadd.f32 0.0, %v1157
      %v1159 = vpop.f32.mrb[0].mxu0
      %1160 = vdwg.mxu0
      %v1161 = vmax.f32 %v747, %v851
      %v1162 = vmax.f32 %v750, %v854
      %v1163 = vmax.f32 %v755, %v859
      %v1164 = vmax.f32 %v758, %v862
      %v1165 = vmax.f32 %v763, %v867
      %v1166 = vmax.f32 %v766, %v870
      %v1167 = vmax.f32 %v771, %v875
      %v1168 = vmax.f32 %v774, %v878
      %v1169 = vmax.f32 %v779, %v883
      %v1170 = vmax.f32 %v782, %v886
      %v1171 = vmax.f32 %v787, %v891
      %v1172 = vmax.f32 %v790, %v894
      %v1173 = vmax.f32 %v795, %v899
      %v1174 = vmax.f32 %v798, %v902
      %v1175 = vmax.f32 %v803, %v907
      %v1176 = vmax.f32 %v806, %v910
      %v1177 = vmax.f32 %v811, %v915
      %v1178 = vmax.f32 %v814, %v918
      %v1179 = vmax.f32 %v819, %v923
      %v1180 = vmax.f32 %v822, %v926
      %v1181 = vmax.f32 %v827, %v931
      %v1182 = vmax.f32 %v830, %v934
      %v1183 = vmax.f32 %v835, %v939
      %v1184 = vmax.f32 %v838, %v942
      %v1185 = vmax.f32 %v843, %v947
      %v1186 = vmax.f32 %v846, %v950
      %v1187 = vmax.f32 %v955, %v1059
      %v1188 = vmax.f32 %v958, %v1062
      %v1189 = vmax.f32 %v963, %v1067
      %v1190 = vmax.f32 %v966, %v1070
      %v1191 = vmax.f32 %v971, %v1075
      %v1192 = vmax.f32 %v974, %v1078
      %v1193 = vmax.f32 %v979, %v1083
      %v1194 = vmax.f32 %v982, %v1086
      %v1195 = vmax.f32 %v987, %v1091
      %v1196 = vmax.f32 %v990, %v1094
      %v1197 = vmax.f32 %v995, %v1099
      %v1198 = vmax.f32 %v998, %v1102
      %v1199 = vmax.f32 %v1003, %v1107
      %v1200 = vmax.f32 %v1006, %v1110
      %v1201 = vmax.f32 %v1011, %v1115
      %v1202 = vmax.f32 %v1014, %v1118
      %v1203 = vmax.f32 %v1019, %v1123
      %v1204 = vmax.f32 %v1022, %v1126
      %v1205 = vmax.f32 %v1027, %v1131
      %v1206 = vmax.f32 %v1030, %v1134
      %v1207 = vmax.f32 %v1035, %v1139
      %v1208 = vmax.f32 %v1038, %v1142
      %v1209 = vmax.f32 %v1043, %v1147
      %v1210 = vmax.f32 %v1046, %v1150
      %v1211 = vmax.f32 %v1051, %v1155
      %v1212 = vmax.f32 %v1054, %v1158
      %v1213 = vmax.f32 %v1161, %v1187
      %v1214 = vmax.f32 %v1162, %v1188
      %v1215 = vmax.f32 %v1163, %v1189
      %v1216 = vmax.f32 %v1164, %v1190
      %v1217 = vmax.f32 %v1165, %v1191
      %v1218 = vmax.f32 %v1166, %v1192
      %v1219 = vmax.f32 %v1167, %v1193
      %v1220 = vmax.f32 %v1168, %v1194
      %v1221 = vmax.f32 %v1169, %v1195
      %v1222 = vmax.f32 %v1170, %v1196
      %v1223 = vmax.f32 %v1171, %v1197
      %v1224 = vmax.f32 %v1172, %v1198
      %v1225 = vmax.f32 %v1173, %v1199
      %v1226 = vmax.f32 %v1174, %v1200
      %v1227 = vmax.f32 %v1175, %v1201
      %v1228 = vmax.f32 %v1176, %v1202
      %v1229 = vmax.f32 %v1177, %v1203
      %v1230 = vmax.f32 %v1178, %v1204
      %v1231 = vmax.f32 %v1179, %v1205
      %v1232 = vmax.f32 %v1180, %v1206
      %v1233 = vmax.f32 %v1181, %v1207
      %v1234 = vmax.f32 %v1182, %v1208
      %v1235 = vmax.f32 %v1183, %v1209
      %v1236 = vmax.f32 %v1184, %v1210
      %v1237 = vmax.f32 %v1185, %v1211
      %v1238 = vmax.f32 %v1186, %v1212
      %v1239 = vld [vmem:[%s2] sm:$0x1]
      %v1241 = vlaneseq
      %v1242 = vshrl.u32 %v1241, 7
      %v1243 = vsub.s32 0, %v1242
      %v1244 = vrot.slane %v1239, %v1243
      %v1246 = vadd.f32 %v1213, %v1244
      %v1247 = vadd.f32 %v1214, %v1244
      %v1248 = vadd.f32 %v1215, %v1244
      %v1249 = vadd.f32 %v1216, %v1244
      %v1250 = vadd.f32 %v1217, %v1244
      %v1251 = vadd.f32 %v1218, %v1244
      %v1252 = vadd.f32 %v1219, %v1244
      %v1253 = vadd.f32 %v1220, %v1244
      %v1254 = vadd.f32 %v1221, %v1244
      %v1255 = vadd.f32 %v1222, %v1244
      %v1256 = vadd.f32 %v1223, %v1244
      %v1257 = vadd.f32 %v1224, %v1244
      %v1258 = vadd.f32 %v1225, %v1244
      %v1259 = vadd.f32 %v1226, %v1244
      %v1260 = vadd.f32 %v1227, %v1244
      %v1261 = vadd.f32 %v1228, %v1244
      %v1262 = vadd.f32 %v1229, %v1244
      %v1263 = vadd.f32 %v1230, %v1244
      %v1264 = vadd.f32 %v1231, %v1244
      %v1265 = vadd.f32 %v1232, %v1244
      %v1266 = vadd.f32 %v1233, %v1244
      %v1267 = vadd.f32 %v1234, %v1244
      %v1268 = vadd.f32 %v1235, %v1244
      %v1269 = vadd.f32 %v1236, %v1244
      %v1270 = vadd.f32 %v1237, %v1244
      %v1271 = vadd.f32 %v1238, %v1244
      %v1272 = vmax.f32 %v1246, 0.0
      %v1273 = vmax.f32 %v1247, 0.0
      %v1274 = vmax.f32 %v1248, 0.0
      %v1275 = vmax.f32 %v1249, 0.0
      %v1276 = vmax.f32 %v1250, 0.0
      %v1277 = vmax.f32 %v1251, 0.0
      %v1278 = vmax.f32 %v1252, 0.0
      %v1279 = vmax.f32 %v1253, 0.0
      %v1280 = vmax.f32 %v1254, 0.0
      %v1281 = vmax.f32 %v1255, 0.0
      %v1282 = vmax.f32 %v1256, 0.0
      %v1283 = vmax.f32 %v1257, 0.0
      %v1284 = vmax.f32 %v1258, 0.0
      %v1285 = vmax.f32 %v1259, 0.0
      %v1286 = vmax.f32 %v1260, 0.0
      %v1287 = vmax.f32 %v1261, 0.0
      %v1288 = vmax.f32 %v1262, 0.0
      %v1289 = vmax.f32 %v1263, 0.0
      %v1290 = vmax.f32 %v1264, 0.0
      %v1291 = vmax.f32 %v1265, 0.0
      %v1292 = vmax.f32 %v1266, 0.0
      %v1293 = vmax.f32 %v1267, 0.0
      %v1294 = vmax.f32 %v1268, 0.0
      %v1295 = vmax.f32 %v1269, 0.0
      %v1296 = vmax.f32 %v1270, 0.0
      %v1297 = vmax.f32 %v1271, 0.0
      %v1298 = vpack.c.bf16 %v1273, %v1272
      %v1299 = vpack.c.bf16 %v1275, %v1274
      %v1300 = vpack.c.bf16 %v1277, %v1276
      %v1301 = vpack.c.bf16 %v1279, %v1278
      %v1302 = vpack.c.bf16 %v1281, %v1280
      %v1303 = vpack.c.bf16 %v1283, %v1282
      %v1304 = vpack.c.bf16 %v1285, %v1284
      %v1305 = vpack.c.bf16 %v1287, %v1286
      %v1306 = vpack.c.bf16 %v1289, %v1288
      %v1307 = vpack.c.bf16 %v1291, %v1290
      %v1308 = vpack.c.bf16 %v1293, %v1292
      %v1309 = vpack.c.bf16 %v1295, %v1294
      %v1310 = vpack.c.bf16 %v1297, %v1296
      %v1324 = vunpack.c.l.b16 %v1298
      %v1325 = vunpack.c.h.b16 %v1298
      %v1326 = vunpack.c.l.b16 %v1299
      %v1327 = vunpack.c.h.b16 %v1299
      %v1328 = vunpack.c.l.b16 %v1300
      %v1329 = vunpack.c.h.b16 %v1300
      %v1330 = vunpack.c.l.b16 %v1301
      %v1331 = vunpack.c.h.b16 %v1301
      %v1332 = vunpack.c.l.b16 %v1302
      %v1333 = vunpack.c.h.b16 %v1302
      %v1334 = vunpack.c.l.b16 %v1303
      %v1335 = vunpack.c.h.b16 %v1303
      %v1336 = vunpack.c.l.b16 %v1304
      %v1337 = vunpack.c.h.b16 %v1304
      %v1338 = vunpack.c.l.b16 %v1305
      %v1339 = vunpack.c.h.b16 %v1305
      %v1340 = vunpack.c.l.b16 %v1306
      %v1341 = vunpack.c.h.b16 %v1306
      %v1342 = vunpack.c.l.b16 %v1307
      %v1343 = vunpack.c.h.b16 %v1307
      %v1344 = vunpack.c.l.b16 %v1308
      %v1345 = vunpack.c.h.b16 %v1308
      %v1346 = vunpack.c.l.b16 %v1309
      %v1347 = vunpack.c.h.b16 %v1309
      %v1348 = vunpack.c.l.b16 %v1310
      %v1349 = vunpack.c.h.b16 %v1310
      %v1350 = vpack.c.b16 %v1324, %v1324
      %v1351 = vpack.c.b16 %v1325, %v1325
      %v1352 = vpack.c.b16 %v1326, %v1326
      %v1353 = vpack.c.b16 %v1327, %v1327
      %v1354 = vpack.c.b16 %v1328, %v1328
      %v1355 = vpack.c.b16 %v1329, %v1329
      %v1356 = vpack.c.b16 %v1330, %v1330
      %v1357 = vpack.c.b16 %v1331, %v1331
      %v1358 = vpack.c.b16 %v1332, %v1332
      %v1359 = vpack.c.b16 %v1333, %v1333
      %v1360 = vpack.c.b16 %v1334, %v1334
      %v1361 = vpack.c.b16 %v1335, %v1335
      %v1362 = vpack.c.b16 %v1336, %v1336
      %v1363 = vpack.c.b16 %v1337, %v1337
      %v1364 = vpack.c.b16 %v1338, %v1338
      %v1365 = vpack.c.b16 %v1339, %v1339
      %v1366 = vpack.c.b16 %v1340, %v1340
      %v1367 = vpack.c.b16 %v1341, %v1341
      %v1368 = vpack.c.b16 %v1342, %v1342
      %v1369 = vpack.c.b16 %v1343, %v1343
      %v1370 = vpack.c.b16 %v1344, %v1344
      %v1371 = vpack.c.b16 %v1345, %v1345
      %v1372 = vpack.c.b16 %v1346, %v1346
      %v1373 = vpack.c.b16 %v1347, %v1347
      %v1374 = vpack.c.b16 %v1348, %v1348
      %v1375 = vpack.c.b16 %v1349, %v1349
      %1402 = vst [vmem:[%s172] sm:$0xf] %v1350
      %1403 = vst [vmem:[%s172 + $0x4] sm:$0xf] %v1351
      %1404 = vst [vmem:[%s172 + $0x8] sm:$0xf] %v1352
      %1405 = vst [vmem:[%s172 + $0xc] sm:$0xf] %v1353
      %1406 = vst [vmem:[%s172 + $0x10] sm:$0xf] %v1354
      %1407 = vst [vmem:[%s172 + $0x14] sm:$0xf] %v1355
      %1408 = vst [vmem:[%s172 + $0x18] sm:$0xf] %v1356
      %1409 = vst [vmem:[%s172 + $0x1c] sm:$0xf] %v1357
      %1410 = vst [vmem:[%s172 + $0x20] sm:$0xf] %v1358
      %1411 = vst [vmem:[%s172 + $0x24] sm:$0xf] %v1359
      %1412 = vst [vmem:[%s172 + $0x28] sm:$0xf] %v1360
      %1413 = vst [vmem:[%s172 + $0x2c] sm:$0xf] %v1361
      %1414 = vst [vmem:[%s172 + $0x30] sm:$0xf] %v1362
      %1415 = vst [vmem:[%s172 + $0x34] sm:$0xf] %v1363
      %1416 = vst [vmem:[%s172 + $0x38] sm:$0xf] %v1364
      %1417 = vst [vmem:[%s172 + $0x3c] sm:$0xf] %v1365
      %1418 = vst [vmem:[%s172 + $0x40] sm:$0xf] %v1366
      %1419 = vst [vmem:[%s172 + $0x44] sm:$0xf] %v1367
      %1420 = vst [vmem:[%s172 + $0x48] sm:$0xf] %v1368
      %1421 = vst [vmem:[%s172 + $0x4c] sm:$0xf] %v1369
      %1422 = vst [vmem:[%s172 + $0x50] sm:$0xf] %v1370
      %1423 = vst [vmem:[%s172 + $0x54] sm:$0xf] %v1371
      %1424 = vst [vmem:[%s172 + $0x58] sm:$0xf] %v1372
      %1425 = vst [vmem:[%s172 + $0x5c] sm:$0xf] %v1373
      %1426 = vst [vmem:[%s172 + $0x60] sm:$0xf] %v1374
      %1427 = vst [vmem:[%s172 + $0x64] sm:$0xf] %v1375
      %s1428 = smul.u32 26, %s14
      %p1429 = scmp.lt.s32.totalorder %s1428, 51
      %s1430 = scalar_select %p1429, %s1428, 51
      %s1431 = smul.addr %s1430, 4
      %s1432 = scalar_lea.vmem %s3, %s1431
      // Predicated region
      $region33: #{convnet_forward.3} parent=31 // pred_check
        %p1433 = pneg %p100
      $region34: #{convnet_forward.3} parent=31 // pred_check_branch
        %1435 = sbr.rel (%p1433) target = $region36
      $region35: #{convnet_forward.3} parent=31 // pred_region
        %s1436 = smul.u32 26, %s14
      $region36: #{convnet_forward.3} parent=31 // pred_fallthru
        _
    $region32: #{convnet_forward.3} parent=5 // pred_fallthru
      _
    %p1437 = scmp.le.s32.totalorder 2, %s9
    // Predicated region
    $region37: #{convnet_forward.3} parent=5 // pred_check
      %p1438 = pneg %p1437
    $region38: #{convnet_forward.3} parent=5 // pred_check_branch
      %1440 = sbr.rel (%p1438) target = $region40
    $region39: #{convnet_forward.3} parent=5 // pred_region
      %s1441 = ssub.s32 %s9, 2
      // Predicated region
      $region41: #{convnet_forward.3} parent=39 // pred_check
        %p1442 = pneg %p106
      $region42: #{convnet_forward.3} parent=39 // pred_check_branch
        %1444 = sbr.rel (%p1442) target = $region44
      $region43: #{convnet_forward.3} parent=39 // pred_region
        %s1445 = smul.u32 26, %s15
        %p1446 = scmp.lt.s32.totalorder %s1445, 51
        %s1447 = scalar_select %p1446, %s1445, 51
        %s1448 = smul.addr %s1447, 4
        %s1449 = scalar_lea.vmem %s3, %s1448
      $region44: #{convnet_forward.3} parent=39 // pred_fallthru
        _
    $region40: #{convnet_forward.3} parent=5 // pred_fallthru
      _
  $region6: #{convnet_forward.3} parent=0 // loop_footer
    %s13 = sadd.s32 1, %s9
  $region7: #{convnet_forward.3} parent=0 // loop_footer_branch
    %8 = sbr.rel target = $region3
  $region8: #{convnet_forward.3} parent=0 // loop_exit
    _

// kernel: convnet_forward.4
$region0: #{convnet_forward.4}
  #allocation0 [shape = 'u32[]', space=smem, size = 0x4, offset = 0x4, fixed_abs, tag = 'smem constant byte address 0x4 - core index']
  #allocation1 [shape = 'u32[144,128]{1,0:T(1,128)}', space=vmem, size = 0x12000, scoped, tag = 'internal scratch']
  %s0 = inlined_call_operand.vmem [shape: bf16[512,400], index: 0, kind: input, shape index: {}]
  %s1 = inlined_call_operand.vmem [shape: bf16[400,128], index: 1, kind: input, shape index: {}]
  %s2 = inlined_call_operand.vmem [shape: f32[1,128], index: 2, kind: input, shape index: {}]
  %s3 = inlined_call_operand.vmem [shape: bf16[128,128], index: 3, kind: output, shape index: {}]
  %s4 = sld [smem:[#allocation0]]
  $region45: #{convnet_forward.4} parent=0
    _
  %s6 = ssub.s32 1, %s4
  %s7 = scalar_select 0, %s6, %s4
  loop: start=0, step=1, limit=4
  $region2: #{convnet_forward.4} parent=0 // loop_pre_header
    _
  $region3: #{convnet_forward.4} parent=0 // loop_header
    %s9 = sphi 0, %s13
    %p10 = scmp.ge.s32.totalorder %s9, 4
    %s19 = sphi 0, %s21
    %s22 = sphi 0, %s19
    %s23 = sphi 0, %s22
    %s39 = sphi 0, %s23
    %s43 = sphi 0, %s43
    %s45 = sphi 0, %s43
    %s46 = sphi 0, %s45
    %s60 = sphi 0, %s46
    %s64 = sphi 0, %s64
    %s66 = sphi 0, %s64
    %s67 = sphi 0, %s66
    %s81 = sphi 0, %s67
    %s87 = sphi 0, %s89
    %s90 = sphi 0, %s87
    %s91 = sphi 0, %s90
    %s107 = sphi 0, %s91
  $region4: #{convnet_forward.4} parent=0 // loop_header_branch
    %12 = sbr.rel (%p10) target = $region8
  $region5: #{convnet_forward.4} parent=0 // loop_body
    %s14 = ssub.s32 %s9, 1
    %s15 = ssub.s32 %s9, 2
    %s16 = sadd.s32 %s9, 1
    %s17 = ssub.s32 %s9, %s16
    %p18 = scmp.eq.s32.totalorder %s17, 0
    %s20 = sadd.s32 %s19, 1
    %s21 = scalar_select %p18, %s19, %s20
    %p24 = pneg %p18
    %p25 = scmp.eq.s32.totalorder %s9, 1
    %p26 = por %p24, %p25
    %p27 = scmp.ne.s32.totalorder %s19, %s22
    %p28 = scmp.eq.s32.totalorder %s9, 0
    %p29 = por %p27, %p28
    %p30 = scmp.ne.s32.totalorder %s19, %s22
    %p31 = scmp.eq.s32.totalorder %s14, 1
    %p32 = por %p30, %p31
    %p33 = scmp.ne.s32.totalorder %s22, %s23
    %p34 = scmp.eq.s32.totalorder %s14, 0
    %p35 = por %p33, %p34
    %p36 = scmp.ne.s32.totalorder %s22, %s23
    %p37 = scmp.eq.s32.totalorder %s15, 1
    %p38 = por %p36, %p37
    %p40 = scmp.ne.s32.totalorder %s23, %s39
    %p41 = scmp.eq.s32.totalorder %s15, 0
    %p42 = por %p40, %p41
    %s44 = sadd.s32 %s43, 1
    %p47 = scmp.eq.s32.totalorder %s9, 1
    %p48 = scmp.ne.s32.totalorder %s43, %s45
    %p49 = scmp.eq.s32.totalorder %s9, 0
    %p50 = por %p48, %p49
    %p51 = scmp.ne.s32.totalorder %s43, %s45
    %p52 = scmp.eq.s32.totalorder %s14, 1
    %p53 = por %p51, %p52
    %p54 = scmp.ne.s32.totalorder %s45, %s46
    %p55 = scmp.eq.s32.totalorder %s14, 0
    %p56 = por %p54, %p55
    %p57 = scmp.ne.s32.totalorder %s45, %s46
    %p58 = scmp.eq.s32.totalorder %s15, 1
    %p59 = por %p57, %p58
    %p61 = scmp.ne.s32.totalorder %s46, %s60
    %p62 = scmp.eq.s32.totalorder %s15, 0
    %p63 = por %p61, %p62
    %s65 = sadd.s32 %s64, 1
    %p68 = scmp.eq.s32.totalorder %s9, 1
    %p69 = scmp.ne.s32.totalorder %s64, %s66
    %p70 = scmp.eq.s32.totalorder %s9, 0
    %p71 = por %p69, %p70
    %p72 = scmp.ne.s32.totalorder %s64, %s66
    %p73 = scmp.eq.s32.totalorder %s14, 1
    %p74 = por %p72, %p73
    %p75 = scmp.ne.s32.totalorder %s66, %s67
    %p76 = scmp.eq.s32.totalorder %s14, 0
    %p77 = por %p75, %p76
    %p78 = scmp.ne.s32.totalorder %s66, %s67
    %p79 = scmp.eq.s32.totalorder %s15, 1
    %p80 = por %p78, %p79
    %p82 = scmp.ne.s32.totalorder %s67, %s81
    %p83 = scmp.eq.s32.totalorder %s15, 0
    %p84 = por %p82, %p83
    %s85 = ssub.s32 %s9, %s16
    %p86 = scmp.eq.s32.totalorder %s85, 0
    %s88 = sadd.s32 %s87, 1
    %s89 = scalar_select %p86, %s87, %s88
    %p92 = pneg %p86
    %p93 = scmp.eq.s32.totalorder %s9, 1
    %p94 = por %p92, %p93
    %p95 = scmp.ne.s32.totalorder %s87, %s90
    %p96 = scmp.eq.s32.totalorder %s9, 0
    %p97 = por %p95, %p96
    %p98 = scmp.ne.s32.totalorder %s87, %s90
    %p99 = scmp.eq.s32.totalorder %s14, 1
    %p100 = por %p98, %p99
    %p101 = scmp.ne.s32.totalorder %s90, %s91
    %p102 = scmp.eq.s32.totalorder %s14, 0
    %p103 = por %p101, %p102
    %p104 = scmp.ne.s32.totalorder %s90, %s91
    %p105 = scmp.eq.s32.totalorder %s15, 1
    %p106 = por %p104, %p105
    %p108 = scmp.ne.s32.totalorder %s91, %s107
    %p109 = scmp.eq.s32.totalorder %s15, 0
    %p110 = por %p108, %p109
    %p111 = scmp.le.s32.totalorder 1, %s9
    %p112 = scmp.lt.s32.totalorder %s9, 3
    %p113 = pnand %p111, %p112
    %p114 = pneg %p113
    // Predicated region
    $region9: #{convnet_forward.4} parent=5 // pred_check
      _
    $region10: #{convnet_forward.4} parent=5 // pred_check_branch
      %116 = sbr.rel (%p113) target = $region12
    $region11: #{convnet_forward.4} parent=5 // pred_region
      %s117 = ssub.s32 %s9, 1
      // Predicated region
      $region13: #{convnet_forward.4} parent=11 // pred_check
        %p118 = pneg %p56
      $region14: #{convnet_forward.4} parent=11 // pred_check_branch
        %120 = sbr.rel (%p118) target = $region16
      $region15: #{convnet_forward.4} parent=11 // pred_region
        _
      $region16: #{convnet_forward.4} parent=11 // pred_fallthru
        _
      // Predicated region
      $region17: #{convnet_forward.4} parent=11 // pred_check
        %p121 = pneg %p77
      $region18: #{convnet_forward.4} parent=11 // pred_check_branch
        %123 = sbr.rel (%p121) target = $region20
      $region19: #{convnet_forward.4} parent=11 // pred_region
        _
      $region20: #{convnet_forward.4} parent=11 // pred_fallthru
        _
    $region12: #{convnet_forward.4} parent=5 // pred_fallthru
      _
    %p124 = scmp.lt.s32.totalorder %s9, 2
    // Predicated region
    $region21: #{convnet_forward.4} parent=5 // pred_check
      %p125 = pneg %p124
    $region22: #{convnet_forward.4} parent=5 // pred_check_branch
      %127 = sbr.rel (%p125) target = $region24
    $region23: #{convnet_forward.4} parent=5 // pred_region
      // Predicated region
      $region25: #{convnet_forward.4} parent=23 // pred_check
        %p128 = pneg %p29
      $region26: #{convnet_forward.4} parent=23 // pred_check_branch
        %130 = sbr.rel (%p128) target = $region28
      $region27: #{convnet_forward.4} parent=23 // pred_region
        %s131 = smul.u32 32, %s9
        %p132 = scmp.lt.s32.totalorder %s131, 63
        %s133 = scalar_select %p132, %s131, 63
        %s134 = smul.addr %s133, 4
        %s135 = smul.addr %s134, 4
        %s136 = scalar_lea.vmem %s0, %s135
        %s137 = smul.u32 32, %s9
      $region28: #{convnet_forward.4} parent=23 // pred_fallthru
        _
    $region24: #{convnet_forward.4} parent=5 // pred_fallthru
      _
    %p138 = scmp.le.s32.totalorder 1, %s9
    %p139 = scmp.lt.s32.totalorder %s9, 3
    %p140 = pnand %p138, %p139
    %p141 = pneg %p140
    // Predicated region
    $region29: #{convnet_forward.4} parent=5 // pred_check
      _
    $region30: #{convnet_forward.4} parent=5 // pred_check_branch
      %143 = sbr.rel (%p140) target = $region32
    $region31: #{convnet_forward.4} parent=5 // pred_region
      %s144 = ssub.s32 %s9, 1
      %s145 = smul.u32 32, %s14
      %p146 = scmp.lt.s32.totalorder %s145, 63
      %s147 = scalar_select %p146, %s145, 63
      %s148 = smul.addr %s147, 4
      %s149 = smul.addr %s148, 4
      %s150 = scalar_lea.vmem %s0, %s149
      %p151 = pneg %p35
      %p152 = pneg %p32
      %p153 = pneg %p56
      %p154 = pneg %p53
      %p155 = pneg %p77
      %p156 = pneg %p74
      %p157 = pneg %p103
      %p158 = pneg %p100
      %s159 = smul.u32 8, %s14
      %p160 = scmp.lt.s32.totalorder %s159, 15
      %s161 = scalar_select %p160, %s159, 15
      %s162 = smul.addr %s161, 4
      %s163 = scalar_lea.vmem %s3, %s162
      %s164 = smul.u32 32, %s14
      %p165 = scmp.lt.s32.totalorder %s164, 63
      %s166 = scalar_select %p165, %s164, 63
      %s167 = smul.addr %s166, 4
      %s168 = smul.addr %s167, 4
      %s169 = scalar_lea.vmem %s0, %s168
      %s170 = smul.u32 32, %s14
      %s171 = smul.u32 8, %s14
      %p172 = scmp.lt.s32.totalorder %s171, 15
      %s173 = scalar_select %p172, %s171, 15
      %s174 = smul.addr %s173, 4
      %s175 = scalar_lea.vmem %s3, %s174
      %s176 = smul.u32 8, %s14
      %v178 = vld [vmem:[%s169] sm:$0xff]
      %v179 = vld [vmem:[%s169 + $0x8] sm:$0xff]
      %v180 = vld [vmem:[%s169 + $0x10] sm:$0xff]
      %v181 = vld [vmem:[%s169 + $0x18] sm:$0xff]
      %v182 = vld [vmem:[%s169 + $0x20] sm:$0xff]
      %v183 = vld [vmem:[%s169 + $0x28] sm:$0xff]
      %v184 = vld [vmem:[%s169 + $0x30] sm:$0xff]
      %v185 = vld [vmem:[%s169 + $0x38] sm:$0xff]
      %v186 = vld [vmem:[%s169 + $0x40] sm:$0xff]
      %v187 = vld [vmem:[%s169 + $0x48] sm:$0xff]
      %v188 = vld [vmem:[%s169 + $0x50] sm:$0xff]
      %v189 = vld [vmem:[%s169 + $0x58] sm:$0xff]
      %v190 = vld [vmem:[%s169 + $0x60] sm:$0xff]
      %v191 = vld [vmem:[%s169 + $0x68] sm:$0xff]
      %v192 = vld [vmem:[%s169 + $0x70] sm:$0xff]
      %v193 = vld [vmem:[%s169 + $0x78] sm:$0xff]
      %v194 = vld [vmem:[%s169 + $0x80] sm:$0xff]
      %v195 = vld [vmem:[%s169 + $0x88] sm:$0xff]
      %v196 = vld [vmem:[%s169 + $0x90] sm:$0xff]
      %v197 = vld [vmem:[%s169 + $0x98] sm:$0xff]
      %v198 = vld [vmem:[%s169 + $0xa0] sm:$0xff]
      %v199 = vld [vmem:[%s169 + $0xa8] sm:$0xff]
      %v200 = vld [vmem:[%s169 + $0xb0] sm:$0xff]
      %v201 = vld [vmem:[%s169 + $0xb8] sm:$0xff]
      %v202 = vld [vmem:[%s169 + $0xc0] sm:$0xff]
      %v203 = vld [vmem:[%s169 + $0xc8] sm:$0xff]
      %v204 = vld [vmem:[%s169 + $0xd0] sm:$0xff]
      %v205 = vld [vmem:[%s169 + $0xd8] sm:$0xff]
      %v206 = vld [vmem:[%s169 + $0xe0] sm:$0xff]
      %v207 = vld [vmem:[%s169 + $0xe8] sm:$0xff]
      %v208 = vld [vmem:[%s169 + $0xf0] sm:$0xff]
      %v209 = vld [vmem:[%s169 + $0xf8] sm:$0xff]
      %v210 = vld [vmem:[%s169 + $0x100] sm:$0xff]
      %v211 = vld [vmem:[%s169 + $0x108] sm:$0xff]
      %v212 = vld [vmem:[%s169 + $0x110] sm:$0xff]
      %v213 = vld [vmem:[%s169 + $0x118] sm:$0xff]
      %v214 = vld [vmem:[%s169 + $0x120] sm:$0xff]
      %v215 = vld [vmem:[%s169 + $0x128] sm:$0xff]
      %v216 = vld [vmem:[%s169 + $0x130] sm:$0xff]
      %v217 = vld [vmem:[%s169 + $0x138] sm:$0xff]
      %v218 = vld [vmem:[%s169 + $0x140] sm:$0xff]
      %v219 = vld [vmem:[%s169 + $0x148] sm:$0xff]
      %v220 = vld [vmem:[%s169 + $0x150] sm:$0xff]
      %v221 = vld [vmem:[%s169 + $0x158] sm:$0xff]
      %v222 = vld [vmem:[%s169 + $0x160] sm:$0xff]
      %v223 = vld [vmem:[%s169 + $0x168] sm:$0xff]
      %v224 = vld [vmem:[%s169 + $0x170] sm:$0xff]
      %v225 = vld [vmem:[%s169 + $0x178] sm:$0xff]
      %v226 = vld [vmem:[%s169 + $0x180] sm:$0xff]
      %v227 = vld [vmem:[%s169 + $0x188] sm:$0xff]
      %v228 = vld [vmem:[%s169 + $0x190] sm:$0xff]
      %v229 = vld [vmem:[%s169 + $0x198] sm:$0xff]
      %v230 = vld [vmem:[%s169 + $0x1a0] sm:$0xff]
      %v231 = vld [vmem:[%s169 + $0x1a8] sm:$0xff]
      %v232 = vld [vmem:[%s169 + $0x1b0] sm:$0xff]
      %v233 = vld [vmem:[%s169 + $0x1b8] sm:$0xff]
      %v234 = vld [vmem:[%s169 + $0x1c0] sm:$0xff]
      %v235 = vld [vmem:[%s169 + $0x1c8] sm:$0xff]
      %v236 = vld [vmem:[%s169 + $0x1d0] sm:$0xff]
      %v237 = vld [vmem:[%s169 + $0x1d8] sm:$0xff]
      %v238 = vld [vmem:[%s169 + $0x1e0] sm:$0xff]
      %v239 = vld [vmem:[%s169 + $0x1e8] sm:$0xff]
      %v240 = vld [vmem:[%s169 + $0x1f0] sm:$0xff]
      %v241 = vld [vmem:[%s169 + $0x1f8] sm:$0xff]
      %v242 = vld [vmem:[%s1] sm:$0xf]
      %v243 = vld [vmem:[%s1 + $0x4] sm:$0xf]
      %v244 = vld [vmem:[%s1 + $0x8] sm:$0xf]
      %v245 = vld [vmem:[%s1 + $0xc] sm:$0xf]
      %v246 = vld [vmem:[%s1 + $0x10] sm:$0xf]
      %v247 = vld [vmem:[%s1 + $0x14] sm:$0xf]
      %v248 = vld [vmem:[%s1 + $0x18] sm:$0xf]
      %v249 = vld [vmem:[%s1 + $0x1c] sm:$0xf]
      %v250 = vld [vmem:[%s1 + $0x20] sm:$0xf]
      %v251 = vld [vmem:[%s1 + $0x24] sm:$0xf]
      %v252 = vld [vmem:[%s1 + $0x28] sm:$0xf]
      %v253 = vld [vmem:[%s1 + $0x2c] sm:$0xf]
      %v254 = vld [vmem:[%s1 + $0x30] sm:$0xf]
      %v255 = vld [vmem:[%s1 + $0x34] sm:$0xf]
      %v256 = vld [vmem:[%s1 + $0x38] sm:$0xf]
      %v257 = vld [vmem:[%s1 + $0x3c] sm:$0xf]
      %v258 = vld [vmem:[%s1 + $0x40] sm:$0xf]
      %v259 = vld [vmem:[%s1 + $0x44] sm:$0xf]
      %v260 = vld [vmem:[%s1 + $0x48] sm:$0xf]
      %v261 = vld [vmem:[%s1 + $0x4c] sm:$0xf]
      %v262 = vld [vmem:[%s1 + $0x50] sm:$0xf]
      %v263 = vld [vmem:[%s1 + $0x54] sm:$0xf]
      %v264 = vld [vmem:[%s1 + $0x58] sm:$0xf]
      %v265 = vld [vmem:[%s1 + $0x5c] sm:$0xf]
      %v266 = vld [vmem:[%s1 + $0x60] sm:$0xf]
      %v267 = vld [vmem:[%s1 + $0x64] sm:$0xf]
      %v268 = vld [vmem:[%s1 + $0x68] sm:$0xf]
      %v269 = vld [vmem:[%s1 + $0x6c] sm:$0xf]
      %v270 = vld [vmem:[%s1 + $0x70] sm:$0xf]
      %v271 = vld [vmem:[%s1 + $0x74] sm:$0xf]
      %v272 = vld [vmem:[%s1 + $0x78] sm:$0xf]
      %v273 = vld [vmem:[%s1 + $0x7c] sm:$0xf]
      %v274 = vld [vmem:[%s1 + $0x80] sm:$0xf]
      %v275 = vld [vmem:[%s1 + $0x84] sm:$0xf]
      %v276 = vld [vmem:[%s1 + $0x88] sm:$0xf]
      %v277 = vld [vmem:[%s1 + $0x8c] sm:$0xf]
      %v278 = vld [vmem:[%s1 + $0x90] sm:$0xf]
      %v279 = vld [vmem:[%s1 + $0x94] sm:$0xf]
      %v280 = vld [vmem:[%s1 + $0x98] sm:$0xf]
      %v281 = vld [vmem:[%s1 + $0x9c] sm:$0xf]
      %v282 = vld [vmem:[%s1 + $0xa0] sm:$0xf]
      %v283 = vld [vmem:[%s1 + $0xa4] sm:$0xf]
      %v284 = vld [vmem:[%s1 + $0xa8] sm:$0xf]
      %v285 = vld [vmem:[%s1 + $0xac] sm:$0xf]
      %v286 = vld [vmem:[%s1 + $0xb0] sm:$0xf]
      %v287 = vld [vmem:[%s1 + $0xb4] sm:$0xf]
      %v288 = vld [vmem:[%s1 + $0xb8] sm:$0xf]
      %v289 = vld [vmem:[%s1 + $0xbc] sm:$0xf]
      %v290 = vld [vmem:[%s1 + $0xc0] sm:$0xf]
      %v291 = vld [vmem:[%s1 + $0xc4] sm:$0xf]
      %v356 = vunpack.c.l.b16 %v178
      %v357 = vunpack.c.h.b16 %v178
      %v358 = vunpack.c.l.b16 %v179
      %v359 = vunpack.c.h.b16 %v179
      %v360 = vunpack.c.l.b16 %v180
      %v361 = vunpack.c.h.b16 %v180
      %v362 = vunpack.c.l.b16 %v181
      %v363 = vunpack.c.h.b16 %v181
      %v364 = vunpack.c.l.b16 %v182
      %v365 = vunpack.c.h.b16 %v182
      %v366 = vunpack.c.l.b16 %v183
      %v367 = vunpack.c.h.b16 %v183
      %v368 = vunpack.c.l.b16 %v184
      %v369 = vunpack.c.h.b16 %v184
      %v370 = vunpack.c.l.b16 %v185
      %v371 = vunpack.c.h.b16 %v185
      %v372 = vunpack.c.l.b16 %v186
      %v373 = vunpack.c.h.b16 %v186
      %v374 = vunpack.c.l.b16 %v187
      %v375 = vunpack.c.h.b16 %v187
      %v376 = vunpack.c.l.b16 %v188
      %v377 = vunpack.c.h.b16 %v188
      %v378 = vunpack.c.l.b16 %v189
      %v379 = vunpack.c.h.b16 %v189
      %v380 = vunpack.c.l.b16 %v190
      %v381 = vunpack.c.h.b16 %v190
      %v382 = vunpack.c.l.b16 %v191
      %v383 = vunpack.c.h.b16 %v191
      %v384 = vunpack.c.l.b16 %v192
      %v385 = vunpack.c.h.b16 %v192
      %v386 = vunpack.c.l.b16 %v193
      %v387 = vunpack.c.h.b16 %v193
      %v388 = vunpack.c.l.b16 %v194
      %v389 = vunpack.c.h.b16 %v194
      %v390 = vunpack.c.l.b16 %v195
      %v391 = vunpack.c.h.b16 %v195
      %v392 = vunpack.c.l.b16 %v196
      %v393 = vunpack.c.h.b16 %v196
      %v394 = vunpack.c.l.b16 %v197
      %v395 = vunpack.c.h.b16 %v197
      %v396 = vunpack.c.l.b16 %v198
      %v397 = vunpack.c.h.b16 %v198
      %v398 = vunpack.c.l.b16 %v199
      %v399 = vunpack.c.h.b16 %v199
      %v400 = vunpack.c.l.b16 %v200
      %v401 = vunpack.c.h.b16 %v200
      %v402 = vunpack.c.l.b16 %v201
      %v403 = vunpack.c.h.b16 %v201
      %v404 = vunpack.c.l.b16 %v202
      %v405 = vunpack.c.h.b16 %v202
      %v406 = vunpack.c.l.b16 %v203
      %v407 = vunpack.c.h.b16 %v203
      %v408 = vunpack.c.l.b16 %v204
      %v409 = vunpack.c.h.b16 %v204
      %v410 = vunpack.c.l.b16 %v205
      %v411 = vunpack.c.h.b16 %v205
      %v412 = vunpack.c.l.b16 %v206
      %v413 = vunpack.c.h.b16 %v206
      %v414 = vunpack.c.l.b16 %v207
      %v415 = vunpack.c.h.b16 %v207
      %v416 = vunpack.c.l.b16 %v208
      %v417 = vunpack.c.h.b16 %v208
      %v418 = vunpack.c.l.b16 %v209
      %v419 = vunpack.c.h.b16 %v209
      %v420 = vunpack.c.l.b16 %v210
      %v421 = vunpack.c.h.b16 %v210
      %v422 = vunpack.c.l.b16 %v211
      %v423 = vunpack.c.h.b16 %v211
      %v424 = vunpack.c.l.b16 %v212
      %v425 = vunpack.c.h.b16 %v212
      %v426 = vunpack.c.l.b16 %v213
      %v427 = vunpack.c.h.b16 %v213
      %v428 = vunpack.c.l.b16 %v214
      %v429 = vunpack.c.h.b16 %v214
      %v430 = vunpack.c.l.b16 %v215
      %v431 = vunpack.c.h.b16 %v215
      %v432 = vunpack.c.l.b16 %v216
      %v433 = vunpack.c.h.b16 %v216
      %v434 = vunpack.c.l.b16 %v217
      %v435 = vunpack.c.h.b16 %v217
      %v436 = vunpack.c.l.b16 %v218
      %v437 = vunpack.c.h.b16 %v218
      %v438 = vunpack.c.l.b16 %v219
      %v439 = vunpack.c.h.b16 %v219
      %v440 = vunpack.c.l.b16 %v220
      %v441 = vunpack.c.h.b16 %v220
      %v442 = vunpack.c.l.b16 %v221
      %v443 = vunpack.c.h.b16 %v221
      %v444 = vunpack.c.l.b16 %v222
      %v445 = vunpack.c.h.b16 %v222
      %v446 = vunpack.c.l.b16 %v223
      %v447 = vunpack.c.h.b16 %v223
      %v448 = vunpack.c.l.b16 %v224
      %v449 = vunpack.c.h.b16 %v224
      %v450 = vunpack.c.l.b16 %v225
      %v451 = vunpack.c.h.b16 %v225
      %v452 = vunpack.c.l.b16 %v226
      %v453 = vunpack.c.h.b16 %v226
      %v454 = vunpack.c.l.b16 %v227
      %v455 = vunpack.c.h.b16 %v227
      %v456 = vunpack.c.l.b16 %v228
      %v457 = vunpack.c.h.b16 %v228
      %v458 = vunpack.c.l.b16 %v229
      %v459 = vunpack.c.h.b16 %v229
      %v460 = vunpack.c.l.b16 %v230
      %v461 = vunpack.c.h.b16 %v230
      %v462 = vunpack.c.l.b16 %v231
      %v463 = vunpack.c.h.b16 %v231
      %v464 = vunpack.c.l.b16 %v232
      %v465 = vunpack.c.h.b16 %v232
      %v466 = vunpack.c.l.b16 %v233
      %v467 = vunpack.c.h.b16 %v233
      %v468 = vunpack.c.l.b16 %v234
      %v469 = vunpack.c.h.b16 %v234
      %v470 = vunpack.c.l.b16 %v235
      %v471 = vunpack.c.h.b16 %v235
      %v472 = vunpack.c.l.b16 %v236
      %v473 = vunpack.c.h.b16 %v236
      %v474 = vunpack.c.l.b16 %v237
      %v475 = vunpack.c.h.b16 %v237
      %v476 = vunpack.c.l.b16 %v238
      %v477 = vunpack.c.h.b16 %v238
      %v478 = vunpack.c.l.b16 %v239
      %v479 = vunpack.c.h.b16 %v239
      %v480 = vunpack.c.l.b16 %v240
      %v481 = vunpack.c.h.b16 %v240
      %v482 = vunpack.c.l.b16 %v241
      %v483 = vunpack.c.h.b16 %v241
      %v484 = vpack.c.b16 %v360, %v356
      %v485 = vpack.c.b16 %v361, %v357
      %v486 = vpack.c.b16 %v362, %v358
      %v487 = vpack.c.b16 %v363, %v359
      %v488 = vpack.c.b16 %v368, %v364
      %v489 = vpack.c.b16 %v369, %v365
      %v490 = vpack.c.b16 %v370, %v366
      %v491 = vpack.c.b16 %v371, %v367
      %v492 = vpack.c.b16 %v376, %v372
      %v493 = vpack.c.b16 %v377, %v373
      %v494 = vpack.c.b16 %v378, %v374
      %v495 = vpack.c.b16 %v379, %v375
      %v496 = vpack.c.b16 %v384, %v380
      %v497 = vpack.c.b16 %v385, %v381
      %v498 = vpack.c.b16 %v386, %v382
      %v499 = vpack.c.b16 %v387, %v383
      %v500 = vpack.c.b16 %v392, %v388
      %v501 = vpack.c.b16 %v393, %v389
      %v502 = vpack.c.b16 %v394, %v390
      %v503 = vpack.c.b16 %v395, %v391
      %v504 = vpack.c.b16 %v400, %v396
      %v505 = vpack.c.b16 %v401, %v397
      %v506 = vpack.c.b16 %v402, %v398
      %v507 = vpack.c.b16 %v403, %v399
      %v508 = vpack.c.b16 %v408, %v404
      %v509 = vpack.c.b16 %v409, %v405
      %v510 = vpack.c.b16 %v410, %v406
      %v511 = vpack.c.b16 %v411, %v407
      %v512 = vpack.c.b16 %v416, %v412
      %v513 = vpack.c.b16 %v417, %v413
      %v514 = vpack.c.b16 %v418, %v414
      %v515 = vpack.c.b16 %v419, %v415
      %v516 = vpack.c.b16 %v424, %v420
      %v517 = vpack.c.b16 %v425, %v421
      %v518 = vpack.c.b16 %v426, %v422
      %v519 = vpack.c.b16 %v427, %v423
      %v520 = vpack.c.b16 %v432, %v428
      %v521 = vpack.c.b16 %v433, %v429
      %v522 = vpack.c.b16 %v434, %v430
      %v523 = vpack.c.b16 %v435, %v431
      %v524 = vpack.c.b16 %v440, %v436
      %v525 = vpack.c.b16 %v441, %v437
      %v526 = vpack.c.b16 %v442, %v438
      %v527 = vpack.c.b16 %v443, %v439
      %v528 = vpack.c.b16 %v448, %v444
      %v529 = vpack.c.b16 %v449, %v445
      %v530 = vpack.c.b16 %v450, %v446
      %v531 = vpack.c.b16 %v451, %v447
      %v532 = vpack.c.b16 %v456, %v452
      %v533 = vpack.c.b16 %v457, %v453
      %v534 = vpack.c.b16 %v458, %v454
      %v535 = vpack.c.b16 %v459, %v455
      %v536 = vpack.c.b16 %v464, %v460
      %v537 = vpack.c.b16 %v465, %v461
      %v538 = vpack.c.b16 %v466, %v462
      %v539 = vpack.c.b16 %v467, %v463
      %v540 = vpack.c.b16 %v472, %v468
      %v541 = vpack.c.b16 %v473, %v469
      %v542 = vpack.c.b16 %v474, %v470
      %v543 = vpack.c.b16 %v475, %v471
      %v544 = vpack.c.b16 %v480, %v476
      %v545 = vpack.c.b16 %v481, %v477
      %v546 = vpack.c.b16 %v482, %v478
      %v547 = vpack.c.b16 %v483, %v479
      %v646 = vunpack.c.l.b16 %v242
      %v647 = vunpack.c.l.b16 %v243
      %v648 = vunpack.c.l.b16 %v244
      %v649 = vunpack.c.l.b16 %v245
      %v650 = vunpack.c.l.b16 %v246
      %v651 = vunpack.c.l.b16 %v247
      %v652 = vunpack.c.l.b16 %v248
      %v653 = vunpack.c.l.b16 %v249
      %v654 = vunpack.c.l.b16 %v250
      %v655 = vunpack.c.l.b16 %v251
      %v656 = vunpack.c.l.b16 %v252
      %v657 = vunpack.c.l.b16 %v253
      %v658 = vunpack.c.l.b16 %v254
      %v659 = vunpack.c.l.b16 %v255
      %v660 = vunpack.c.l.b16 %v256
      %v661 = vunpack.c.l.b16 %v257
      %v662 = vunpack.c.l.b16 %v258
      %v663 = vunpack.c.l.b16 %v259
      %v664 = vunpack.c.l.b16 %v260
      %v665 = vunpack.c.l.b16 %v261
      %v666 = vunpack.c.l.b16 %v262
      %v667 = vunpack.c.l.b16 %v263
      %v668 = vunpack.c.l.b16 %v264
      %v669 = vunpack.c.l.b16 %v265
      %v670 = vunpack.c.l.b16 %v266
      %v671 = vunpack.c.l.b16 %v267
      %v672 = vunpack.c.l.b16 %v268
      %v673 = vunpack.c.l.b16 %v269
      %v674 = vunpack.c.l.b16 %v270
      %v675 = vunpack.c.l.b16 %v271
      %v676 = vunpack.c.l.b16 %v272
      %v677 = vunpack.c.l.b16 %v273
      %v678 = vunpack.c.l.b16 %v274
      %v679 = vunpack.c.l.b16 %v275
      %v680 = vunpack.c.l.b16 %v276
      %v681 = vunpack.c.l.b16 %v277
      %v682 = vunpack.c.l.b16 %v278
      %v683 = vunpack.c.l.b16 %v279
      %v684 = vunpack.c.l.b16 %v280
      %v685 = vunpack.c.l.b16 %v281
      %v686 = vunpack.c.l.b16 %v282
      %v687 = vunpack.c.l.b16 %v283
      %v688 = vunpack.c.l.b16 %v284
      %v689 = vunpack.c.l.b16 %v285
      %v690 = vunpack.c.l.b16 %v286
      %v691 = vunpack.c.l.b16 %v287
      %v692 = vunpack.c.l.b16 %v288
      %v693 = vunpack.c.l.b16 %v289
      %v694 = vunpack.c.l.b16 %v290
      %v695 = vunpack.c.l.b16 %v291
      %v696 = vpack.c.b16 %v647, %v646
      %v697 = vpack.c.b16 %v649, %v648
      %v698 = vpack.c.b16 %v651, %v650
      %v699 = vpack.c.b16 %v653, %v652
      %v700 = vpack.c.b16 %v655, %v654
      %v701 = vpack.c.b16 %v657, %v656
      %v702 = vpack.c.b16 %v659, %v658
      %v703 = vpack.c.b16 %v661, %v660
      %v704 = vpack.c.b16 %v663, %v662
      %v705 = vpack.c.b16 %v665, %v664
      %v706 = vpack.c.b16 %v667, %v666
      %v707 = vpack.c.b16 %v669, %v668
      %v708 = vpack.c.b16 %v671, %v670
      %v709 = vpack.c.b16 %v673, %v672
      %v710 = vpack.c.b16 %v675, %v674
      %v711 = vpack.c.b16 %v677, %v676
      %v712 = vpack.c.b16 %v679, %v678
      %v713 = vpack.c.b16 %v681, %v680
      %v714 = vpack.c.b16 %v683, %v682
      %v715 = vpack.c.b16 %v685, %v684
      %v716 = vpack.c.b16 %v687, %v686
      %v717 = vpack.c.b16 %v689, %v688
      %v718 = vpack.c.b16 %v691, %v690
      %v719 = vpack.c.b16 %v693, %v692
      %v720 = vpack.c.b16 %v695, %v694
      %vm746 = vcmask 130048
      %v748 = vsel %vm746, %v487, 0
      %v751 = vsel %vm746, %v491, 0
      %v754 = vsel %vm746, %v495, 0
      %v757 = vsel %vm746, %v499, 0
      %v760 = vsel %vm746, %v503, 0
      %v763 = vsel %vm746, %v507, 0
      %v766 = vsel %vm746, %v511, 0
      %v769 = vsel %vm746, %v515, 0
      %v772 = vsel %vm746, %v519, 0
      %v775 = vsel %vm746, %v523, 0
      %v778 = vsel %vm746, %v527, 0
      %v781 = vsel %vm746, %v531, 0
      %v784 = vsel %vm746, %v535, 0
      %v787 = vsel %vm746, %v539, 0
      %v790 = vsel %vm746, %v543, 0
      %v793 = vsel %vm746, %v547, 0
      %795 = vmatprep.subr.bf16.mxu0 0
      %796 = vmatpush1.bf16.msra.mxu0 %v696
      %797 = vmatprep.subr.bf16.mxu0 0
      %798 = vmatpush1.bf16.msra.mxu0 %v697
      %799 = vmatprep.subr.bf16.mxu0 0
      %800 = vmatpush1.bf16.msra.mxu0 %v698
      %801 = vmatprep.subr.bf16.mxu0 0
      %802 = vmatpush1.bf16.msra.mxu0 %v699
      %803 = vmatprep.subr.bf16.mxu0 0
      %804 = vmatpush1.bf16.msra.mxu0 %v700
      %805 = vmatprep.subr.bf16.mxu0 0
      %806 = vmatpush1.bf16.msra.mxu0 %v701
      %807 = vmatprep.subr.bf16.mxu0 0
      %808 = vmatpush1.bf16.msra.mxu0 %v702
      %809 = vmatprep.subr.bf16.mxu0 0
      %810 = vmatpush1.bf16.msra.mxu0 %v703
      %811 = vmatprep.subr.bf16.mxu0 0
      %812 = vmatpush1.bf16.msra.mxu0 %v704
      %813 = vmatprep.subr.bf16.mxu0 0
      %814 = vmatpush1.bf16.msra.mxu0 %v705
      %815 = vmatprep.subr.bf16.mxu0 0
      %816 = vmatpush1.bf16.msra.mxu0 %v706
      %817 = vmatprep.subr.bf16.mxu0 0
      %818 = vmatpush1.bf16.msra.mxu0 %v707
      %819 = vmatprep.subr.bf16.mxu0 0
      %820 = vmatpush1.bf16.msra.mxu0 %v708
      %821 = vmatprep.subr.bf16.mxu0 0
      %822 = vmatpush1.bf16.msra.mxu0 %v709
      %823 = vmatprep.subr.bf16.mxu0 0
      %824 = vmatpush1.bf16.msra.mxu0 %v710
      %825 = vmatprep.subr.bf16.mxu0 0
      %826 = vmatpush1.bf16.msra.mxu0 %v711
      %827 = vmatprep.mubr.bf16.mxu0 %v485
      %828 = vmatmul.mubr.bf16.gmra.mrb[0].mxu0 %v484
      %v829 = vpop.f32.mrb[0].mxu0
      %v830 = vadd.f32 0.0, %v829
      %v831 = vpop.f32.mrb[0].mxu0
      %v832 = vpop.f32.mrb[0].mxu0
      %v833 = vadd.f32 0.0, %v832
      %v834 = vpop.f32.mrb[0].mxu0
      %835 = vmatprep.mubr.bf16.mxu0 %v489
      %836 = vmatmul.mubr.bf16.gmra.mrb[0].mxu0 %v488
      %v837 = vpop.f32.mrb[0].mxu0
      %v838 = vadd.f32 0.0, %v837
      %v839 = vpop.f32.mrb[0].mxu0
      %v840 = vpop.f32.mrb[0].mxu0
      %v841 = vadd.f32 0.0, %v840
      %v842 = vpop.f32.mrb[0].mxu0
      %843 = vmatprep.mubr.bf16.mxu0 %v493
      %844 = vmatmul.mubr.bf16.gmra.mrb[0].mxu0 %v492
      %v845 = vpop.f32.mrb[0].mxu0
      %v846 = vadd.f32 0.0, %v845
      %v847 = vpop.f32.mrb[0].mxu0
      %v848 = vpop.f32.mrb[0].mxu0
      %v849 = vadd.f32 0.0, %v848
      %v850 = vpop.f32.mrb[0].mxu0
      %851 = vmatprep.mubr.bf16.mxu0 %v497
      %852 = vmatmul.mubr.bf16.gmra.mrb[0].mxu0 %v496
      %v853 = vpop.f32.mrb[0].mxu0
      %v854 = vadd.f32 0.0, %v853
      %v855 = vpop.f32.mrb[0].mxu0
      %v856 = vpop.f32.mrb[0].mxu0
      %v857 = vadd.f32 0.0, %v856
      %v858 = vpop.f32.mrb[0].mxu0
      %859 = vmatprep.mubr.bf16.mxu0 %v501
      %860 = vmatmul.mubr.bf16.gmra.mrb[0].mxu0 %v500
      %v861 = vpop.f32.mrb[0].mxu0
      %v862 = vadd.f32 0.0, %v861
      %v863 = vpop.f32.mrb[0].mxu0
      %v864 = vpop.f32.mrb[0].mxu0
      %v865 = vadd.f32 0.0, %v864
      %v866 = vpop.f32.mrb[0].mxu0
      %867 = vmatprep.mubr.bf16.mxu0 %v505
      %868 = vmatmul.mubr.bf16.gmra.mrb[0].mxu0 %v504
      %v869 = vpop.f32.mrb[0].mxu0
      %v870 = vadd.f32 0.0, %v869
      %v871 = vpop.f32.mrb[0].mxu0
      %v872 = vpop.f32.mrb[0].mxu0
      %v873 = vadd.f32 0.0, %v872
      %v874 = vpop.f32.mrb[0].mxu0
      %875 = vmatprep.mubr.bf16.mxu0 %v509
      %876 = vmatmul.mubr.bf16.gmra.mrb[0].mxu0 %v508
      %v877 = vpop.f32.mrb[0].mxu0
      %v878 = vadd.f32 0.0, %v877
      %v879 = vpop.f32.mrb[0].mxu0
      %v880 = vpop.f32.mrb[0].mxu0
      %v881 = vadd.f32 0.0, %v880
      %v882 = vpop.f32.mrb[0].mxu0
      %883 = vmatprep.mubr.bf16.mxu0 %v513
      %884 = vmatmul.mubr.bf16.gmra.mrb[0].mxu0 %v512
      %v885 = vpop.f32.mrb[0].mxu0
      %v886 = vadd.f32 0.0, %v885
      %v887 = vpop.f32.mrb[0].mxu0
      %v888 = vpop.f32.mrb[0].mxu0
      %v889 = vadd.f32 0.0, %v888
      %v890 = vpop.f32.mrb[0].mxu0
      %891 = vmatprep.mubr.bf16.mxu0 %v517
      %892 = vmatmul.mubr.bf16.gmra.mrb[0].mxu0 %v516
      %v893 = vpop.f32.mrb[0].mxu0
      %v894 = vadd.f32 0.0, %v893
      %v895 = vpop.f32.mrb[0].mxu0
      %v896 = vpop.f32.mrb[0].mxu0
      %v897 = vadd.f32 0.0, %v896
      %v898 = vpop.f32.mrb[0].mxu0
      %899 = vmatprep.mubr.bf16.mxu0 %v521
      %900 = vmatmul.mubr.bf16.gmra.mrb[0].mxu0 %v520
      %v901 = vpop.f32.mrb[0].mxu0
      %v902 = vadd.f32 0.0, %v901
      %v903 = vpop.f32.mrb[0].mxu0
      %v904 = vpop.f32.mrb[0].mxu0
      %v905 = vadd.f32 0.0, %v904
      %v906 = vpop.f32.mrb[0].mxu0
      %907 = vmatprep.mubr.bf16.mxu0 %v525
      %908 = vmatmul.mubr.bf16.gmra.mrb[0].mxu0 %v524
      %v909 = vpop.f32.mrb[0].mxu0
      %v910 = vadd.f32 0.0, %v909
      %v911 = vpop.f32.mrb[0].mxu0
      %v912 = vpop.f32.mrb[0].mxu0
      %v913 = vadd.f32 0.0, %v912
      %v914 = vpop.f32.mrb[0].mxu0
      %915 = vmatprep.mubr.bf16.mxu0 %v529
      %916 = vmatmul.mubr.bf16.gmra.mrb[0].mxu0 %v528
      %v917 = vpop.f32.mrb[0].mxu0
      %v918 = vadd.f32 0.0, %v917
      %v919 = vpop.f32.mrb[0].mxu0
      %v920 = vpop.f32.mrb[0].mxu0
      %v921 = vadd.f32 0.0, %v920
      %v922 = vpop.f32.mrb[0].mxu0
      %923 = vmatprep.mubr.bf16.mxu0 %v533
      %924 = vmatmul.mubr.bf16.gmra.mrb[0].mxu0 %v532
      %v925 = vpop.f32.mrb[0].mxu0
      %v926 = vadd.f32 0.0, %v925
      %v927 = vpop.f32.mrb[0].mxu0
      %v928 = vpop.f32.mrb[0].mxu0
      %v929 = vadd.f32 0.0, %v928
      %v930 = vpop.f32.mrb[0].mxu0
      %931 = vmatprep.mubr.bf16.mxu0 %v537
      %932 = vmatmul.mubr.bf16.gmra.mrb[0].mxu0 %v536
      %v933 = vpop.f32.mrb[0].mxu0
      %v934 = vadd.f32 0.0, %v933
      %v935 = vpop.f32.mrb[0].mxu0
      %v936 = vpop.f32.mrb[0].mxu0
      %v937 = vadd.f32 0.0, %v936
      %v938 = vpop.f32.mrb[0].mxu0
      %939 = vmatprep.mubr.bf16.mxu0 %v541
      %940 = vmatmul.mubr.bf16.gmra.mrb[0].mxu0 %v540
      %v941 = vpop.f32.mrb[0].mxu0
      %v942 = vadd.f32 0.0, %v941
      %v943 = vpop.f32.mrb[0].mxu0
      %v944 = vpop.f32.mrb[0].mxu0
      %v945 = vadd.f32 0.0, %v944
      %v946 = vpop.f32.mrb[0].mxu0
      %947 = vmatprep.mubr.bf16.mxu0 %v545
      %948 = vmatmul.mubr.bf16.gmra.mrb[0].mxu0 %v544
      %v949 = vpop.f32.mrb[0].mxu0
      %v950 = vadd.f32 0.0, %v949
      %v951 = vpop.f32.mrb[0].mxu0
      %v952 = vpop.f32.mrb[0].mxu0
      %v953 = vadd.f32 0.0, %v952
      %v954 = vpop.f32.mrb[0].mxu0
      %955 = vdwg.mxu0
      %956 = vmatprep.subr.bf16.mxu0 0
      %957 = vmatpush1.bf16.msra.mxu0 %v712
      %958 = vmatprep.subr.bf16.mxu0 0
      %959 = vmatpush1.bf16.msra.mxu0 %v713
      %960 = vmatprep.subr.bf16.mxu0 0
      %961 = vmatpush1.bf16.msra.mxu0 %v714
      %962 = vmatprep.subr.bf16.mxu0 0
      %963 = vmatpush1.bf16.msra.mxu0 %v715
      %964 = vmatprep.subr.bf16.mxu0 0
      %965 = vmatpush1.bf16.msra.mxu0 %v716
      %966 = vmatprep.subr.bf16.mxu0 0
      %967 = vmatpush1.bf16.msra.mxu0 %v717
      %968 = vmatprep.subr.bf16.mxu0 0
      %969 = vmatpush1.bf16.msra.mxu0 %v718
      %970 = vmatprep.subr.bf16.mxu0 0
      %971 = vmatpush1.bf16.msra.mxu0 %v719
      %972 = vmatprep.subr.bf16.mxu0 0
      %973 = vmatpush1.bf16.msra.mxu0 %v720
      %974 = vmatprep.subr.bf16.mxu0 0
      %975 = vmatpush1.bf16.msra.mxu0 0
      %976 = vmatprep.subr.bf16.mxu0 0
      %977 = vmatpush1.bf16.msra.mxu0 0
      %978 = vmatprep.subr.bf16.mxu0 0
      %979 = vmatpush1.bf16.msra.mxu0 0
      %980 = vmatprep.subr.bf16.mxu0 0
      %981 = vmatpush1.bf16.msra.mxu0 0
      %982 = vmatprep.subr.bf16.mxu0 0
      %983 = vmatpush1.bf16.msra.mxu0 0
      %984 = vmatprep.subr.bf16.mxu0 0
      %985 = vmatpush1.bf16.msra.mxu0 0
      %986 = vmatprep.subr.bf16.mxu0 0
      %987 = vmatpush1.bf16.msra.mxu0 0
      %988 = vmatprep.mubr.bf16.mxu0 %v748
      %989 = vmatmul.mubr.bf16.gmra.mrb[0].mxu0 %v486
      %v990 = vpop.f32.mrb[0].mxu0
      %v991 = vadd.f32 %v830, %v990
      %v992 = vpop.f32.mrb[0].mxu0
      %v993 = vpop.f32.mrb[0].mxu0
      %v994 = vadd.f32 %v833, %v993
      %v995 = vpop.f32.mrb[0].mxu0
      %996 = vmatprep.mubr.bf16.mxu0 %v751
      %997 = vmatmul.mubr.bf16.gmra.mrb[0].mxu0 %v490
      %v998 = vpop.f32.mrb[0].mxu0
      %v999 = vadd.f32 %v838, %v998
      %v1000 = vpop.f32.mrb[0].mxu0
      %v1001 = vpop.f32.mrb[0].mxu0
      %v1002 = vadd.f32 %v841, %v1001
      %v1003 = vpop.f32.mrb[0].mxu0
      %1004 = vmatprep.mubr.bf16.mxu0 %v754
      %1005 = vmatmul.mubr.bf16.gmra.mrb[0].mxu0 %v494
      %v1006 = vpop.f32.mrb[0].mxu0
      %v1007 = vadd.f32 %v846, %v1006
      %v1008 = vpop.f32.mrb[0].mxu0
      %v1009 = vpop.f32.mrb[0].mxu0
      %v1010 = vadd.f32 %v849, %v1009
      %v1011 = vpop.f32.mrb[0].mxu0
      %1012 = vmatprep.mubr.bf16.mxu0 %v757
      %1013 = vmatmul.mubr.bf16.gmra.mrb[0].mxu0 %v498
      %v1014 = vpop.f32.mrb[0].mxu0
      %v1015 = vadd.f32 %v854, %v1014
      %v1016 = vpop.f32.mrb[0].mxu0
      %v1017 = vpop.f32.mrb[0].mxu0
      %v1018 = vadd.f32 %v857, %v1017
      %v1019 = vpop.f32.mrb[0].mxu0
      %1020 = vmatprep.mubr.bf16.mxu0 %v760
      %1021 = vmatmul.mubr.bf16.gmra.mrb[0].mxu0 %v502
      %v1022 = vpop.f32.mrb[0].mxu0
      %v1023 = vadd.f32 %v862, %v1022
      %v1024 = vpop.f32.mrb[0].mxu0
      %v1025 = vpop.f32.mrb[0].mxu0
      %v1026 = vadd.f32 %v865, %v1025
      %v1027 = vpop.f32.mrb[0].mxu0
      %1028 = vmatprep.mubr.bf16.mxu0 %v763
      %1029 = vmatmul.mubr.bf16.gmra.mrb[0].mxu0 %v506
      %v1030 = vpop.f32.mrb[0].mxu0
      %v1031 = vadd.f32 %v870, %v1030
      %v1032 = vpop.f32.mrb[0].mxu0
      %v1033 = vpop.f32.mrb[0].mxu0
      %v1034 = vadd.f32 %v873, %v1033
      %v1035 = vpop.f32.mrb[0].mxu0
      %1036 = vmatprep.mubr.bf16.mxu0 %v766
      %1037 = vmatmul.mubr.bf16.gmra.mrb[0].mxu0 %v510
      %v1038 = vpop.f32.mrb[0].mxu0
      %v1039 = vadd.f32 %v878, %v1038
      %v1040 = vpop.f32.mrb[0].mxu0
      %v1041 = vpop.f32.mrb[0].mxu0
      %v1042 = vadd.f32 %v881, %v1041
      %v1043 = vpop.f32.mrb[0].mxu0
      %1044 = vmatprep.mubr.bf16.mxu0 %v769
      %1045 = vmatmul.mubr.bf16.gmra.mrb[0].mxu0 %v514
      %v1046 = vpop.f32.mrb[0].mxu0
      %v1047 = vadd.f32 %v886, %v1046
      %v1048 = vpop.f32.mrb[0].mxu0
      %v1049 = vpop.f32.mrb[0].mxu0
      %v1050 = vadd.f32 %v889, %v1049
      %v1051 = vpop.f32.mrb[0].mxu0
      %1052 = vmatprep.mubr.bf16.mxu0 %v772
      %1053 = vmatmul.mubr.bf16.gmra.mrb[0].mxu0 %v518
      %v1054 = vpop.f32.mrb[0].mxu0
      %v1055 = vadd.f32 %v894, %v1054
      %v1056 = vpop.f32.mrb[0].mxu0
      %v1057 = vpop.f32.mrb[0].mxu0
      %v1058 = vadd.f32 %v897, %v1057
      %v1059 = vpop.f32.mrb[0].mxu0
      %1060 = vmatprep.mubr.bf16.mxu0 %v775
      %1061 = vmatmul.mubr.bf16.gmra.mrb[0].mxu0 %v522
      %v1062 = vpop.f32.mrb[0].mxu0
      %v1063 = vadd.f32 %v902, %v1062
      %v1064 = vpop.f32.mrb[0].mxu0
      %v1065 = vpop.f32.mrb[0].mxu0
      %v1066 = vadd.f32 %v905, %v1065
      %v1067 = vpop.f32.mrb[0].mxu0
      %1068 = vmatprep.mubr.bf16.mxu0 %v778
      %1069 = vmatmul.mubr.bf16.gmra.mrb[0].mxu0 %v526
      %v1070 = vpop.f32.mrb[0].mxu0
      %v1071 = vadd.f32 %v910, %v1070
      %v1072 = vpop.f32.mrb[0].mxu0
      %v1073 = vpop.f32.mrb[0].mxu0
      %v1074 = vadd.f32 %v913, %v1073
      %v1075 = vpop.f32.mrb[0].mxu0
      %1076 = vmatprep.mubr.bf16.mxu0 %v781
      %1077 = vmatmul.mubr.bf16.gmra.mrb[0].mxu0 %v530
      %v1078 = vpop.f32.mrb[0].mxu0
      %v1079 = vadd.f32 %v918, %v1078
      %v1080 = vpop.f32.mrb[0].mxu0
      %v1081 = vpop.f32.mrb[0].mxu0
      %v1082 = vadd.f32 %v921, %v1081
      %v1083 = vpop.f32.mrb[0].mxu0
      %1084 = vmatprep.mubr.bf16.mxu0 %v784
      %1085 = vmatmul.mubr.bf16.gmra.mrb[0].mxu0 %v534
      %v1086 = vpop.f32.mrb[0].mxu0
      %v1087 = vadd.f32 %v926, %v1086
      %v1088 = vpop.f32.mrb[0].mxu0
      %v1089 = vpop.f32.mrb[0].mxu0
      %v1090 = vadd.f32 %v929, %v1089
      %v1091 = vpop.f32.mrb[0].mxu0
      %1092 = vmatprep.mubr.bf16.mxu0 %v787
      %1093 = vmatmul.mubr.bf16.gmra.mrb[0].mxu0 %v538
      %v1094 = vpop.f32.mrb[0].mxu0
      %v1095 = vadd.f32 %v934, %v1094
      %v1096 = vpop.f32.mrb[0].mxu0
      %v1097 = vpop.f32.mrb[0].mxu0
      %v1098 = vadd.f32 %v937, %v1097
      %v1099 = vpop.f32.mrb[0].mxu0
      %1100 = vmatprep.mubr.bf16.mxu0 %v790
      %1101 = vmatmul.mubr.bf16.gmra.mrb[0].mxu0 %v542
      %v1102 = vpop.f32.mrb[0].mxu0
      %v1103 = vadd.f32 %v942, %v1102
      %v1104 = vpop.f32.mrb[0].mxu0
      %v1105 = vpop.f32.mrb[0].mxu0
      %v1106 = vadd.f32 %v945, %v1105
      %v1107 = vpop.f32.mrb[0].mxu0
      %1108 = vmatprep.mubr.bf16.mxu0 %v793
      %1109 = vmatmul.mubr.bf16.gmra.mrb[0].mxu0 %v546
      %v1110 = vpop.f32.mrb[0].mxu0
      %v1111 = vadd.f32 %v950, %v1110
      %v1112 = vpop.f32.mrb[0].mxu0
      %v1113 = vpop.f32.mrb[0].mxu0
      %v1114 = vadd.f32 %v953, %v1113
      %v1115 = vpop.f32.mrb[0].mxu0
      %1116 = vdwg.mxu0
      %v1117 = vmax.f32 %v991, %v1023
      %v1118 = vmax.f32 %v994, %v1026
      %v1119 = vmax.f32 %v999, %v1031
      %v1120 = vmax.f32 %v1002, %v1034
      %v1121 = vmax.f32 %v1007, %v1039
      %v1122 = vmax.f32 %v1010, %v1042
      %v1123 = vmax.f32 %v1015, %v1047
      %v1124 = vmax.f32 %v1018, %v1050
      %v1125 = vmax.f32 %v1055, %v1087
      %v1126 = vmax.f32 %v1058, %v1090
      %v1127 = vmax.f32 %v1063, %v1095
      %v1128 = vmax.f32 %v1066, %v1098
      %v1129 = vmax.f32 %v1071, %v1103
      %v1130 = vmax.f32 %v1074, %v1106
      %v1131 = vmax.f32 %v1079, %v1111
      %v1132 = vmax.f32 %v1082, %v1114
      %v1133 = vmax.f32 %v1117, %v1125
      %v1134 = vmax.f32 %v1118, %v1126
      %v1135 = vmax.f32 %v1119, %v1127
      %v1136 = vmax.f32 %v1120, %v1128
      %v1137 = vmax.f32 %v1121, %v1129
      %v1138 = vmax.f32 %v1122, %v1130
      %v1139 = vmax.f32 %v1123, %v1131
      %v1140 = vmax.f32 %v1124, %v1132
      %v1141 = vld [vmem:[%s2] sm:$0x1]
      %v1143 = vlaneseq
      %v1144 = vshrl.u32 %v1143, 7
      %v1145 = vsub.s32 0, %v1144
      %v1146 = vrot.slane %v1141, %v1145
      %v1148 = vadd.f32 %v1133, %v1146
      %v1149 = vadd.f32 %v1134, %v1146
      %v1150 = vadd.f32 %v1135, %v1146
      %v1151 = vadd.f32 %v1136, %v1146
      %v1152 = vadd.f32 %v1137, %v1146
      %v1153 = vadd.f32 %v1138, %v1146
      %v1154 = vadd.f32 %v1139, %v1146
      %v1155 = vadd.f32 %v1140, %v1146
      %v1156 = vmax.f32 %v1148, 0.0
      %v1157 = vmax.f32 %v1149, 0.0
      %v1158 = vmax.f32 %v1150, 0.0
      %v1159 = vmax.f32 %v1151, 0.0
      %v1160 = vmax.f32 %v1152, 0.0
      %v1161 = vmax.f32 %v1153, 0.0
      %v1162 = vmax.f32 %v1154, 0.0
      %v1163 = vmax.f32 %v1155, 0.0
      %v1164 = vpack.c.bf16 %v1157, %v1156
      %v1165 = vpack.c.bf16 %v1159, %v1158
      %v1166 = vpack.c.bf16 %v1161, %v1160
      %v1167 = vpack.c.bf16 %v1163, %v1162
      %v1172 = vunpack.c.l.b16 %v1164
      %v1173 = vunpack.c.h.b16 %v1164
      %v1174 = vunpack.c.l.b16 %v1165
      %v1175 = vunpack.c.h.b16 %v1165
      %v1176 = vunpack.c.l.b16 %v1166
      %v1177 = vunpack.c.h.b16 %v1166
      %v1178 = vunpack.c.l.b16 %v1167
      %v1179 = vunpack.c.h.b16 %v1167
      %v1180 = vpack.c.b16 %v1172, %v1172
      %v1181 = vpack.c.b16 %v1173, %v1173
      %v1182 = vpack.c.b16 %v1174, %v1174
      %v1183 = vpack.c.b16 %v1175, %v1175
      %v1184 = vpack.c.b16 %v1176, %v1176
      %v1185 = vpack.c.b16 %v1177, %v1177
      %v1186 = vpack.c.b16 %v1178, %v1178
      %v1187 = vpack.c.b16 %v1179, %v1179
      %1196 = vst [vmem:[%s175] sm:$0xf] %v1180
      %1197 = vst [vmem:[%s175 + $0x4] sm:$0xf] %v1181
      %1198 = vst [vmem:[%s175 + $0x8] sm:$0xf] %v1182
      %1199 = vst [vmem:[%s175 + $0xc] sm:$0xf] %v1183
      %1200 = vst [vmem:[%s175 + $0x10] sm:$0xf] %v1184
      %1201 = vst [vmem:[%s175 + $0x14] sm:$0xf] %v1185
      %1202 = vst [vmem:[%s175 + $0x18] sm:$0xf] %v1186
      %1203 = vst [vmem:[%s175 + $0x1c] sm:$0xf] %v1187
      %s1204 = smul.u32 8, %s14
      %p1205 = scmp.lt.s32.totalorder %s1204, 15
      %s1206 = scalar_select %p1205, %s1204, 15
      %s1207 = smul.addr %s1206, 4
      %s1208 = scalar_lea.vmem %s3, %s1207
      // Predicated region
      $region33: #{convnet_forward.4} parent=31 // pred_check
        %p1209 = pneg %p100
      $region34: #{convnet_forward.4} parent=31 // pred_check_branch
        %1211 = sbr.rel (%p1209) target = $region36
      $region35: #{convnet_forward.4} parent=31 // pred_region
        %s1212 = smul.u32 8, %s14
      $region36: #{convnet_forward.4} parent=31 // pred_fallthru
        _
    $region32: #{convnet_forward.4} parent=5 // pred_fallthru
      _
    %p1213 = scmp.le.s32.totalorder 2, %s9
    // Predicated region
    $region37: #{convnet_forward.4} parent=5 // pred_check
      %p1214 = pneg %p1213
    $region38: #{convnet_forward.4} parent=5 // pred_check_branch
      %1216 = sbr.rel (%p1214) target = $region40
    $region39: #{convnet_forward.4} parent=5 // pred_region
      %s1217 = ssub.s32 %s9, 2
      // Predicated region
      $region41: #{convnet_forward.4} parent=39 // pred_check
        %p1218 = pneg %p106
      $region42: #{convnet_forward.4} parent=39 // pred_check_branch
        %1220 = sbr.rel (%p1218) target = $region44
      $region43: #{convnet_forward.4} parent=39 // pred_region
        %s1221 = smul.u32 8, %s15
        %p1222 = scmp.lt.s32.totalorder %s1221, 15
        %s1223 = scalar_select %p1222, %s1221, 15
        %s1224 = smul.addr %s1223, 4
        %s1225 = scalar_lea.vmem %s3, %s1224
      $region44: #{convnet_forward.4} parent=39 // pred_fallthru
        _
    $region40: #{convnet_forward.4} parent=5 // pred_fallthru
      _
  $region6: #{convnet_forward.4} parent=0 // loop_footer
    %s13 = sadd.s32 1, %s9
  $region7: #{convnet_forward.4} parent=0 // loop_footer_branch
    %8 = sbr.rel target = $region3
  $region8: #{convnet_forward.4} parent=0 // loop_exit
    _

// kernel: convnet_forward.5
$region0: #{convnet_forward.5}
  #allocation0 [shape = 'u32[]', space=smem, size = 0x4, offset = 0x4, fixed_abs, tag = 'smem constant byte address 0x4 - core index']
  #allocation1 [shape = 'u32[144,128]{1,0:T(1,128)}', space=vmem, size = 0x12000, scoped, tag = 'internal scratch']
  %s0 = inlined_call_operand.vmem [shape: bf16[16,1568], index: 0, kind: input, shape index: {}]
  %s1 = inlined_call_operand.vmem [shape: bf16[1568,128], index: 1, kind: input, shape index: {}]
  %s2 = inlined_call_operand.vmem [shape: f32[1,128], index: 2, kind: input, shape index: {}]
  %s3 = inlined_call_operand.vmem [shape: bf16[128,128], index: 3, kind: input, shape index: {}]
  %s4 = inlined_call_operand.vmem [shape: f32[1,128], index: 4, kind: input, shape index: {}]
  %s5 = inlined_call_operand.vmem [shape: f32[16,128], index: 5, kind: output, shape index: {}]
  %s6 = sld [smem:[#allocation0]]
  $region30: #{convnet_forward.5} parent=0
    _
  %s8 = ssub.s32 1, %s6
  %s9 = scalar_select 0, %s8, %s6
  // Predicated region
  $region2: #{convnet_forward.5} parent=0 // pred_check
    _
  $region3: #{convnet_forward.5} parent=0 // pred_check_branch
    %11 = sbr.rel (0) target = $region5
  $region4: #{convnet_forward.5} parent=0 // pred_region
    _
  $region5: #{convnet_forward.5} parent=0 // pred_fallthru
    _
  // Predicated region
  $region6: #{convnet_forward.5} parent=0 // pred_check
    _
  $region7: #{convnet_forward.5} parent=0 // pred_check_branch
    %13 = sbr.rel (0) target = $region9
  $region8: #{convnet_forward.5} parent=0 // pred_region
    _
  $region9: #{convnet_forward.5} parent=0 // pred_fallthru
    _
  // Predicated region
  $region10: #{convnet_forward.5} parent=0 // pred_check
    _
  $region11: #{convnet_forward.5} parent=0 // pred_check_branch
    %15 = sbr.rel (0) target = $region13
  $region12: #{convnet_forward.5} parent=0 // pred_region
    _
  $region13: #{convnet_forward.5} parent=0 // pred_fallthru
    _
  // Predicated region
  $region14: #{convnet_forward.5} parent=0 // pred_check
    _
  $region15: #{convnet_forward.5} parent=0 // pred_check_branch
    %17 = sbr.rel (0) target = $region17
  $region16: #{convnet_forward.5} parent=0 // pred_region
    _
  $region17: #{convnet_forward.5} parent=0 // pred_fallthru
    _
  // Predicated region
  $region18: #{convnet_forward.5} parent=0 // pred_check
    _
  $region19: #{convnet_forward.5} parent=0 // pred_check_branch
    %19 = sbr.rel (0) target = $region21
  $region20: #{convnet_forward.5} parent=0 // pred_region
    _
  $region21: #{convnet_forward.5} parent=0 // pred_fallthru
    _
  %v21 = vld [vmem:[%s0] sm:$0xff]
  %v22 = vld [vmem:[%s0 + $0x8] sm:$0xff]
  %v23 = vld [vmem:[%s0 + $0x10] sm:$0xff]
  %v24 = vld [vmem:[%s0 + $0x18] sm:$0xff]
  %v25 = vld [vmem:[%s0 + $0x20] sm:$0xff]
  %v26 = vld [vmem:[%s0 + $0x28] sm:$0xff]
  %v27 = vld [vmem:[%s0 + $0x30] sm:$0xf]
  %v28 = vld [vmem:[%s0 + $0x34] sm:$0xff]
  %v29 = vld [vmem:[%s0 + $0x3c] sm:$0xff]
  %v30 = vld [vmem:[%s0 + $0x44] sm:$0xff]
  %v31 = vld [vmem:[%s0 + $0x4c] sm:$0xff]
  %v32 = vld [vmem:[%s0 + $0x54] sm:$0xff]
  %v33 = vld [vmem:[%s0 + $0x5c] sm:$0xff]
  %v34 = vld [vmem:[%s0 + $0x64] sm:$0xf]
  %v35 = vld [vmem:[%s1] sm:$0xf]
  %v36 = vld [vmem:[%s1 + $0x4] sm:$0xf]
  %v37 = vld [vmem:[%s1 + $0x8] sm:$0xf]
  %v38 = vld [vmem:[%s1 + $0xc] sm:$0xf]
  %v39 = vld [vmem:[%s1 + $0x10] sm:$0xf]
  %v40 = vld [vmem:[%s1 + $0x14] sm:$0xf]
  %v41 = vld [vmem:[%s1 + $0x18] sm:$0xf]
  %v42 = vld [vmem:[%s1 + $0x1c] sm:$0xf]
  %v43 = vld [vmem:[%s1 + $0x20] sm:$0xf]
  %v44 = vld [vmem:[%s1 + $0x24] sm:$0xf]
  %v45 = vld [vmem:[%s1 + $0x28] sm:$0xf]
  %v46 = vld [vmem:[%s1 + $0x2c] sm:$0xf]
  %v47 = vld [vmem:[%s1 + $0x30] sm:$0xf]
  %v48 = vld [vmem:[%s1 + $0x34] sm:$0xf]
  %v49 = vld [vmem:[%s1 + $0x38] sm:$0xf]
  %v50 = vld [vmem:[%s1 + $0x3c] sm:$0xf]
  %v51 = vld [vmem:[%s1 + $0x40] sm:$0xf]
  %v52 = vld [vmem:[%s1 + $0x44] sm:$0xf]
  %v53 = vld [vmem:[%s1 + $0x48] sm:$0xf]
  %v54 = vld [vmem:[%s1 + $0x4c] sm:$0xf]
  %v55 = vld [vmem:[%s1 + $0x50] sm:$0xf]
  %v56 = vld [vmem:[%s1 + $0x54] sm:$0xf]
  %v57 = vld [vmem:[%s1 + $0x58] sm:$0xf]
  %v58 = vld [vmem:[%s1 + $0x5c] sm:$0xf]
  %v59 = vld [vmem:[%s1 + $0x60] sm:$0xf]
  %v60 = vld [vmem:[%s1 + $0x64] sm:$0xf]
  %v61 = vld [vmem:[%s1 + $0x68] sm:$0xf]
  %v62 = vld [vmem:[%s1 + $0x6c] sm:$0xf]
  %v63 = vld [vmem:[%s1 + $0x70] sm:$0xf]
  %v64 = vld [vmem:[%s1 + $0x74] sm:$0xf]
  %v65 = vld [vmem:[%s1 + $0x78] sm:$0xf]
  %v66 = vld [vmem:[%s1 + $0x7c] sm:$0xf]
  %v67 = vld [vmem:[%s1 + $0x80] sm:$0xf]
  %v68 = vld [vmem:[%s1 + $0x84] sm:$0xf]
  %v69 = vld [vmem:[%s1 + $0x88] sm:$0xf]
  %v70 = vld [vmem:[%s1 + $0x8c] sm:$0xf]
  %v71 = vld [vmem:[%s1 + $0x90] sm:$0xf]
  %v72 = vld [vmem:[%s1 + $0x94] sm:$0xf]
  %v73 = vld [vmem:[%s1 + $0x98] sm:$0xf]
  %v74 = vld [vmem:[%s1 + $0x9c] sm:$0xf]
  %v75 = vld [vmem:[%s1 + $0xa0] sm:$0xf]
  %v76 = vld [vmem:[%s1 + $0xa4] sm:$0xf]
  %v77 = vld [vmem:[%s1 + $0xa8] sm:$0xf]
  %v78 = vld [vmem:[%s1 + $0xac] sm:$0xf]
  %v79 = vld [vmem:[%s1 + $0xb0] sm:$0xf]
  %v80 = vld [vmem:[%s1 + $0xb4] sm:$0xf]
  %v81 = vld [vmem:[%s1 + $0xb8] sm:$0xf]
  %v82 = vld [vmem:[%s1 + $0xbc] sm:$0xf]
  %v83 = vld [vmem:[%s1 + $0xc0] sm:$0xf]
  %v84 = vld [vmem:[%s1 + $0xc4] sm:$0xf]
  %v85 = vld [vmem:[%s1 + $0xc8] sm:$0xf]
  %v86 = vld [vmem:[%s1 + $0xcc] sm:$0xf]
  %v87 = vld [vmem:[%s1 + $0xd0] sm:$0xf]
  %v88 = vld [vmem:[%s1 + $0xd4] sm:$0xf]
  %v89 = vld [vmem:[%s1 + $0xd8] sm:$0xf]
  %v90 = vld [vmem:[%s1 + $0xdc] sm:$0xf]
  %v91 = vld [vmem:[%s1 + $0xe0] sm:$0xf]
  %v92 = vld [vmem:[%s1 + $0xe4] sm:$0xf]
  %v93 = vld [vmem:[%s1 + $0xe8] sm:$0xf]
  %v94 = vld [vmem:[%s1 + $0xec] sm:$0xf]
  %v95 = vld [vmem:[%s1 + $0xf0] sm:$0xf]
  %v96 = vld [vmem:[%s1 + $0xf4] sm:$0xf]
  %v97 = vld [vmem:[%s1 + $0xf8] sm:$0xf]
  %v98 = vld [vmem:[%s1 + $0xfc] sm:$0xf]
  %v99 = vld [vmem:[%s1 + $0x100] sm:$0xf]
  %v100 = vld [vmem:[%s1 + $0x104] sm:$0xf]
  %v101 = vld [vmem:[%s1 + $0x108] sm:$0xf]
  %v102 = vld [vmem:[%s1 + $0x10c] sm:$0xf]
  %v103 = vld [vmem:[%s1 + $0x110] sm:$0xf]
  %v104 = vld [vmem:[%s1 + $0x114] sm:$0xf]
  %v105 = vld [vmem:[%s1 + $0x118] sm:$0xf]
  %v106 = vld [vmem:[%s1 + $0x11c] sm:$0xf]
  %v107 = vld [vmem:[%s1 + $0x120] sm:$0xf]
  %v108 = vld [vmem:[%s1 + $0x124] sm:$0xf]
  %v109 = vld [vmem:[%s1 + $0x128] sm:$0xf]
  %v110 = vld [vmem:[%s1 + $0x12c] sm:$0xf]
  %v111 = vld [vmem:[%s1 + $0x130] sm:$0xf]
  %v112 = vld [vmem:[%s1 + $0x134] sm:$0xf]
  %v113 = vld [vmem:[%s1 + $0x138] sm:$0xf]
  %v114 = vld [vmem:[%s1 + $0x13c] sm:$0xf]
  %v115 = vld [vmem:[%s1 + $0x140] sm:$0xf]
  %v116 = vld [vmem:[%s1 + $0x144] sm:$0xf]
  %v117 = vld [vmem:[%s1 + $0x148] sm:$0xf]
  %v118 = vld [vmem:[%s1 + $0x14c] sm:$0xf]
  %v119 = vld [vmem:[%s1 + $0x150] sm:$0xf]
  %v120 = vld [vmem:[%s1 + $0x154] sm:$0xf]
  %v121 = vld [vmem:[%s1 + $0x158] sm:$0xf]
  %v122 = vld [vmem:[%s1 + $0x15c] sm:$0xf]
  %v123 = vld [vmem:[%s1 + $0x160] sm:$0xf]
  %v124 = vld [vmem:[%s1 + $0x164] sm:$0xf]
  %v125 = vld [vmem:[%s1 + $0x168] sm:$0xf]
  %v126 = vld [vmem:[%s1 + $0x16c] sm:$0xf]
  %v127 = vld [vmem:[%s1 + $0x170] sm:$0xf]
  %v128 = vld [vmem:[%s1 + $0x174] sm:$0xf]
  %v129 = vld [vmem:[%s1 + $0x178] sm:$0xf]
  %v130 = vld [vmem:[%s1 + $0x17c] sm:$0xf]
  %v131 = vld [vmem:[%s1 + $0x180] sm:$0xf]
  %v132 = vld [vmem:[%s1 + $0x184] sm:$0xf]
  %v133 = vld [vmem:[%s1 + $0x188] sm:$0xf]
  %v134 = vld [vmem:[%s1 + $0x18c] sm:$0xf]
  %v135 = vld [vmem:[%s1 + $0x190] sm:$0xf]
  %v136 = vld [vmem:[%s1 + $0x194] sm:$0xf]
  %v137 = vld [vmem:[%s1 + $0x198] sm:$0xf]
  %v138 = vld [vmem:[%s1 + $0x19c] sm:$0xf]
  %v139 = vld [vmem:[%s1 + $0x1a0] sm:$0xf]
  %v140 = vld [vmem:[%s1 + $0x1a4] sm:$0xf]
  %v141 = vld [vmem:[%s1 + $0x1a8] sm:$0xf]
  %v142 = vld [vmem:[%s1 + $0x1ac] sm:$0xf]
  %v143 = vld [vmem:[%s1 + $0x1b0] sm:$0xf]
  %v144 = vld [vmem:[%s1 + $0x1b4] sm:$0xf]
  %v145 = vld [vmem:[%s1 + $0x1b8] sm:$0xf]
  %v146 = vld [vmem:[%s1 + $0x1bc] sm:$0xf]
  %v147 = vld [vmem:[%s1 + $0x1c0] sm:$0xf]
  %v148 = vld [vmem:[%s1 + $0x1c4] sm:$0xf]
  %v149 = vld [vmem:[%s1 + $0x1c8] sm:$0xf]
  %v150 = vld [vmem:[%s1 + $0x1cc] sm:$0xf]
  %v151 = vld [vmem:[%s1 + $0x1d0] sm:$0xf]
  %v152 = vld [vmem:[%s1 + $0x1d4] sm:$0xf]
  %v153 = vld [vmem:[%s1 + $0x1d8] sm:$0xf]
  %v154 = vld [vmem:[%s1 + $0x1dc] sm:$0xf]
  %v155 = vld [vmem:[%s1 + $0x1e0] sm:$0xf]
  %v156 = vld [vmem:[%s1 + $0x1e4] sm:$0xf]
  %v157 = vld [vmem:[%s1 + $0x1e8] sm:$0xf]
  %v158 = vld [vmem:[%s1 + $0x1ec] sm:$0xf]
  %v159 = vld [vmem:[%s1 + $0x1f0] sm:$0xf]
  %v160 = vld [vmem:[%s1 + $0x1f4] sm:$0xf]
  %v161 = vld [vmem:[%s1 + $0x1f8] sm:$0xf]
  %v162 = vld [vmem:[%s1 + $0x1fc] sm:$0xf]
  %v163 = vld [vmem:[%s1 + $0x200] sm:$0xf]
  %v164 = vld [vmem:[%s1 + $0x204] sm:$0xf]
  %v165 = vld [vmem:[%s1 + $0x208] sm:$0xf]
  %v166 = vld [vmem:[%s1 + $0x20c] sm:$0xf]
  %v167 = vld [vmem:[%s1 + $0x210] sm:$0xf]
  %v168 = vld [vmem:[%s1 + $0x214] sm:$0xf]
  %v169 = vld [vmem:[%s1 + $0x218] sm:$0xf]
  %v170 = vld [vmem:[%s1 + $0x21c] sm:$0xf]
  %v171 = vld [vmem:[%s1 + $0x220] sm:$0xf]
  %v172 = vld [vmem:[%s1 + $0x224] sm:$0xf]
  %v173 = vld [vmem:[%s1 + $0x228] sm:$0xf]
  %v174 = vld [vmem:[%s1 + $0x22c] sm:$0xf]
  %v175 = vld [vmem:[%s1 + $0x230] sm:$0xf]
  %v176 = vld [vmem:[%s1 + $0x234] sm:$0xf]
  %v177 = vld [vmem:[%s1 + $0x238] sm:$0xf]
  %v178 = vld [vmem:[%s1 + $0x23c] sm:$0xf]
  %v179 = vld [vmem:[%s1 + $0x240] sm:$0xf]
  %v180 = vld [vmem:[%s1 + $0x244] sm:$0xf]
  %v181 = vld [vmem:[%s1 + $0x248] sm:$0xf]
  %v182 = vld [vmem:[%s1 + $0x24c] sm:$0xf]
  %v183 = vld [vmem:[%s1 + $0x250] sm:$0xf]
  %v184 = vld [vmem:[%s1 + $0x254] sm:$0xf]
  %v185 = vld [vmem:[%s1 + $0x258] sm:$0xf]
  %v186 = vld [vmem:[%s1 + $0x25c] sm:$0xf]
  %v187 = vld [vmem:[%s1 + $0x260] sm:$0xf]
  %v188 = vld [vmem:[%s1 + $0x264] sm:$0xf]
  %v189 = vld [vmem:[%s1 + $0x268] sm:$0xf]
  %v190 = vld [vmem:[%s1 + $0x26c] sm:$0xf]
  %v191 = vld [vmem:[%s1 + $0x270] sm:$0xf]
  %v192 = vld [vmem:[%s1 + $0x274] sm:$0xf]
  %v193 = vld [vmem:[%s1 + $0x278] sm:$0xf]
  %v194 = vld [vmem:[%s1 + $0x27c] sm:$0xf]
  %v195 = vld [vmem:[%s1 + $0x280] sm:$0xf]
  %v196 = vld [vmem:[%s1 + $0x284] sm:$0xf]
  %v197 = vld [vmem:[%s1 + $0x288] sm:$0xf]
  %v198 = vld [vmem:[%s1 + $0x28c] sm:$0xf]
  %v199 = vld [vmem:[%s1 + $0x290] sm:$0xf]
  %v200 = vld [vmem:[%s1 + $0x294] sm:$0xf]
  %v201 = vld [vmem:[%s1 + $0x298] sm:$0xf]
  %v202 = vld [vmem:[%s1 + $0x29c] sm:$0xf]
  %v203 = vld [vmem:[%s1 + $0x2a0] sm:$0xf]
  %v204 = vld [vmem:[%s1 + $0x2a4] sm:$0xf]
  %v205 = vld [vmem:[%s1 + $0x2a8] sm:$0xf]
  %v206 = vld [vmem:[%s1 + $0x2ac] sm:$0xf]
  %v207 = vld [vmem:[%s1 + $0x2b0] sm:$0xf]
  %v208 = vld [vmem:[%s1 + $0x2b4] sm:$0xf]
  %v209 = vld [vmem:[%s1 + $0x2b8] sm:$0xf]
  %v210 = vld [vmem:[%s1 + $0x2bc] sm:$0xf]
  %v211 = vld [vmem:[%s1 + $0x2c0] sm:$0xf]
  %v212 = vld [vmem:[%s1 + $0x2c4] sm:$0xf]
  %v213 = vld [vmem:[%s1 + $0x2c8] sm:$0xf]
  %v214 = vld [vmem:[%s1 + $0x2cc] sm:$0xf]
  %v215 = vld [vmem:[%s1 + $0x2d0] sm:$0xf]
  %v216 = vld [vmem:[%s1 + $0x2d4] sm:$0xf]
  %v217 = vld [vmem:[%s1 + $0x2d8] sm:$0xf]
  %v218 = vld [vmem:[%s1 + $0x2dc] sm:$0xf]
  %v219 = vld [vmem:[%s1 + $0x2e0] sm:$0xf]
  %v220 = vld [vmem:[%s1 + $0x2e4] sm:$0xf]
  %v221 = vld [vmem:[%s1 + $0x2e8] sm:$0xf]
  %v222 = vld [vmem:[%s1 + $0x2ec] sm:$0xf]
  %v223 = vld [vmem:[%s1 + $0x2f0] sm:$0xf]
  %v224 = vld [vmem:[%s1 + $0x2f4] sm:$0xf]
  %v225 = vld [vmem:[%s1 + $0x2f8] sm:$0xf]
  %v226 = vld [vmem:[%s1 + $0x2fc] sm:$0xf]
  %v227 = vld [vmem:[%s1 + $0x300] sm:$0xf]
  %v228 = vld [vmem:[%s1 + $0x304] sm:$0xf]
  %v229 = vld [vmem:[%s1 + $0x308] sm:$0xf]
  %v230 = vld [vmem:[%s1 + $0x30c] sm:$0xf]
  %v231 = vld [vmem:[%s2] sm:$0x1]
  %v233 = vlaneseq
  %v234 = vshrl.u32 %v233, 7
  %v235 = vsub.s32 0, %v234
  %v236 = vrot.slane %v231, %v235
  %v252 = vunpack.c.l.b16 %v21
  %v253 = vunpack.c.h.b16 %v21
  %v254 = vunpack.c.l.b16 %v22
  %v255 = vunpack.c.h.b16 %v22
  %v256 = vunpack.c.l.b16 %v23
  %v257 = vunpack.c.h.b16 %v23
  %v258 = vunpack.c.l.b16 %v24
  %v259 = vunpack.c.h.b16 %v24
  %v260 = vunpack.c.l.b16 %v25
  %v261 = vunpack.c.h.b16 %v25
  %v262 = vunpack.c.l.b16 %v26
  %v263 = vunpack.c.h.b16 %v26
  %v264 = vunpack.c.l.b16 %v27
  %v265 = vunpack.c.l.b16 %v28
  %v266 = vunpack.c.h.b16 %v28
  %v267 = vunpack.c.l.b16 %v29
  %v268 = vunpack.c.h.b16 %v29
  %v269 = vunpack.c.l.b16 %v30
  %v270 = vunpack.c.h.b16 %v30
  %v271 = vunpack.c.l.b16 %v31
  %v272 = vunpack.c.h.b16 %v31
  %v273 = vunpack.c.l.b16 %v32
  %v274 = vunpack.c.h.b16 %v32
  %v275 = vunpack.c.l.b16 %v33
  %v276 = vunpack.c.h.b16 %v33
  %v277 = vunpack.c.l.b16 %v34
  %v278 = vpack.c.b16 %v265, %v252
  %v279 = vpack.c.b16 %v266, %v253
  %v280 = vpack.c.b16 %v267, %v254
  %v281 = vpack.c.b16 %v268, %v255
  %v282 = vpack.c.b16 %v269, %v256
  %v283 = vpack.c.b16 %v270, %v257
  %v284 = vpack.c.b16 %v271, %v258
  %v285 = vpack.c.b16 %v272, %v259
  %v286 = vpack.c.b16 %v273, %v260
  %v287 = vpack.c.b16 %v274, %v261
  %v288 = vpack.c.b16 %v275, %v262
  %v289 = vpack.c.b16 %v276, %v263
  %v290 = vpack.c.b16 %v277, %v264
  %v499 = vunpack.c.l.b16 %v35
  %v500 = vunpack.c.l.b16 %v36
  %v501 = vunpack.c.l.b16 %v37
  %v502 = vunpack.c.l.b16 %v38
  %v503 = vunpack.c.l.b16 %v39
  %v504 = vunpack.c.l.b16 %v40
  %v505 = vunpack.c.l.b16 %v41
  %v506 = vunpack.c.l.b16 %v42
  %v507 = vunpack.c.l.b16 %v43
  %v508 = vunpack.c.l.b16 %v44
  %v509 = vunpack.c.l.b16 %v45
  %v510 = vunpack.c.l.b16 %v46
  %v511 = vunpack.c.l.b16 %v47
  %v512 = vunpack.c.l.b16 %v48
  %v513 = vunpack.c.l.b16 %v49
  %v514 = vunpack.c.l.b16 %v50
  %v515 = vunpack.c.l.b16 %v51
  %v516 = vunpack.c.l.b16 %v52
  %v517 = vunpack.c.l.b16 %v53
  %v518 = vunpack.c.l.b16 %v54
  %v519 = vunpack.c.l.b16 %v55
  %v520 = vunpack.c.l.b16 %v56
  %v521 = vunpack.c.l.b16 %v57
  %v522 = vunpack.c.l.b16 %v58
  %v523 = vunpack.c.l.b16 %v59
  %v524 = vunpack.c.l.b16 %v60
  %v525 = vunpack.c.l.b16 %v61
  %v526 = vunpack.c.l.b16 %v62
  %v527 = vunpack.c.l.b16 %v63
  %v528 = vunpack.c.l.b16 %v64
  %v529 = vunpack.c.l.b16 %v65
  %v530 = vunpack.c.l.b16 %v66
  %v531 = vunpack.c.l.b16 %v67
  %v532 = vunpack.c.l.b16 %v68
  %v533 = vunpack.c.l.b16 %v69
  %v534 = vunpack.c.l.b16 %v70
  %v535 = vunpack.c.l.b16 %v71
  %v536 = vunpack.c.l.b16 %v72
  %v537 = vunpack.c.l.b16 %v73
  %v538 = vunpack.c.l.b16 %v74
  %v539 = vunpack.c.l.b16 %v75
  %v540 = vunpack.c.l.b16 %v76
  %v541 = vunpack.c.l.b16 %v77
  %v542 = vunpack.c.l.b16 %v78
  %v543 = vunpack.c.l.b16 %v79
  %v544 = vunpack.c.l.b16 %v80
  %v545 = vunpack.c.l.b16 %v81
  %v546 = vunpack.c.l.b16 %v82
  %v547 = vunpack.c.l.b16 %v83
  %v548 = vunpack.c.l.b16 %v84
  %v549 = vunpack.c.l.b16 %v85
  %v550 = vunpack.c.l.b16 %v86
  %v551 = vunpack.c.l.b16 %v87
  %v552 = vunpack.c.l.b16 %v88
  %v553 = vunpack.c.l.b16 %v89
  %v554 = vunpack.c.l.b16 %v90
  %v555 = vunpack.c.l.b16 %v91
  %v556 = vunpack.c.l.b16 %v92
  %v557 = vunpack.c.l.b16 %v93
  %v558 = vunpack.c.l.b16 %v94
  %v559 = vunpack.c.l.b16 %v95
  %v560 = vunpack.c.l.b16 %v96
  %v561 = vunpack.c.l.b16 %v97
  %v562 = vunpack.c.l.b16 %v98
  %v563 = vunpack.c.l.b16 %v99
  %v564 = vunpack.c.l.b16 %v100
  %v565 = vunpack.c.l.b16 %v101
  %v566 = vunpack.c.l.b16 %v102
  %v567 = vunpack.c.l.b16 %v103
  %v568 = vunpack.c.l.b16 %v104
  %v569 = vunpack.c.l.b16 %v105
  %v570 = vunpack.c.l.b16 %v106
  %v571 = vunpack.c.l.b16 %v107
  %v572 = vunpack.c.l.b16 %v108
  %v573 = vunpack.c.l.b16 %v109
  %v574 = vunpack.c.l.b16 %v110
  %v575 = vunpack.c.l.b16 %v111
  %v576 = vunpack.c.l.b16 %v112
  %v577 = vunpack.c.l.b16 %v113
  %v578 = vunpack.c.l.b16 %v114
  %v579 = vunpack.c.l.b16 %v115
  %v580 = vunpack.c.l.b16 %v116
  %v581 = vunpack.c.l.b16 %v117
  %v582 = vunpack.c.l.b16 %v118
  %v583 = vunpack.c.l.b16 %v119
  %v584 = vunpack.c.l.b16 %v120
  %v585 = vunpack.c.l.b16 %v121
  %v586 = vunpack.c.l.b16 %v122
  %v587 = vunpack.c.l.b16 %v123
  %v588 = vunpack.c.l.b16 %v124
  %v589 = vunpack.c.l.b16 %v125
  %v590 = vunpack.c.l.b16 %v126
  %v591 = vunpack.c.l.b16 %v127
  %v592 = vunpack.c.l.b16 %v128
  %v593 = vunpack.c.l.b16 %v129
  %v594 = vunpack.c.l.b16 %v130
  %v595 = vunpack.c.l.b16 %v131
  %v596 = vunpack.c.l.b16 %v132
  %v597 = vunpack.c.l.b16 %v133
  %v598 = vunpack.c.l.b16 %v134
  %v599 = vunpack.c.l.b16 %v135
  %v600 = vunpack.c.l.b16 %v136
  %v601 = vunpack.c.l.b16 %v137
  %v602 = vunpack.c.l.b16 %v138
  %v603 = vunpack.c.l.b16 %v139
  %v604 = vunpack.c.l.b16 %v140
  %v605 = vunpack.c.l.b16 %v141
  %v606 = vunpack.c.l.b16 %v142
  %v607 = vunpack.c.l.b16 %v143
  %v608 = vunpack.c.l.b16 %v144
  %v609 = vunpack.c.l.b16 %v145
  %v610 = vunpack.c.l.b16 %v146
  %v611 = vunpack.c.l.b16 %v147
  %v612 = vunpack.c.l.b16 %v148
  %v613 = vunpack.c.l.b16 %v149
  %v614 = vunpack.c.l.b16 %v150
  %v615 = vunpack.c.l.b16 %v151
  %v616 = vunpack.c.l.b16 %v152
  %v617 = vunpack.c.l.b16 %v153
  %v618 = vunpack.c.l.b16 %v154
  %v619 = vunpack.c.l.b16 %v155
  %v620 = vunpack.c.l.b16 %v156
  %v621 = vunpack.c.l.b16 %v157
  %v622 = vunpack.c.l.b16 %v158
  %v623 = vunpack.c.l.b16 %v159
  %v624 = vunpack.c.l.b16 %v160
  %v625 = vunpack.c.l.b16 %v161
  %v626 = vunpack.c.l.b16 %v162
  %v627 = vunpack.c.l.b16 %v163
  %v628 = vunpack.c.l.b16 %v164
  %v629 = vunpack.c.l.b16 %v165
  %v630 = vunpack.c.l.b16 %v166
  %v631 = vunpack.c.l.b16 %v167
  %v632 = vunpack.c.l.b16 %v168
  %v633 = vunpack.c.l.b16 %v169
  %v634 = vunpack.c.l.b16 %v170
  %v635 = vunpack.c.l.b16 %v171
  %v636 = vunpack.c.l.b16 %v172
  %v637 = vunpack.c.l.b16 %v173
  %v638 = vunpack.c.l.b16 %v174
  %v639 = vunpack.c.l.b16 %v175
  %v640 = vunpack.c.l.b16 %v176
  %v641 = vunpack.c.l.b16 %v177
  %v642 = vunpack.c.l.b16 %v178
  %v643 = vunpack.c.l.b16 %v179
  %v644 = vunpack.c.l.b16 %v180
  %v645 = vunpack.c.l.b16 %v181
  %v646 = vunpack.c.l.b16 %v182
  %v647 = vunpack.c.l.b16 %v183
  %v648 = vunpack.c.l.b16 %v184
  %v649 = vunpack.c.l.b16 %v185
  %v650 = vunpack.c.l.b16 %v186
  %v651 = vunpack.c.l.b16 %v187
  %v652 = vunpack.c.l.b16 %v188
  %v653 = vunpack.c.l.b16 %v189
  %v654 = vunpack.c.l.b16 %v190
  %v655 = vunpack.c.l.b16 %v191
  %v656 = vunpack.c.l.b16 %v192
  %v657 = vunpack.c.l.b16 %v193
  %v658 = vunpack.c.l.b16 %v194
  %v659 = vunpack.c.l.b16 %v195
  %v660 = vunpack.c.l.b16 %v196
  %v661 = vunpack.c.l.b16 %v197
  %v662 = vunpack.c.l.b16 %v198
  %v663 = vunpack.c.l.b16 %v199
  %v664 = vunpack.c.l.b16 %v200
  %v665 = vunpack.c.l.b16 %v201
  %v666 = vunpack.c.l.b16 %v202
  %v667 = vunpack.c.l.b16 %v203
  %v668 = vunpack.c.l.b16 %v204
  %v669 = vunpack.c.l.b16 %v205
  %v670 = vunpack.c.l.b16 %v206
  %v671 = vunpack.c.l.b16 %v207
  %v672 = vunpack.c.l.b16 %v208
  %v673 = vunpack.c.l.b16 %v209
  %v674 = vunpack.c.l.b16 %v210
  %v675 = vunpack.c.l.b16 %v211
  %v676 = vunpack.c.l.b16 %v212
  %v677 = vunpack.c.l.b16 %v213
  %v678 = vunpack.c.l.b16 %v214
  %v679 = vunpack.c.l.b16 %v215
  %v680 = vunpack.c.l.b16 %v216
  %v681 = vunpack.c.l.b16 %v217
  %v682 = vunpack.c.l.b16 %v218
  %v683 = vunpack.c.l.b16 %v219
  %v684 = vunpack.c.l.b16 %v220
  %v685 = vunpack.c.l.b16 %v221
  %v686 = vunpack.c.l.b16 %v222
  %v687 = vunpack.c.l.b16 %v223
  %v688 = vunpack.c.l.b16 %v224
  %v689 = vunpack.c.l.b16 %v225
  %v690 = vunpack.c.l.b16 %v226
  %v691 = vunpack.c.l.b16 %v227
  %v692 = vunpack.c.l.b16 %v228
  %v693 = vunpack.c.l.b16 %v229
  %v694 = vunpack.c.l.b16 %v230
  %v695 = vpack.c.b16 %v500, %v499
  %v696 = vpack.c.b16 %v502, %v501
  %v697 = vpack.c.b16 %v504, %v503
  %v698 = vpack.c.b16 %v506, %v505
  %v699 = vpack.c.b16 %v508, %v507
  %v700 = vpack.c.b16 %v510, %v509
  %v701 = vpack.c.b16 %v512, %v511
  %v702 = vpack.c.b16 %v514, %v513
  %v703 = vpack.c.b16 %v516, %v515
  %v704 = vpack.c.b16 %v518, %v517
  %v705 = vpack.c.b16 %v520, %v519
  %v706 = vpack.c.b16 %v522, %v521
  %v707 = vpack.c.b16 %v524, %v523
  %v708 = vpack.c.b16 %v526, %v525
  %v709 = vpack.c.b16 %v528, %v527
  %v710 = vpack.c.b16 %v530, %v529
  %v711 = vpack.c.b16 %v532, %v531
  %v712 = vpack.c.b16 %v534, %v533
  %v713 = vpack.c.b16 %v536, %v535
  %v714 = vpack.c.b16 %v538, %v537
  %v715 = vpack.c.b16 %v540, %v539
  %v716 = vpack.c.b16 %v542, %v541
  %v717 = vpack.c.b16 %v544, %v543
  %v718 = vpack.c.b16 %v546, %v545
  %v719 = vpack.c.b16 %v548, %v547
  %v720 = vpack.c.b16 %v550, %v549
  %v721 = vpack.c.b16 %v552, %v551
  %v722 = vpack.c.b16 %v554, %v553
  %v723 = vpack.c.b16 %v556, %v555
  %v724 = vpack.c.b16 %v558, %v557
  %v725 = vpack.c.b16 %v560, %v559
  %v726 = vpack.c.b16 %v562, %v561
  %v727 = vpack.c.b16 %v564, %v563
  %v728 = vpack.c.b16 %v566, %v565
  %v729 = vpack.c.b16 %v568, %v567
  %v730 = vpack.c.b16 %v570, %v569
  %v731 = vpack.c.b16 %v572, %v571
  %v732 = vpack.c.b16 %v574, %v573
  %v733 = vpack.c.b16 %v576, %v575
  %v734 = vpack.c.b16 %v578, %v577
  %v735 = vpack.c.b16 %v580, %v579
  %v736 = vpack.c.b16 %v582, %v581
  %v737 = vpack.c.b16 %v584, %v583
  %v738 = vpack.c.b16 %v586, %v585
  %v739 = vpack.c.b16 %v588, %v587
  %v740 = vpack.c.b16 %v590, %v589
  %v741 = vpack.c.b16 %v592, %v591
  %v742 = vpack.c.b16 %v594, %v593
  %v743 = vpack.c.b16 %v596, %v595
  %v744 = vpack.c.b16 %v598, %v597
  %v745 = vpack.c.b16 %v600, %v599
  %v746 = vpack.c.b16 %v602, %v601
  %v747 = vpack.c.b16 %v604, %v603
  %v748 = vpack.c.b16 %v606, %v605
  %v749 = vpack.c.b16 %v608, %v607
  %v750 = vpack.c.b16 %v610, %v609
  %v751 = vpack.c.b16 %v612, %v611
  %v752 = vpack.c.b16 %v614, %v613
  %v753 = vpack.c.b16 %v616, %v615
  %v754 = vpack.c.b16 %v618, %v617
  %v755 = vpack.c.b16 %v620, %v619
  %v756 = vpack.c.b16 %v622, %v621
  %v757 = vpack.c.b16 %v624, %v623
  %v758 = vpack.c.b16 %v626, %v625
  %v759 = vpack.c.b16 %v628, %v627
  %v760 = vpack.c.b16 %v630, %v629
  %v761 = vpack.c.b16 %v632, %v631
  %v762 = vpack.c.b16 %v634, %v633
  %v763 = vpack.c.b16 %v636, %v635
  %v764 = vpack.c.b16 %v638, %v637
  %v765 = vpack.c.b16 %v640, %v639
  %v766 = vpack.c.b16 %v642, %v641
  %v767 = vpack.c.b16 %v644, %v643
  %v768 = vpack.c.b16 %v646, %v645
  %v769 = vpack.c.b16 %v648, %v647
  %v770 = vpack.c.b16 %v650, %v649
  %v771 = vpack.c.b16 %v652, %v651
  %v772 = vpack.c.b16 %v654, %v653
  %v773 = vpack.c.b16 %v656, %v655
  %v774 = vpack.c.b16 %v658, %v657
  %v775 = vpack.c.b16 %v660, %v659
  %v776 = vpack.c.b16 %v662, %v661
  %v777 = vpack.c.b16 %v664, %v663
  %v778 = vpack.c.b16 %v666, %v665
  %v779 = vpack.c.b16 %v668, %v667
  %v780 = vpack.c.b16 %v670, %v669
  %v781 = vpack.c.b16 %v672, %v671
  %v782 = vpack.c.b16 %v674, %v673
  %v783 = vpack.c.b16 %v676, %v675
  %v784 = vpack.c.b16 %v678, %v677
  %v785 = vpack.c.b16 %v680, %v679
  %v786 = vpack.c.b16 %v682, %v681
  %v787 = vpack.c.b16 %v684, %v683
  %v788 = vpack.c.b16 %v686, %v685
  %v789 = vpack.c.b16 %v688, %v687
  %v790 = vpack.c.b16 %v690, %v689
  %v791 = vpack.c.b16 %v692, %v691
  %v792 = vpack.c.b16 %v694, %v693
  %vm891 = vcmask 261120
  %v893 = vsel %vm891, %v290, 0
  %895 = vmatprep.subr.bf16.mxu0 0
  %896 = vmatpush1.bf16.msra.mxu0 %v695
  %897 = vmatprep.subr.bf16.mxu0 0
  %898 = vmatpush1.bf16.msra.mxu0 %v696
  %899 = vmatprep.subr.bf16.mxu0 0
  %900 = vmatpush1.bf16.msra.mxu0 %v697
  %901 = vmatprep.subr.bf16.mxu0 0
  %902 = vmatpush1.bf16.msra.mxu0 %v698
  %903 = vmatprep.subr.bf16.mxu0 0
  %904 = vmatpush1.bf16.msra.mxu0 %v699
  %905 = vmatprep.subr.bf16.mxu0 0
  %906 = vmatpush1.bf16.msra.mxu0 %v700
  %907 = vmatprep.subr.bf16.mxu0 0
  %908 = vmatpush1.bf16.msra.mxu0 %v701
  %909 = vmatprep.subr.bf16.mxu0 0
  %910 = vmatpush1.bf16.msra.mxu0 %v702
  %911 = vmatprep.subr.bf16.mxu0 0
  %912 = vmatpush1.bf16.msra.mxu0 %v703
  %913 = vmatprep.subr.bf16.mxu0 0
  %914 = vmatpush1.bf16.msra.mxu0 %v704
  %915 = vmatprep.subr.bf16.mxu0 0
  %916 = vmatpush1.bf16.msra.mxu0 %v705
  %917 = vmatprep.subr.bf16.mxu0 0
  %918 = vmatpush1.bf16.msra.mxu0 %v706
  %919 = vmatprep.subr.bf16.mxu0 0
  %920 = vmatpush1.bf16.msra.mxu0 %v707
  %921 = vmatprep.subr.bf16.mxu0 0
  %922 = vmatpush1.bf16.msra.mxu0 %v708
  %923 = vmatprep.subr.bf16.mxu0 0
  %924 = vmatpush1.bf16.msra.mxu0 %v709
  %925 = vmatprep.subr.bf16.mxu0 0
  %926 = vmatpush1.bf16.msra.mxu0 %v710
  %927 = vmatprep.mubr.bf16.mxu0 %v279
  %928 = vmatmul.mubr.bf16.gmra.mrb[0].mxu0 %v278
  %v929 = vpop.f32.mrb[0].mxu0
  %v930 = vadd.f32 %v236, %v929
  %v931 = vpop.f32.mrb[0].mxu0
  %v932 = vpop.f32.mrb[0].mxu0
  %v933 = vadd.f32 %v236, %v932
  %v934 = vpop.f32.mrb[0].mxu0
  %935 = vdwg.mxu0
  %936 = vmatprep.subr.bf16.mxu0 0
  %937 = vmatpush1.bf16.msra.mxu0 %v711
  %938 = vmatprep.subr.bf16.mxu0 0
  %939 = vmatpush1.bf16.msra.mxu0 %v712
  %940 = vmatprep.subr.bf16.mxu0 0
  %941 = vmatpush1.bf16.msra.mxu0 %v713
  %942 = vmatprep.subr.bf16.mxu0 0
  %943 = vmatpush1.bf16.msra.mxu0 %v714
  %944 = vmatprep.subr.bf16.mxu0 0
  %945 = vmatpush1.bf16.msra.mxu0 %v715
  %946 = vmatprep.subr.bf16.mxu0 0
  %947 = vmatpush1.bf16.msra.mxu0 %v716
  %948 = vmatprep.subr.bf16.mxu0 0
  %949 = vmatpush1.bf16.msra.mxu0 %v717
  %950 = vmatprep.subr.bf16.mxu0 0
  %951 = vmatpush1.bf16.msra.mxu0 %v718
  %952 = vmatprep.subr.bf16.mxu0 0
  %953 = vmatpush1.bf16.msra.mxu0 %v719
  %954 = vmatprep.subr.bf16.mxu0 0
  %955 = vmatpush1.bf16.msra.mxu0 %v720
  %956 = vmatprep.subr.bf16.mxu0 0
  %957 = vmatpush1.bf16.msra.mxu0 %v721
  %958 = vmatprep.subr.bf16.mxu0 0
  %959 = vmatpush1.bf16.msra.mxu0 %v722
  %960 = vmatprep.subr.bf16.mxu0 0
  %961 = vmatpush1.bf16.msra.mxu0 %v723
  %962 = vmatprep.subr.bf16.mxu0 0
  %963 = vmatpush1.bf16.msra.mxu0 %v724
  %964 = vmatprep.subr.bf16.mxu0 0
  %965 = vmatpush1.bf16.msra.mxu0 %v725
  %966 = vmatprep.subr.bf16.mxu0 0
  %967 = vmatpush1.bf16.msra.mxu0 %v726
  %968 = vmatprep.mubr.bf16.mxu0 %v281
  %969 = vmatmul.mubr.bf16.gmra.mrb[0].mxu0 %v280
  %v970 = vpop.f32.mrb[0].mxu0
  %v971 = vadd.f32 %v930, %v970
  %v972 = vpop.f32.mrb[0].mxu0
  %v973 = vpop.f32.mrb[0].mxu0
  %v974 = vadd.f32 %v933, %v973
  %v975 = vpop.f32.mrb[0].mxu0
  %976 = vdwg.mxu0
  %977 = vmatprep.subr.bf16.mxu0 0
  %978 = vmatpush1.bf16.msra.mxu0 %v727
  %979 = vmatprep.subr.bf16.mxu0 0
  %980 = vmatpush1.bf16.msra.mxu0 %v728
  %981 = vmatprep.subr.bf16.mxu0 0
  %982 = vmatpush1.bf16.msra.mxu0 %v729
  %983 = vmatprep.subr.bf16.mxu0 0
  %984 = vmatpush1.bf16.msra.mxu0 %v730
  %985 = vmatprep.subr.bf16.mxu0 0
  %986 = vmatpush1.bf16.msra.mxu0 %v731
  %987 = vmatprep.subr.bf16.mxu0 0
  %988 = vmatpush1.bf16.msra.mxu0 %v732
  %989 = vmatprep.subr.bf16.mxu0 0
  %990 = vmatpush1.bf16.msra.mxu0 %v733
  %991 = vmatprep.subr.bf16.mxu0 0
  %992 = vmatpush1.bf16.msra.mxu0 %v734
  %993 = vmatprep.subr.bf16.mxu0 0
  %994 = vmatpush1.bf16.msra.mxu0 %v735
  %995 = vmatprep.subr.bf16.mxu0 0
  %996 = vmatpush1.bf16.msra.mxu0 %v736
  %997 = vmatprep.subr.bf16.mxu0 0
  %998 = vmatpush1.bf16.msra.mxu0 %v737
  %999 = vmatprep.subr.bf16.mxu0 0
  %1000 = vmatpush1.bf16.msra.mxu0 %v738
  %1001 = vmatprep.subr.bf16.mxu0 0
  %1002 = vmatpush1.bf16.msra.mxu0 %v739
  %1003 = vmatprep.subr.bf16.mxu0 0
  %1004 = vmatpush1.bf16.msra.mxu0 %v740
  %1005 = vmatprep.subr.bf16.mxu0 0
  %1006 = vmatpush1.bf16.msra.mxu0 %v741
  %1007 = vmatprep.subr.bf16.mxu0 0
  %1008 = vmatpush1.bf16.msra.mxu0 %v742
  %1009 = vmatprep.mubr.bf16.mxu0 %v283
  %1010 = vmatmul.mubr.bf16.gmra.mrb[0].mxu0 %v282
  %v1011 = vpop.f32.mrb[0].mxu0
  %v1012 = vadd.f32 %v971, %v1011
  %v1013 = vpop.f32.mrb[0].mxu0
  %v1014 = vpop.f32.mrb[0].mxu0
  %v1015 = vadd.f32 %v974, %v1014
  %v1016 = vpop.f32.mrb[0].mxu0
  %1017 = vdwg.mxu0
  %1018 = vmatprep.subr.bf16.mxu0 0
  %1019 = vmatpush1.bf16.msra.mxu0 %v743
  %1020 = vmatprep.subr.bf16.mxu0 0
  %1021 = vmatpush1.bf16.msra.mxu0 %v744
  %1022 = vmatprep.subr.bf16.mxu0 0
  %1023 = vmatpush1.bf16.msra.mxu0 %v745
  %1024 = vmatprep.subr.bf16.mxu0 0
  %1025 = vmatpush1.bf16.msra.mxu0 %v746
  %1026 = vmatprep.subr.bf16.mxu0 0
  %1027 = vmatpush1.bf16.msra.mxu0 %v747
  %1028 = vmatprep.subr.bf16.mxu0 0
  %1029 = vmatpush1.bf16.msra.mxu0 %v748
  %1030 = vmatprep.subr.bf16.mxu0 0
  %1031 = vmatpush1.bf16.msra.mxu0 %v749
  %1032 = vmatprep.subr.bf16.mxu0 0
  %1033 = vmatpush1.bf16.msra.mxu0 %v750
  %1034 = vmatprep.subr.bf16.mxu0 0
  %1035 = vmatpush1.bf16.msra.mxu0 %v751
  %1036 = vmatprep.subr.bf16.mxu0 0
  %1037 = vmatpush1.bf16.msra.mxu0 %v752
  %1038 = vmatprep.subr.bf16.mxu0 0
  %1039 = vmatpush1.bf16.msra.mxu0 %v753
  %1040 = vmatprep.subr.bf16.mxu0 0
  %1041 = vmatpush1.bf16.msra.mxu0 %v754
  %1042 = vmatprep.subr.bf16.mxu0 0
  %1043 = vmatpush1.bf16.msra.mxu0 %v755
  %1044 = vmatprep.subr.bf16.mxu0 0
  %1045 = vmatpush1.bf16.msra.mxu0 %v756
  %1046 = vmatprep.subr.bf16.mxu0 0
  %1047 = vmatpush1.bf16.msra.mxu0 %v757
  %1048 = vmatprep.subr.bf16.mxu0 0
  %1049 = vmatpush1.bf16.msra.mxu0 %v758
  %1050 = vmatprep.mubr.bf16.mxu0 %v285
  %1051 = vmatmul.mubr.bf16.gmra.mrb[0].mxu0 %v284
  %v1052 = vpop.f32.mrb[0].mxu0
  %v1053 = vadd.f32 %v1012, %v1052
  %v1054 = vpop.f32.mrb[0].mxu0
  %v1055 = vpop.f32.mrb[0].mxu0
  %v1056 = vadd.f32 %v1015, %v1055
  %v1057 = vpop.f32.mrb[0].mxu0
  %1058 = vdwg.mxu0
  %1059 = vmatprep.subr.bf16.mxu0 0
  %1060 = vmatpush1.bf16.msra.mxu0 %v759
  %1061 = vmatprep.subr.bf16.mxu0 0
  %1062 = vmatpush1.bf16.msra.mxu0 %v760
  %1063 = vmatprep.subr.bf16.mxu0 0
  %1064 = vmatpush1.bf16.msra.mxu0 %v761
  %1065 = vmatprep.subr.bf16.mxu0 0
  %1066 = vmatpush1.bf16.msra.mxu0 %v762
  %1067 = vmatprep.subr.bf16.mxu0 0
  %1068 = vmatpush1.bf16.msra.mxu0 %v763
  %1069 = vmatprep.subr.bf16.mxu0 0
  %1070 = vmatpush1.bf16.msra.mxu0 %v764
  %1071 = vmatprep.subr.bf16.mxu0 0
  %1072 = vmatpush1.bf16.msra.mxu0 %v765
  %1073 = vmatprep.subr.bf16.mxu0 0
  %1074 = vmatpush1.bf16.msra.mxu0 %v766
  %1075 = vmatprep.subr.bf16.mxu0 0
  %1076 = vmatpush1.bf16.msra.mxu0 %v767
  %1077 = vmatprep.subr.bf16.mxu0 0
  %1078 = vmatpush1.bf16.msra.mxu0 %v768
  %1079 = vmatprep.subr.bf16.mxu0 0
  %1080 = vmatpush1.bf16.msra.mxu0 %v769
  %1081 = vmatprep.subr.bf16.mxu0 0
  %1082 = vmatpush1.bf16.msra.mxu0 %v770
  %1083 = vmatprep.subr.bf16.mxu0 0
  %1084 = vmatpush1.bf16.msra.mxu0 %v771
  %1085 = vmatprep.subr.bf16.mxu0 0
  %1086 = vmatpush1.bf16.msra.mxu0 %v772
  %1087 = vmatprep.subr.bf16.mxu0 0
  %1088 = vmatpush1.bf16.msra.mxu0 %v773
  %1089 = vmatprep.subr.bf16.mxu0 0
  %1090 = vmatpush1.bf16.msra.mxu0 %v774
  %1091 = vmatprep.mubr.bf16.mxu0 %v287
  %1092 = vmatmul.mubr.bf16.gmra.mrb[0].mxu0 %v286
  %v1093 = vpop.f32.mrb[0].mxu0
  %v1094 = vadd.f32 %v1053, %v1093
  %v1095 = vpop.f32.mrb[0].mxu0
  %v1096 = vpop.f32.mrb[0].mxu0
  %v1097 = vadd.f32 %v1056, %v1096
  %v1098 = vpop.f32.mrb[0].mxu0
  %1099 = vdwg.mxu0
  %1100 = vmatprep.subr.bf16.mxu0 0
  %1101 = vmatpush1.bf16.msra.mxu0 %v775
  %1102 = vmatprep.subr.bf16.mxu0 0
  %1103 = vmatpush1.bf16.msra.mxu0 %v776
  %1104 = vmatprep.subr.bf16.mxu0 0
  %1105 = vmatpush1.bf16.msra.mxu0 %v777
  %1106 = vmatprep.subr.bf16.mxu0 0
  %1107 = vmatpush1.bf16.msra.mxu0 %v778
  %1108 = vmatprep.subr.bf16.mxu0 0
  %1109 = vmatpush1.bf16.msra.mxu0 %v779
  %1110 = vmatprep.subr.bf16.mxu0 0
  %1111 = vmatpush1.bf16.msra.mxu0 %v780
  %1112 = vmatprep.subr.bf16.mxu0 0
  %1113 = vmatpush1.bf16.msra.mxu0 %v781
  %1114 = vmatprep.subr.bf16.mxu0 0
  %1115 = vmatpush1.bf16.msra.mxu0 %v782
  %1116 = vmatprep.subr.bf16.mxu0 0
  %1117 = vmatpush1.bf16.msra.mxu0 %v783
  %1118 = vmatprep.subr.bf16.mxu0 0
  %1119 = vmatpush1.bf16.msra.mxu0 %v784
  %1120 = vmatprep.subr.bf16.mxu0 0
  %1121 = vmatpush1.bf16.msra.mxu0 %v785
  %1122 = vmatprep.subr.bf16.mxu0 0
  %1123 = vmatpush1.bf16.msra.mxu0 %v786
  %1124 = vmatprep.subr.bf16.mxu0 0
  %1125 = vmatpush1.bf16.msra.mxu0 %v787
  %1126 = vmatprep.subr.bf16.mxu0 0
  %1127 = vmatpush1.bf16.msra.mxu0 %v788
  %1128 = vmatprep.subr.bf16.mxu0 0
  %1129 = vmatpush1.bf16.msra.mxu0 %v789
  %1130 = vmatprep.subr.bf16.mxu0 0
  %1131 = vmatpush1.bf16.msra.mxu0 %v790
  %1132 = vmatprep.mubr.bf16.mxu0 %v289
  %1133 = vmatmul.mubr.bf16.gmra.mrb[0].mxu0 %v288
  %v1134 = vpop.f32.mrb[0].mxu0
  %v1135 = vadd.f32 %v1094, %v1134
  %v1136 = vpop.f32.mrb[0].mxu0
  %v1137 = vpop.f32.mrb[0].mxu0
  %v1138 = vadd.f32 %v1097, %v1137
  %v1139 = vpop.f32.mrb[0].mxu0
  %1140 = vdwg.mxu0
  %1141 = vmatprep.subr.bf16.mxu0 0
  %1142 = vmatpush1.bf16.msra.mxu0 %v791
  %1143 = vmatprep.subr.bf16.mxu0 0
  %1144 = vmatpush1.bf16.msra.mxu0 %v792
  %1145 = vmatprep.subr.bf16.mxu0 0
  %1146 = vmatpush1.bf16.msra.mxu0 0
  %1147 = vmatprep.subr.bf16.mxu0 0
  %1148 = vmatpush1.bf16.msra.mxu0 0
  %1149 = vmatprep.subr.bf16.mxu0 0
  %1150 = vmatpush1.bf16.msra.mxu0 0
  %1151 = vmatprep.subr.bf16.mxu0 0
  %1152 = vmatpush1.bf16.msra.mxu0 0
  %1153 = vmatprep.subr.bf16.mxu0 0
  %1154 = vmatpush1.bf16.msra.mxu0 0
  %1155 = vmatprep.subr.bf16.mxu0 0
  %1156 = vmatpush1.bf16.msra.mxu0 0
  %1157 = vmatprep.subr.bf16.mxu0 0
  %1158 = vmatpush1.bf16.msra.mxu0 0
  %1159 = vmatprep.subr.bf16.mxu0 0
  %1160 = vmatpush1.bf16.msra.mxu0 0
  %1161 = vmatprep.subr.bf16.mxu0 0
  %1162 = vmatpush1.bf16.msra.mxu0 0
  %1163 = vmatprep.subr.bf16.mxu0 0
  %1164 = vmatpush1.bf16.msra.mxu0 0
  %1165 = vmatprep.subr.bf16.mxu0 0
  %1166 = vmatpush1.bf16.msra.mxu0 0
  %1167 = vmatprep.subr.bf16.mxu0 0
  %1168 = vmatpush1.bf16.msra.mxu0 0
  %1169 = vmatprep.subr.bf16.mxu0 0
  %1170 = vmatpush1.bf16.msra.mxu0 0
  %1171 = vmatprep.subr.bf16.mxu0 0
  %1172 = vmatpush1.bf16.msra.mxu0 0
  %1173 = vmatprep.mubr.bf16.mxu0 0
  %1174 = vmatmul.mubr.bf16.gmra.mrb[0].mxu0 %v893
  %v1175 = vpop.f32.mrb[0].mxu0
  %v1176 = vadd.f32 %v1135, %v1175
  %v1177 = vpop.f32.mrb[0].mxu0
  %v1178 = vpop.f32.mrb[0].mxu0
  %v1179 = vadd.f32 %v1138, %v1178
  %v1180 = vpop.f32.mrb[0].mxu0
  %1181 = vdwg.mxu0
  %v1182 = vmax.f32 %v1176, 0.0
  %v1183 = vmax.f32 %v1179, 0.0
  %v1184 = vpack.c.bf16 %v1183, %v1182
  %v1185 = vld [vmem:[%s3] sm:$0xf]
  %v1186 = vld [vmem:[%s3 + $0x4] sm:$0xf]
  %v1187 = vld [vmem:[%s3 + $0x8] sm:$0xf]
  %v1188 = vld [vmem:[%s3 + $0xc] sm:$0xf]
  %v1189 = vld [vmem:[%s3 + $0x10] sm:$0xf]
  %v1190 = vld [vmem:[%s3 + $0x14] sm:$0xf]
  %v1191 = vld [vmem:[%s3 + $0x18] sm:$0xf]
  %v1192 = vld [vmem:[%s3 + $0x1c] sm:$0xf]
  %v1193 = vld [vmem:[%s3 + $0x20] sm:$0xf]
  %v1194 = vld [vmem:[%s3 + $0x24] sm:$0xf]
  %v1195 = vld [vmem:[%s3 + $0x28] sm:$0xf]
  %v1196 = vld [vmem:[%s3 + $0x2c] sm:$0xf]
  %v1197 = vld [vmem:[%s3 + $0x30] sm:$0xf]
  %v1198 = vld [vmem:[%s3 + $0x34] sm:$0xf]
  %v1199 = vld [vmem:[%s3 + $0x38] sm:$0xf]
  %v1200 = vld [vmem:[%s3 + $0x3c] sm:$0xf]
  %v1201 = vld [vmem:[%s4] sm:$0x1]
  %v1203 = vlaneseq
  %v1204 = vshrl.u32 %v1203, 7
  %v1205 = vsub.s32 0, %v1204
  %v1206 = vrot.slane %v1201, %v1205
  %v1224 = vunpack.c.l.b16 %v1185
  %v1225 = vunpack.c.l.b16 %v1186
  %v1226 = vunpack.c.l.b16 %v1187
  %v1227 = vunpack.c.l.b16 %v1188
  %v1228 = vunpack.c.l.b16 %v1189
  %v1229 = vunpack.c.l.b16 %v1190
  %v1230 = vunpack.c.l.b16 %v1191
  %v1231 = vunpack.c.l.b16 %v1192
  %v1232 = vunpack.c.l.b16 %v1193
  %v1233 = vunpack.c.l.b16 %v1194
  %v1234 = vunpack.c.l.b16 %v1195
  %v1235 = vunpack.c.l.b16 %v1196
  %v1236 = vunpack.c.l.b16 %v1197
  %v1237 = vunpack.c.l.b16 %v1198
  %v1238 = vunpack.c.l.b16 %v1199
  %v1239 = vunpack.c.l.b16 %v1200
  %v1240 = vpack.c.b16 %v1225, %v1224
  %v1241 = vpack.c.b16 %v1227, %v1226
  %v1242 = vpack.c.b16 %v1229, %v1228
  %v1243 = vpack.c.b16 %v1231, %v1230
  %v1244 = vpack.c.b16 %v1233, %v1232
  %v1245 = vpack.c.b16 %v1235, %v1234
  %v1246 = vpack.c.b16 %v1237, %v1236
  %v1247 = vpack.c.b16 %v1239, %v1238
  %1256 = vmatprep.subr.bf16.mxu0 0
  %1257 = vmatpush1.bf16.msra.mxu0 %v1240
  %1258 = vmatprep.subr.bf16.mxu0 0
  %1259 = vmatpush1.bf16.msra.mxu0 %v1241
  %1260 = vmatprep.subr.bf16.mxu0 0
  %1261 = vmatpush1.bf16.msra.mxu0 %v1242
  %1262 = vmatprep.subr.bf16.mxu0 0
  %1263 = vmatpush1.bf16.msra.mxu0 %v1243
  %1264 = vmatprep.subr.bf16.mxu0 0
  %1265 = vmatpush1.bf16.msra.mxu0 %v1244
  %1266 = vmatprep.subr.bf16.mxu0 0
  %1267 = vmatpush1.bf16.msra.mxu0 %v1245
  %1268 = vmatprep.subr.bf16.mxu0 0
  %1269 = vmatpush1.bf16.msra.mxu0 %v1246
  %1270 = vmatprep.subr.bf16.mxu0 0
  %1271 = vmatpush1.bf16.msra.mxu0 %v1247
  %1272 = vmatprep.subr.bf16.mxu0 0
  %1273 = vmatpush1.bf16.msra.mxu0 0
  %1274 = vmatprep.subr.bf16.mxu0 0
  %1275 = vmatpush1.bf16.msra.mxu0 0
  %1276 = vmatprep.subr.bf16.mxu0 0
  %1277 = vmatpush1.bf16.msra.mxu0 0
  %1278 = vmatprep.subr.bf16.mxu0 0
  %1279 = vmatpush1.bf16.msra.mxu0 0
  %1280 = vmatprep.subr.bf16.mxu0 0
  %1281 = vmatpush1.bf16.msra.mxu0 0
  %1282 = vmatprep.subr.bf16.mxu0 0
  %1283 = vmatpush1.bf16.msra.mxu0 0
  %1284 = vmatprep.subr.bf16.mxu0 0
  %1285 = vmatpush1.bf16.msra.mxu0 0
  %1286 = vmatprep.subr.bf16.mxu0 0
  %1287 = vmatpush1.bf16.msra.mxu0 0
  %1288 = vmatprep.mubr.bf16.mxu0 0
  %1289 = vmatmul.mubr.bf16.gmra.mrb[0].mxu0 %v1184
  %v1290 = vpop.f32.mrb[0].mxu0
  %v1291 = vadd.f32 %v1206, %v1290
  %v1292 = vpop.f32.mrb[0].mxu0
  %v1293 = vpop.f32.mrb[0].mxu0
  %v1294 = vadd.f32 %v1206, %v1293
  %v1295 = vpop.f32.mrb[0].mxu0
  %1296 = vdwg.mxu0
  %1297 = vst [vmem:[%s5] sm:$0xff] %v1291
  %1298 = vst [vmem:[%s5 + $0x8] sm:$0xff] %v1294
  // Predicated region
  $region22: #{convnet_forward.5} parent=0 // pred_check
    _
  $region23: #{convnet_forward.5} parent=0 // pred_check_branch
    %1300 = sbr.rel (0) target = $region25
  $region24: #{convnet_forward.5} parent=0 // pred_region
    _
  $region25: #{convnet_forward.5} parent=0 // pred_fallthru
    _
  // Predicated region
  $region26: #{convnet_forward.5} parent=0 // pred_check
    _
  $region27: #{convnet_forward.5} parent=0 // pred_check_branch
    %1302 = sbr.rel (0) target = $region29
  $region28: #{convnet_forward.5} parent=0 // pred_region
    _
  $region29: #{convnet_forward.5} parent=0 // pred_fallthru
    _

</llo_original>
